<compile_context>
chip_gen: v7x
topology: tpu7x:2x2x1
jax: 0.10.0
libtpu: 0.0.40
codegen_flags: <defaults>
</compile_context>

<pallas_src>
import functools

import jax
import jax.numpy as jnp
from jax.experimental import pallas as pl
from jax.experimental.pallas import tpu as pltpu


def _round_up(v, m):
    return -(-v // m) * m


def _spatial_attention_kernel(x_ref, w_ref, o_ref, maps_ref, *,
                              ksize, C, H, W, R, VW, S, c_chunk):
    """x_ref   : (Bt, C, H*W) VMEM  raw input tile, row-major over (H, W).
       w_ref   : (2*k*k,)     SMEM  conv weights, [c, kh, kw] order; avg half pre-scaled by 1/C.
       o_ref   : (Bt, H*R)    VMEM  sigmoid(conv), flat with 128-aligned row stride R;
                                    columns w >= W of each row are don't-care.
       maps_ref: (2, Bt, S)   VMEM  zero-padded channel-sum / channel-max maps: one
                                    128-aligned chunk of R lanes per padded row plus a
                                    leading all-zero chunk; data row h lives at lanes
                                    R + (h+pad)*R + [0, W)."""
    Bt = x_ref.shape[0]
    N = H * W
    pad = (ksize - 1) // 2
    Lout = H * R

    # ---- 1. single-pass channel reduction: running sum + running max ----------
    n_full = C // c_chunk

    def body(i, carry):
        s, m = carry
        c0 = pl.multiple_of(i * c_chunk, c_chunk)
        chunk = x_ref[:, pl.ds(c0, c_chunk), :].astype(jnp.float32)     # (Bt, cc, N)
        return s + jnp.sum(chunk, axis=1), jnp.maximum(m, jnp.max(chunk, axis=1))

    s = jnp.zeros((Bt, N), jnp.float32)
    m = jnp.full((Bt, N), -jnp.inf, jnp.float32)
    if n_full > 0:
        s, m = jax.lax.fori_loop(0, n_full, body, (s, m), unroll=True)
    if C % c_chunk:
        tail = x_ref[:, n_full * c_chunk:C, :].astype(jnp.float32)
        s = s + jnp.sum(tail, axis=1)
        m = jnp.maximum(m, jnp.max(tail, axis=1))

    # ---- 2. scatter rows into the zero-padded, 128-row-stride maps ------------
    # (Unconditional per-step zeroing: cheap, and safe under megacore "parallel"
    #  splitting of the batch grid axis.)
    maps_ref[0, :, :] = jnp.zeros((Bt, S), jnp.float32)
    maps_ref[1, :, :] = jnp.zeros((Bt, S), jnp.float32)
    for h in range(H):
        dst = pl.ds(R + (h + pad) * R, W)          # 128-aligned start, masked width W
        maps_ref[0, :, dst] = s[:, h * W:(h + 1) * W]
        maps_ref[1, :, dst] = m[:, h * W:(h + 1) * W]

    # ---- 3. kxk conv: aligned vld re-reads + scalar MACs; ONE small shift per kw
    acc = jnp.zeros((Bt, Lout), jnp.float32)
    for kw in range(ksize):
        v = None
        for c in range(2):
            for kh in range(ksize):
                wgt = w_ref[(c * ksize + kh) * ksize + kw]
                term = wgt * maps_ref[c, :, pl.ds(kh * R, VW)]   # lane-aligned load
                v = term if v is None else v + term
        off = R + kw - pad
        acc = acc + v[:, off:off + Lout]           # single small lane shift per kw tap

    o_ref[...] = jax.nn.sigmoid(acc).astype(o_ref.dtype)


def spatial_attention(x, w, *, vmem_budget_bytes=36 * 1024 * 1024,
                      vmem_limit_bytes=52 * 1024 * 1024):
    """x: (B, C, H, W) NCHW; w: Conv2d(2 -> 1, k, bias=False) weight, (2,k,k) or (1,2,k,k).

    Returns sigmoid(conv_kxk(cat([mean_c(x), max_c(x)], 1))) with shape (B, 1, H, W).
    """
    B, C, H, W = x.shape
    w = jnp.asarray(w, jnp.float32).reshape(-1)
    ksize = int(round(float(w.size // 2) ** 0.5))
    assert w.size == 2 * ksize * ksize and ksize % 2 == 1, (
        "expected a square, odd 2->1 conv kernel, got %d weights" % w.size)
    pad = (ksize - 1) // 2
    Hp = H + 2 * pad

    # Geometry of the lane-major, 128-row-stride flattened conv.
    N = H * W                          # raw input plane, row-major
    R = _round_up(W + pad, 128)        # padded-map row stride (lane aligned)
    Lout = H * R                       # output slab width (multiple of 128 -> unmasked vst)
    VW = Lout + 2 * R                  # width of each aligned per-(c,kh) map read
    S = (Hp + 2) * R                   # padded-map scratch width (+ leading/trailing zero chunk)

    # Fold 1/C into the avg-channel weights (kernel accumulates a plain channel sum).
    w = jnp.concatenate([w[:ksize * ksize] / C, w[ksize * ksize:]])

    # Batch tile: biggest Bt that fits the VMEM budget (double-buffered in/out + scratch)
    # while keeping the conv working set roughly inside the 64 x 4 KiB vreg file.
    x_bytes = jnp.dtype(x.dtype).itemsize
    per_b_vmem = 2 * C * N * x_bytes + 2 * Lout * 4 + 2 * S * 4
    bt_vmem = max(1, vmem_budget_bytes // per_b_vmem)
    bt_reg = max(1, (256 * 1024) // ((2 * VW + Lout) * 4))
    Bt = int(min(B, bt_vmem, bt_reg))
    if Bt < B:
        Bt = max(8, (Bt // 8) * 8)     # output-block sublane dim must be a multiple of 8
        if Bt >= B:
            Bt = B

    c_chunk = max(8, 32 // x_bytes)    # 8 sublanes of f32, 16 of bf16, ...
    kernel = functools.partial(
        _spatial_attention_kernel, ksize=ksize, C=C, H=H, W=W,
        R=R, VW=VW, S=S, c_chunk=c_chunk)

    out_flat = pl.pallas_call(
        kernel,
        out_shape=jax.ShapeDtypeStruct((B, Lout), jnp.float32),
        grid=(pl.cdiv(B, Bt),),
        in_specs=[pl.BlockSpec((Bt, C, N), lambda b: (b, 0, 0)),
                  pl.BlockSpec(memory_space=pltpu.MemorySpace.SMEM)],
        out_specs=pl.BlockSpec((Bt, Lout), lambda b: (b, 0)),
        scratch_shapes=[pltpu.VMEM((2, Bt, S), jnp.float32)],
        compiler_params=pltpu.CompilerParams(
            dimension_semantics=("parallel",),
            vmem_limit_bytes=vmem_limit_bytes),
    )(x.reshape(B, C, N), w)

    # Layout plumbing: drop the don't-care columns and add the channel dim.
    att = out_flat.reshape(B, H, R)[:, :, :W]
    return att[:, None, :, :].astype(x.dtype)


if __name__ == "__main__":
    key = jax.random.PRNGKey(0)
    k1, k2 = jax.random.split(key)

    B, C, H, W = 2, 64, 16, 16
    x = jax.random.normal(k1, (B, C, H, W), jnp.float32)
    w_sa = jax.random.normal(k2, (2, 7, 7), jnp.float32) / jnp.sqrt(2.0 * 7 * 7)

    out = jax.jit(spatial_attention)(x, w_sa)
    out = jax.block_until_ready(out)
    assert out.shape == (B, 1, H, W), out.shape
    assert bool(jnp.all(jnp.isfinite(out)))

    # Pure-JAX reference (same math as the PyTorch module).
    avg = jnp.mean(x, axis=1, keepdims=True)
    mx = jnp.max(x, axis=1, keepdims=True)
    maps = jnp.concatenate([avg, mx], axis=1)                           # (B, 2, H, W)
    ref = jax.lax.conv_general_dilated(
        maps, w_sa[None], window_strides=(1, 1), padding="SAME",
        dimension_numbers=("NCHW", "OIHW", "NCHW"),
        precision=jax.lax.Precision.HIGHEST)
    ref = jax.nn.sigmoid(ref)
    err = float(jnp.max(jnp.abs(out - ref)))
    assert bool(jnp.allclose(out, ref, atol=1e-3, rtol=1e-3)), err

    print("KERNEL_OK")
</pallas_src>

<mosaic_0001>
module attributes {stable_mosaic.version = 11 : i64} {
  func.func @_spatial_attention_kernel(%arg0: i32, %arg1: memref<2x64x256xf32, #tpu.memory_space<vmem>>, %arg2: memref<98xf32, #tpu.memory_space<smem>>, %arg3: memref<2x2048xf32, #tpu.memory_space<vmem>>, %arg4: memref<2x2x3072xf32, #tpu.memory_space<vmem>>) attributes {dimension_semantics = [#tpu.dimension_semantics<parallel>], iteration_bounds = array<i64: 1>, scalar_prefetch = 0 : i64, scratch_operands = 1 : i64, tpu.core_type = #tpu.core_type<tc>, window_params = [{transform_indices = @transform_0, window_bounds = array<i64: 2, 64, 256>}, {transform_indices = @transform_1, window_bounds = array<i64: 98>}, {transform_indices = @transform_2, window_bounds = array<i64: 2, 2048>}]} {
    %cst = arith.constant 0.000000e+00 : f32
    %0 = vector.broadcast %cst : f32 to vector<2x256xf32>
    %cst_0 = arith.constant 0xFF800000 : f32
    %1 = vector.broadcast %cst_0 : f32 to vector<2x256xf32>
    %c0_i32 = arith.constant 0 : i32
    %c8_i32 = arith.constant 8 : i32
    %2 = arith.muli %c0_i32, %c8_i32 : i32
    %3 = tpu.assume_multiple %2, 8 : i32
    %c0 = arith.constant 0 : index
    %4 = arith.index_cast %3 : i32 to index
    %c0_1 = arith.constant 0 : index
    %5 = vector.load %arg1[%c0, %4, %c0_1] : memref<2x64x256xf32, #tpu.memory_space<vmem>>, vector<2x8x256xf32>
    %cst_2 = arith.constant dense<0.000000e+00> : vector<2x256xf32>
    %6 = vector.multi_reduction <add>, %5, %cst_2 [1] : vector<2x8x256xf32> to vector<2x256xf32>
    %7 = arith.addf %0, %6 : vector<2x256xf32>
    %cst_3 = arith.constant dense<0xFF800000> : vector<2x256xf32>
    %8 = vector.multi_reduction <maximumf>, %5, %cst_3 [1] : vector<2x8x256xf32> to vector<2x256xf32>
    %9 = arith.maximumf %1, %8 : vector<2x256xf32>
    %c1_i32 = arith.constant 1 : i32
    %c8_i32_4 = arith.constant 8 : i32
    %10 = arith.muli %c1_i32, %c8_i32_4 : i32
    %11 = tpu.assume_multiple %10, 8 : i32
    %c0_5 = arith.constant 0 : index
    %12 = arith.index_cast %11 : i32 to index
    %c0_6 = arith.constant 0 : index
    %13 = vector.load %arg1[%c0_5, %12, %c0_6] : memref<2x64x256xf32, #tpu.memory_space<vmem>>, vector<2x8x256xf32>
    %cst_7 = arith.constant dense<0.000000e+00> : vector<2x256xf32>
    %14 = vector.multi_reduction <add>, %13, %cst_7 [1] : vector<2x8x256xf32> to vector<2x256xf32>
    %15 = arith.addf %7, %14 : vector<2x256xf32>
    %cst_8 = arith.constant dense<0xFF800000> : vector<2x256xf32>
    %16 = vector.multi_reduction <maximumf>, %13, %cst_8 [1] : vector<2x8x256xf32> to vector<2x256xf32>
    %17 = arith.maximumf %9, %16 : vector<2x256xf32>
    %c2_i32 = arith.constant 2 : i32
    %c8_i32_9 = arith.constant 8 : i32
    %18 = arith.muli %c2_i32, %c8_i32_9 : i32
    %19 = tpu.assume_multiple %18, 8 : i32
    %c0_10 = arith.constant 0 : index
    %20 = arith.index_cast %19 : i32 to index
    %c0_11 = arith.constant 0 : index
    %21 = vector.load %arg1[%c0_10, %20, %c0_11] : memref<2x64x256xf32, #tpu.memory_space<vmem>>, vector<2x8x256xf32>
    %cst_12 = arith.constant dense<0.000000e+00> : vector<2x256xf32>
    %22 = vector.multi_reduction <add>, %21, %cst_12 [1] : vector<2x8x256xf32> to vector<2x256xf32>
    %23 = arith.addf %15, %22 : vector<2x256xf32>
    %cst_13 = arith.constant dense<0xFF800000> : vector<2x256xf32>
    %24 = vector.multi_reduction <maximumf>, %21, %cst_13 [1] : vector<2x8x256xf32> to vector<2x256xf32>
    %25 = arith.maximumf %17, %24 : vector<2x256xf32>
    %c3_i32 = arith.constant 3 : i32
    %c8_i32_14 = arith.constant 8 : i32
    %26 = arith.muli %c3_i32, %c8_i32_14 : i32
    %27 = tpu.assume_multiple %26, 8 : i32
    %c0_15 = arith.constant 0 : index
    %28 = arith.index_cast %27 : i32 to index
    %c0_16 = arith.constant 0 : index
    %29 = vector.load %arg1[%c0_15, %28, %c0_16] : memref<2x64x256xf32, #tpu.memory_space<vmem>>, vector<2x8x256xf32>
    %cst_17 = arith.constant dense<0.000000e+00> : vector<2x256xf32>
    %30 = vector.multi_reduction <add>, %29, %cst_17 [1] : vector<2x8x256xf32> to vector<2x256xf32>
    %31 = arith.addf %23, %30 : vector<2x256xf32>
    %cst_18 = arith.constant dense<0xFF800000> : vector<2x256xf32>
    %32 = vector.multi_reduction <maximumf>, %29, %cst_18 [1] : vector<2x8x256xf32> to vector<2x256xf32>
    %33 = arith.maximumf %25, %32 : vector<2x256xf32>
    %c4_i32 = arith.constant 4 : i32
    %c8_i32_19 = arith.constant 8 : i32
    %34 = arith.muli %c4_i32, %c8_i32_19 : i32
    %35 = tpu.assume_multiple %34, 8 : i32
    %c0_20 = arith.constant 0 : index
    %36 = arith.index_cast %35 : i32 to index
    %c0_21 = arith.constant 0 : index
    %37 = vector.load %arg1[%c0_20, %36, %c0_21] : memref<2x64x256xf32, #tpu.memory_space<vmem>>, vector<2x8x256xf32>
    %cst_22 = arith.constant dense<0.000000e+00> : vector<2x256xf32>
    %38 = vector.multi_reduction <add>, %37, %cst_22 [1] : vector<2x8x256xf32> to vector<2x256xf32>
    %39 = arith.addf %31, %38 : vector<2x256xf32>
    %cst_23 = arith.constant dense<0xFF800000> : vector<2x256xf32>
    %40 = vector.multi_reduction <maximumf>, %37, %cst_23 [1] : vector<2x8x256xf32> to vector<2x256xf32>
    %41 = arith.maximumf %33, %40 : vector<2x256xf32>
    %c5_i32 = arith.constant 5 : i32
    %c8_i32_24 = arith.constant 8 : i32
    %42 = arith.muli %c5_i32, %c8_i32_24 : i32
    %43 = tpu.assume_multiple %42, 8 : i32
    %c0_25 = arith.constant 0 : index
    %44 = arith.index_cast %43 : i32 to index
    %c0_26 = arith.constant 0 : index
    %45 = vector.load %arg1[%c0_25, %44, %c0_26] : memref<2x64x256xf32, #tpu.memory_space<vmem>>, vector<2x8x256xf32>
    %cst_27 = arith.constant dense<0.000000e+00> : vector<2x256xf32>
    %46 = vector.multi_reduction <add>, %45, %cst_27 [1] : vector<2x8x256xf32> to vector<2x256xf32>
    %47 = arith.addf %39, %46 : vector<2x256xf32>
    %cst_28 = arith.constant dense<0xFF800000> : vector<2x256xf32>
    %48 = vector.multi_reduction <maximumf>, %45, %cst_28 [1] : vector<2x8x256xf32> to vector<2x256xf32>
    %49 = arith.maximumf %41, %48 : vector<2x256xf32>
    %c6_i32 = arith.constant 6 : i32
    %c8_i32_29 = arith.constant 8 : i32
    %50 = arith.muli %c6_i32, %c8_i32_29 : i32
    %51 = tpu.assume_multiple %50, 8 : i32
    %c0_30 = arith.constant 0 : index
    %52 = arith.index_cast %51 : i32 to index
    %c0_31 = arith.constant 0 : index
    %53 = vector.load %arg1[%c0_30, %52, %c0_31] : memref<2x64x256xf32, #tpu.memory_space<vmem>>, vector<2x8x256xf32>
    %cst_32 = arith.constant dense<0.000000e+00> : vector<2x256xf32>
    %54 = vector.multi_reduction <add>, %53, %cst_32 [1] : vector<2x8x256xf32> to vector<2x256xf32>
    %55 = arith.addf %47, %54 : vector<2x256xf32>
    %cst_33 = arith.constant dense<0xFF800000> : vector<2x256xf32>
    %56 = vector.multi_reduction <maximumf>, %53, %cst_33 [1] : vector<2x8x256xf32> to vector<2x256xf32>
    %57 = arith.maximumf %49, %56 : vector<2x256xf32>
    %c7_i32 = arith.constant 7 : i32
    %c8_i32_34 = arith.constant 8 : i32
    %58 = arith.muli %c7_i32, %c8_i32_34 : i32
    %59 = tpu.assume_multiple %58, 8 : i32
    %c0_35 = arith.constant 0 : index
    %60 = arith.index_cast %59 : i32 to index
    %c0_36 = arith.constant 0 : index
    %61 = vector.load %arg1[%c0_35, %60, %c0_36] : memref<2x64x256xf32, #tpu.memory_space<vmem>>, vector<2x8x256xf32>
    %cst_37 = arith.constant dense<0.000000e+00> : vector<2x256xf32>
    %62 = vector.multi_reduction <add>, %61, %cst_37 [1] : vector<2x8x256xf32> to vector<2x256xf32>
    %63 = arith.addf %55, %62 : vector<2x256xf32>
    %cst_38 = arith.constant dense<0xFF800000> : vector<2x256xf32>
    %64 = vector.multi_reduction <maximumf>, %61, %cst_38 [1] : vector<2x8x256xf32> to vector<2x256xf32>
    %65 = arith.maximumf %57, %64 : vector<2x256xf32>
    %c8_i32_39 = arith.constant 8 : i32
    %cst_40 = arith.constant 0.000000e+00 : f32
    %66 = vector.broadcast %cst_40 : f32 to vector<2x3072xf32>
    %c0_41 = arith.constant 0 : index
    %c0_42 = arith.constant 0 : index
    %c0_43 = arith.constant 0 : index
    %67 = vector.load %arg4[%c0_41, %c0_42, %c0_43] : memref<2x2x3072xf32, #tpu.memory_space<vmem>>, vector<1x2x3072xf32>
    %68 = vector.shape_cast %67 : vector<1x2x3072xf32> to vector<2x3072xf32>
    %69 = vector.shape_cast %66 : vector<2x3072xf32> to vector<1x2x3072xf32>
    tpu.vector_store %arg4[%c0_41, %c0_42, %c0_43], %69 {strides = array<i32>} : memref<2x2x3072xf32, #tpu.memory_space<vmem>>, vector<1x2x3072xf32>,
    %cst_44 = arith.constant 0.000000e+00 : f32
    %70 = vector.broadcast %cst_44 : f32 to vector<2x3072xf32>
    %c1 = arith.constant 1 : index
    %c0_45 = arith.constant 0 : index
    %c0_46 = arith.constant 0 : index
    %71 = vector.load %arg4[%c1, %c0_45, %c0_46] : memref<2x2x3072xf32, #tpu.memory_space<vmem>>, vector<1x2x3072xf32>
    %72 = vector.shape_cast %71 : vector<1x2x3072xf32> to vector<2x3072xf32>
    %73 = vector.shape_cast %70 : vector<2x3072xf32> to vector<1x2x3072xf32>
    tpu.vector_store %arg4[%c1, %c0_45, %c0_46], %73 {strides = array<i32>} : memref<2x2x3072xf32, #tpu.memory_space<vmem>>, vector<1x2x3072xf32>,
    %74 = vector.extract_strided_slice %63 {offsets = [0, 0], sizes = [2, 16], strides = [1, 1]} : vector<2x256xf32> to vector<2x16xf32>
    %c0_47 = arith.constant 0 : index
    %c0_48 = arith.constant 0 : index
    %c512 = arith.constant 512 : index
    %75 = vector.load %arg4[%c0_47, %c0_48, %c512] : memref<2x2x3072xf32, #tpu.memory_space<vmem>>, vector<1x2x16xf32>
    %76 = vector.shape_cast %75 : vector<1x2x16xf32> to vector<2x16xf32>
    %77 = vector.shape_cast %74 : vector<2x16xf32> to vector<1x2x16xf32>
    tpu.vector_store %arg4[%c0_47, %c0_48, %c512], %77 {strides = array<i32>} : memref<2x2x3072xf32, #tpu.memory_space<vmem>>, vector<1x2x16xf32>,
    %78 = vector.extract_strided_slice %65 {offsets = [0, 0], sizes = [2, 16], strides = [1, 1]} : vector<2x256xf32> to vector<2x16xf32>
    %c1_49 = arith.constant 1 : index
    %c0_50 = arith.constant 0 : index
    %c512_51 = arith.constant 512 : index
    %79 = vector.load %arg4[%c1_49, %c0_50, %c512_51] : memref<2x2x3072xf32, #tpu.memory_space<vmem>>, vector<1x2x16xf32>
    %80 = vector.shape_cast %79 : vector<1x2x16xf32> to vector<2x16xf32>
    %81 = vector.shape_cast %78 : vector<2x16xf32> to vector<1x2x16xf32>
    tpu.vector_store %arg4[%c1_49, %c0_50, %c512_51], %81 {strides = array<i32>} : memref<2x2x3072xf32, #tpu.memory_space<vmem>>, vector<1x2x16xf32>,
    %82 = vector.extract_strided_slice %63 {offsets = [0, 16], sizes = [2, 16], strides = [1, 1]} : vector<2x256xf32> to vector<2x16xf32>
    %c0_52 = arith.constant 0 : index
    %c0_53 = arith.constant 0 : index
    %c640 = arith.constant 640 : index
    %83 = vector.load %arg4[%c0_52, %c0_53, %c640] : memref<2x2x3072xf32, #tpu.memory_space<vmem>>, vector<1x2x16xf32>
    %84 = vector.shape_cast %83 : vector<1x2x16xf32> to vector<2x16xf32>
    %85 = vector.shape_cast %82 : vector<2x16xf32> to vector<1x2x16xf32>
    tpu.vector_store %arg4[%c0_52, %c0_53, %c640], %85 {strides = array<i32>} : memref<2x2x3072xf32, #tpu.memory_space<vmem>>, vector<1x2x16xf32>,
    %86 = vector.extract_strided_slice %65 {offsets = [0, 16], sizes = [2, 16], strides = [1, 1]} : vector<2x256xf32> to vector<2x16xf32>
    %c1_54 = arith.constant 1 : index
    %c0_55 = arith.constant 0 : index
    %c640_56 = arith.constant 640 : index
    %87 = vector.load %arg4[%c1_54, %c0_55, %c640_56] : memref<2x2x3072xf32, #tpu.memory_space<vmem>>, vector<1x2x16xf32>
    %88 = vector.shape_cast %87 : vector<1x2x16xf32> to vector<2x16xf32>
    %89 = vector.shape_cast %86 : vector<2x16xf32> to vector<1x2x16xf32>
    tpu.vector_store %arg4[%c1_54, %c0_55, %c640_56], %89 {strides = array<i32>} : memref<2x2x3072xf32, #tpu.memory_space<vmem>>, vector<1x2x16xf32>,
    %90 = vector.extract_strided_slice %63 {offsets = [0, 32], sizes = [2, 16], strides = [1, 1]} : vector<2x256xf32> to vector<2x16xf32>
    %c0_57 = arith.constant 0 : index
    %c0_58 = arith.constant 0 : index
    %c768 = arith.constant 768 : index
    %91 = vector.load %arg4[%c0_57, %c0_58, %c768] : memref<2x2x3072xf32, #tpu.memory_space<vmem>>, vector<1x2x16xf32>
    %92 = vector.shape_cast %91 : vector<1x2x16xf32> to vector<2x16xf32>
    %93 = vector.shape_cast %90 : vector<2x16xf32> to vector<1x2x16xf32>
    tpu.vector_store %arg4[%c0_57, %c0_58, %c768], %93 {strides = array<i32>} : memref<2x2x3072xf32, #tpu.memory_space<vmem>>, vector<1x2x16xf32>,
    %94 = vector.extract_strided_slice %65 {offsets = [0, 32], sizes = [2, 16], strides = [1, 1]} : vector<2x256xf32> to vector<2x16xf32>
    %c1_59 = arith.constant 1 : index
    %c0_60 = arith.constant 0 : index
    %c768_61 = arith.constant 768 : index
    %95 = vector.load %arg4[%c1_59, %c0_60, %c768_61] : memref<2x2x3072xf32, #tpu.memory_space<vmem>>, vector<1x2x16xf32>
    %96 = vector.shape_cast %95 : vector<1x2x16xf32> to vector<2x16xf32>
    %97 = vector.shape_cast %94 : vector<2x16xf32> to vector<1x2x16xf32>
    tpu.vector_store %arg4[%c1_59, %c0_60, %c768_61], %97 {strides = array<i32>} : memref<2x2x3072xf32, #tpu.memory_space<vmem>>, vector<1x2x16xf32>,
    %98 = vector.extract_strided_slice %63 {offsets = [0, 48], sizes = [2, 16], strides = [1, 1]} : vector<2x256xf32> to vector<2x16xf32>
    %c0_62 = arith.constant 0 : index
    %c0_63 = arith.constant 0 : index
    %c896 = arith.constant 896 : index
    %99 = vector.load %arg4[%c0_62, %c0_63, %c896] : memref<2x2x3072xf32, #tpu.memory_space<vmem>>, vector<1x2x16xf32>
    %100 = vector.shape_cast %99 : vector<1x2x16xf32> to vector<2x16xf32>
    %101 = vector.shape_cast %98 : vector<2x16xf32> to vector<1x2x16xf32>
    tpu.vector_store %arg4[%c0_62, %c0_63, %c896], %101 {strides = array<i32>} : memref<2x2x3072xf32, #tpu.memory_space<vmem>>, vector<1x2x16xf32>,
    %102 = vector.extract_strided_slice %65 {offsets = [0, 48], sizes = [2, 16], strides = [1, 1]} : vector<2x256xf32> to vector<2x16xf32>
    %c1_64 = arith.constant 1 : index
    %c0_65 = arith.constant 0 : index
    %c896_66 = arith.constant 896 : index
    %103 = vector.load %arg4[%c1_64, %c0_65, %c896_66] : memref<2x2x3072xf32, #tpu.memory_space<vmem>>, vector<1x2x16xf32>
    %104 = vector.shape_cast %103 : vector<1x2x16xf32> to vector<2x16xf32>
    %105 = vector.shape_cast %102 : vector<2x16xf32> to vector<1x2x16xf32>
    tpu.vector_store %arg4[%c1_64, %c0_65, %c896_66], %105 {strides = array<i32>} : memref<2x2x3072xf32, #tpu.memory_space<vmem>>, vector<1x2x16xf32>,
    %106 = vector.extract_strided_slice %63 {offsets = [0, 64], sizes = [2, 16], strides = [1, 1]} : vector<2x256xf32> to vector<2x16xf32>
    %c0_67 = arith.constant 0 : index
    %c0_68 = arith.constant 0 : index
    %c1024 = arith.constant 1024 : index
    %107 = vector.load %arg4[%c0_67, %c0_68, %c1024] : memref<2x2x3072xf32, #tpu.memory_space<vmem>>, vector<1x2x16xf32>
    %108 = vector.shape_cast %107 : vector<1x2x16xf32> to vector<2x16xf32>
    %109 = vector.shape_cast %106 : vector<2x16xf32> to vector<1x2x16xf32>
    tpu.vector_store %arg4[%c0_67, %c0_68, %c1024], %109 {strides = array<i32>} : memref<2x2x3072xf32, #tpu.memory_space<vmem>>, vector<1x2x16xf32>,
    %110 = vector.extract_strided_slice %65 {offsets = [0, 64], sizes = [2, 16], strides = [1, 1]} : vector<2x256xf32> to vector<2x16xf32>
    %c1_69 = arith.constant 1 : index
    %c0_70 = arith.constant 0 : index
    %c1024_71 = arith.constant 1024 : index
    %111 = vector.load %arg4[%c1_69, %c0_70, %c1024_71] : memref<2x2x3072xf32, #tpu.memory_space<vmem>>, vector<1x2x16xf32>
    %112 = vector.shape_cast %111 : vector<1x2x16xf32> to vector<2x16xf32>
    %113 = vector.shape_cast %110 : vector<2x16xf32> to vector<1x2x16xf32>
    tpu.vector_store %arg4[%c1_69, %c0_70, %c1024_71], %113 {strides = array<i32>} : memref<2x2x3072xf32, #tpu.memory_space<vmem>>, vector<1x2x16xf32>,
    %114 = vector.extract_strided_slice %63 {offsets = [0, 80], sizes = [2, 16], strides = [1, 1]} : vector<2x256xf32> to vector<2x16xf32>
    %c0_72 = arith.constant 0 : index
    %c0_73 = arith.constant 0 : index
    %c1152 = arith.constant 1152 : index
    %115 = vector.load %arg4[%c0_72, %c0_73, %c1152] : memref<2x2x3072xf32, #tpu.memory_space<vmem>>, vector<1x2x16xf32>
    %116 = vector.shape_cast %115 : vector<1x2x16xf32> to vector<2x16xf32>
    %117 = vector.shape_cast %114 : vector<2x16xf32> to vector<1x2x16xf32>
    tpu.vector_store %arg4[%c0_72, %c0_73, %c1152], %117 {strides = array<i32>} : memref<2x2x3072xf32, #tpu.memory_space<vmem>>, vector<1x2x16xf32>,
    %118 = vector.extract_strided_slice %65 {offsets = [0, 80], sizes = [2, 16], strides = [1, 1]} : vector<2x256xf32> to vector<2x16xf32>
    %c1_74 = arith.constant 1 : index
    %c0_75 = arith.constant 0 : index
    %c1152_76 = arith.constant 1152 : index
    %119 = vector.load %arg4[%c1_74, %c0_75, %c1152_76] : memref<2x2x3072xf32, #tpu.memory_space<vmem>>, vector<1x2x16xf32>
    %120 = vector.shape_cast %119 : vector<1x2x16xf32> to vector<2x16xf32>
    %121 = vector.shape_cast %118 : vector<2x16xf32> to vector<1x2x16xf32>
    tpu.vector_store %arg4[%c1_74, %c0_75, %c1152_76], %121 {strides = array<i32>} : memref<2x2x3072xf32, #tpu.memory_space<vmem>>, vector<1x2x16xf32>,
    %122 = vector.extract_strided_slice %63 {offsets = [0, 96], sizes = [2, 16], strides = [1, 1]} : vector<2x256xf32> to vector<2x16xf32>
    %c0_77 = arith.constant 0 : index
    %c0_78 = arith.constant 0 : index
    %c1280 = arith.constant 1280 : index
    %123 = vector.load %arg4[%c0_77, %c0_78, %c1280] : memref<2x2x3072xf32, #tpu.memory_space<vmem>>, vector<1x2x16xf32>
    %124 = vector.shape_cast %123 : vector<1x2x16xf32> to vector<2x16xf32>
    %125 = vector.shape_cast %122 : vector<2x16xf32> to vector<1x2x16xf32>
    tpu.vector_store %arg4[%c0_77, %c0_78, %c1280], %125 {strides = array<i32>} : memref<2x2x3072xf32, #tpu.memory_space<vmem>>, vector<1x2x16xf32>,
    %126 = vector.extract_strided_slice %65 {offsets = [0, 96], sizes = [2, 16], strides = [1, 1]} : vector<2x256xf32> to vector<2x16xf32>
    %c1_79 = arith.constant 1 : index
    %c0_80 = arith.constant 0 : index
    %c1280_81 = arith.constant 1280 : index
    %127 = vector.load %arg4[%c1_79, %c0_80, %c1280_81] : memref<2x2x3072xf32, #tpu.memory_space<vmem>>, vector<1x2x16xf32>
    %128 = vector.shape_cast %127 : vector<1x2x16xf32> to vector<2x16xf32>
    %129 = vector.shape_cast %126 : vector<2x16xf32> to vector<1x2x16xf32>
    tpu.vector_store %arg4[%c1_79, %c0_80, %c1280_81], %129 {strides = array<i32>} : memref<2x2x3072xf32, #tpu.memory_space<vmem>>, vector<1x2x16xf32>,
    %130 = vector.extract_strided_slice %63 {offsets = [0, 112], sizes = [2, 16], strides = [1, 1]} : vector<2x256xf32> to vector<2x16xf32>
    %c0_82 = arith.constant 0 : index
    %c0_83 = arith.constant 0 : index
    %c1408 = arith.constant 1408 : index
    %131 = vector.load %arg4[%c0_82, %c0_83, %c1408] : memref<2x2x3072xf32, #tpu.memory_space<vmem>>, vector<1x2x16xf32>
    %132 = vector.shape_cast %131 : vector<1x2x16xf32> to vector<2x16xf32>
    %133 = vector.shape_cast %130 : vector<2x16xf32> to vector<1x2x16xf32>
    tpu.vector_store %arg4[%c0_82, %c0_83, %c1408], %133 {strides = array<i32>} : memref<2x2x3072xf32, #tpu.memory_space<vmem>>, vector<1x2x16xf32>,
    %134 = vector.extract_strided_slice %65 {offsets = [0, 112], sizes = [2, 16], strides = [1, 1]} : vector<2x256xf32> to vector<2x16xf32>
    %c1_84 = arith.constant 1 : index
    %c0_85 = arith.constant 0 : index
    %c1408_86 = arith.constant 1408 : index
    %135 = vector.load %arg4[%c1_84, %c0_85, %c1408_86] : memref<2x2x3072xf32, #tpu.memory_space<vmem>>, vector<1x2x16xf32>
    %136 = vector.shape_cast %135 : vector<1x2x16xf32> to vector<2x16xf32>
    %137 = vector.shape_cast %134 : vector<2x16xf32> to vector<1x2x16xf32>
    tpu.vector_store %arg4[%c1_84, %c0_85, %c1408_86], %137 {strides = array<i32>} : memref<2x2x3072xf32, #tpu.memory_space<vmem>>, vector<1x2x16xf32>,
    %138 = vector.extract_strided_slice %63 {offsets = [0, 128], sizes = [2, 16], strides = [1, 1]} : vector<2x256xf32> to vector<2x16xf32>
    %c0_87 = arith.constant 0 : index
    %c0_88 = arith.constant 0 : index
    %c1536 = arith.constant 1536 : index
    %139 = vector.load %arg4[%c0_87, %c0_88, %c1536] : memref<2x2x3072xf32, #tpu.memory_space<vmem>>, vector<1x2x16xf32>
    %140 = vector.shape_cast %139 : vector<1x2x16xf32> to vector<2x16xf32>
    %141 = vector.shape_cast %138 : vector<2x16xf32> to vector<1x2x16xf32>
    tpu.vector_store %arg4[%c0_87, %c0_88, %c1536], %141 {strides = array<i32>} : memref<2x2x3072xf32, #tpu.memory_space<vmem>>, vector<1x2x16xf32>,
    %142 = vector.extract_strided_slice %65 {offsets = [0, 128], sizes = [2, 16], strides = [1, 1]} : vector<2x256xf32> to vector<2x16xf32>
    %c1_89 = arith.constant 1 : index
    %c0_90 = arith.constant 0 : index
    %c1536_91 = arith.constant 1536 : index
    %143 = vector.load %arg4[%c1_89, %c0_90, %c1536_91] : memref<2x2x3072xf32, #tpu.memory_space<vmem>>, vector<1x2x16xf32>
    %144 = vector.shape_cast %143 : vector<1x2x16xf32> to vector<2x16xf32>
    %145 = vector.shape_cast %142 : vector<2x16xf32> to vector<1x2x16xf32>
    tpu.vector_store %arg4[%c1_89, %c0_90, %c1536_91], %145 {strides = array<i32>} : memref<2x2x3072xf32, #tpu.memory_space<vmem>>, vector<1x2x16xf32>,
    %146 = vector.extract_strided_slice %63 {offsets = [0, 144], sizes = [2, 16], strides = [1, 1]} : vector<2x256xf32> to vector<2x16xf32>
    %c0_92 = arith.constant 0 : index
    %c0_93 = arith.constant 0 : index
    %c1664 = arith.constant 1664 : index
    %147 = vector.load %arg4[%c0_92, %c0_93, %c1664] : memref<2x2x3072xf32, #tpu.memory_space<vmem>>, vector<1x2x16xf32>
    %148 = vector.shape_cast %147 : vector<1x2x16xf32> to vector<2x16xf32>
    %149 = vector.shape_cast %146 : vector<2x16xf32> to vector<1x2x16xf32>
    tpu.vector_store %arg4[%c0_92, %c0_93, %c1664], %149 {strides = array<i32>} : memref<2x2x3072xf32, #tpu.memory_space<vmem>>, vector<1x2x16xf32>,
    %150 = vector.extract_strided_slice %65 {offsets = [0, 144], sizes = [2, 16], strides = [1, 1]} : vector<2x256xf32> to vector<2x16xf32>
    %c1_94 = arith.constant 1 : index
    %c0_95 = arith.constant 0 : index
    %c1664_96 = arith.constant 1664 : index
    %151 = vector.load %arg4[%c1_94, %c0_95, %c1664_96] : memref<2x2x3072xf32, #tpu.memory_space<vmem>>, vector<1x2x16xf32>
    %152 = vector.shape_cast %151 : vector<1x2x16xf32> to vector<2x16xf32>
    %153 = vector.shape_cast %150 : vector<2x16xf32> to vector<1x2x16xf32>
    tpu.vector_store %arg4[%c1_94, %c0_95, %c1664_96], %153 {strides = array<i32>} : memref<2x2x3072xf32, #tpu.memory_space<vmem>>, vector<1x2x16xf32>,
    %154 = vector.extract_strided_slice %63 {offsets = [0, 160], sizes = [2, 16], strides = [1, 1]} : vector<2x256xf32> to vector<2x16xf32>
    %c0_97 = arith.constant 0 : index
    %c0_98 = arith.constant 0 : index
    %c1792 = arith.constant 1792 : index
    %155 = vector.load %arg4[%c0_97, %c0_98, %c1792] : memref<2x2x3072xf32, #tpu.memory_space<vmem>>, vector<1x2x16xf32>
    %156 = vector.shape_cast %155 : vector<1x2x16xf32> to vector<2x16xf32>
    %157 = vector.shape_cast %154 : vector<2x16xf32> to vector<1x2x16xf32>
    tpu.vector_store %arg4[%c0_97, %c0_98, %c1792], %157 {strides = array<i32>} : memref<2x2x3072xf32, #tpu.memory_space<vmem>>, vector<1x2x16xf32>,
    %158 = vector.extract_strided_slice %65 {offsets = [0, 160], sizes = [2, 16], strides = [1, 1]} : vector<2x256xf32> to vector<2x16xf32>
    %c1_99 = arith.constant 1 : index
    %c0_100 = arith.constant 0 : index
    %c1792_101 = arith.constant 1792 : index
    %159 = vector.load %arg4[%c1_99, %c0_100, %c1792_101] : memref<2x2x3072xf32, #tpu.memory_space<vmem>>, vector<1x2x16xf32>
    %160 = vector.shape_cast %159 : vector<1x2x16xf32> to vector<2x16xf32>
    %161 = vector.shape_cast %158 : vector<2x16xf32> to vector<1x2x16xf32>
    tpu.vector_store %arg4[%c1_99, %c0_100, %c1792_101], %161 {strides = array<i32>} : memref<2x2x3072xf32, #tpu.memory_space<vmem>>, vector<1x2x16xf32>,
    %162 = vector.extract_strided_slice %63 {offsets = [0, 176], sizes = [2, 16], strides = [1, 1]} : vector<2x256xf32> to vector<2x16xf32>
    %c0_102 = arith.constant 0 : index
    %c0_103 = arith.constant 0 : index
    %c1920 = arith.constant 1920 : index
    %163 = vector.load %arg4[%c0_102, %c0_103, %c1920] : memref<2x2x3072xf32, #tpu.memory_space<vmem>>, vector<1x2x16xf32>
    %164 = vector.shape_cast %163 : vector<1x2x16xf32> to vector<2x16xf32>
    %165 = vector.shape_cast %162 : vector<2x16xf32> to vector<1x2x16xf32>
    tpu.vector_store %arg4[%c0_102, %c0_103, %c1920], %165 {strides = array<i32>} : memref<2x2x3072xf32, #tpu.memory_space<vmem>>, vector<1x2x16xf32>,
    %166 = vector.extract_strided_slice %65 {offsets = [0, 176], sizes = [2, 16], strides = [1, 1]} : vector<2x256xf32> to vector<2x16xf32>
    %c1_104 = arith.constant 1 : index
    %c0_105 = arith.constant 0 : index
    %c1920_106 = arith.constant 1920 : index
    %167 = vector.load %arg4[%c1_104, %c0_105, %c1920_106] : memref<2x2x3072xf32, #tpu.memory_space<vmem>>, vector<1x2x16xf32>
    %168 = vector.shape_cast %167 : vector<1x2x16xf32> to vector<2x16xf32>
    %169 = vector.shape_cast %166 : vector<2x16xf32> to vector<1x2x16xf32>
    tpu.vector_store %arg4[%c1_104, %c0_105, %c1920_106], %169 {strides = array<i32>} : memref<2x2x3072xf32, #tpu.memory_space<vmem>>, vector<1x2x16xf32>,
    %170 = vector.extract_strided_slice %63 {offsets = [0, 192], sizes = [2, 16], strides = [1, 1]} : vector<2x256xf32> to vector<2x16xf32>
    %c0_107 = arith.constant 0 : index
    %c0_108 = arith.constant 0 : index
    %c2048 = arith.constant 2048 : index
    %171 = vector.load %arg4[%c0_107, %c0_108, %c2048] : memref<2x2x3072xf32, #tpu.memory_space<vmem>>, vector<1x2x16xf32>
    %172 = vector.shape_cast %171 : vector<1x2x16xf32> to vector<2x16xf32>
    %173 = vector.shape_cast %170 : vector<2x16xf32> to vector<1x2x16xf32>
    tpu.vector_store %arg4[%c0_107, %c0_108, %c2048], %173 {strides = array<i32>} : memref<2x2x3072xf32, #tpu.memory_space<vmem>>, vector<1x2x16xf32>,
    %174 = vector.extract_strided_slice %65 {offsets = [0, 192], sizes = [2, 16], strides = [1, 1]} : vector<2x256xf32> to vector<2x16xf32>
    %c1_109 = arith.constant 1 : index
    %c0_110 = arith.constant 0 : index
    %c2048_111 = arith.constant 2048 : index
    %175 = vector.load %arg4[%c1_109, %c0_110, %c2048_111] : memref<2x2x3072xf32, #tpu.memory_space<vmem>>, vector<1x2x16xf32>
    %176 = vector.shape_cast %175 : vector<1x2x16xf32> to vector<2x16xf32>
    %177 = vector.shape_cast %174 : vector<2x16xf32> to vector<1x2x16xf32>
    tpu.vector_store %arg4[%c1_109, %c0_110, %c2048_111], %177 {strides = array<i32>} : memref<2x2x3072xf32, #tpu.memory_space<vmem>>, vector<1x2x16xf32>,
    %178 = vector.extract_strided_slice %63 {offsets = [0, 208], sizes = [2, 16], strides = [1, 1]} : vector<2x256xf32> to vector<2x16xf32>
    %c0_112 = arith.constant 0 : index
    %c0_113 = arith.constant 0 : index
    %c2176 = arith.constant 2176 : index
    %179 = vector.load %arg4[%c0_112, %c0_113, %c2176] : memref<2x2x3072xf32, #tpu.memory_space<vmem>>, vector<1x2x16xf32>
    %180 = vector.shape_cast %179 : vector<1x2x16xf32> to vector<2x16xf32>
    %181 = vector.shape_cast %178 : vector<2x16xf32> to vector<1x2x16xf32>
    tpu.vector_store %arg4[%c0_112, %c0_113, %c2176], %181 {strides = array<i32>} : memref<2x2x3072xf32, #tpu.memory_space<vmem>>, vector<1x2x16xf32>,
    %182 = vector.extract_strided_slice %65 {offsets = [0, 208], sizes = [2, 16], strides = [1, 1]} : vector<2x256xf32> to vector<2x16xf32>
    %c1_114 = arith.constant 1 : index
    %c0_115 = arith.constant 0 : index
    %c2176_116 = arith.constant 2176 : index
    %183 = vector.load %arg4[%c1_114, %c0_115, %c2176_116] : memref<2x2x3072xf32, #tpu.memory_space<vmem>>, vector<1x2x16xf32>
    %184 = vector.shape_cast %183 : vector<1x2x16xf32> to vector<2x16xf32>
    %185 = vector.shape_cast %182 : vector<2x16xf32> to vector<1x2x16xf32>
    tpu.vector_store %arg4[%c1_114, %c0_115, %c2176_116], %185 {strides = array<i32>} : memref<2x2x3072xf32, #tpu.memory_space<vmem>>, vector<1x2x16xf32>,
    %186 = vector.extract_strided_slice %63 {offsets = [0, 224], sizes = [2, 16], strides = [1, 1]} : vector<2x256xf32> to vector<2x16xf32>
    %c0_117 = arith.constant 0 : index
    %c0_118 = arith.constant 0 : index
    %c2304 = arith.constant 2304 : index
    %187 = vector.load %arg4[%c0_117, %c0_118, %c2304] : memref<2x2x3072xf32, #tpu.memory_space<vmem>>, vector<1x2x16xf32>
    %188 = vector.shape_cast %187 : vector<1x2x16xf32> to vector<2x16xf32>
    %189 = vector.shape_cast %186 : vector<2x16xf32> to vector<1x2x16xf32>
    tpu.vector_store %arg4[%c0_117, %c0_118, %c2304], %189 {strides = array<i32>} : memref<2x2x3072xf32, #tpu.memory_space<vmem>>, vector<1x2x16xf32>,
    %190 = vector.extract_strided_slice %65 {offsets = [0, 224], sizes = [2, 16], strides = [1, 1]} : vector<2x256xf32> to vector<2x16xf32>
    %c1_119 = arith.constant 1 : index
    %c0_120 = arith.constant 0 : index
    %c2304_121 = arith.constant 2304 : index
    %191 = vector.load %arg4[%c1_119, %c0_120, %c2304_121] : memref<2x2x3072xf32, #tpu.memory_space<vmem>>, vector<1x2x16xf32>
    %192 = vector.shape_cast %191 : vector<1x2x16xf32> to vector<2x16xf32>
    %193 = vector.shape_cast %190 : vector<2x16xf32> to vector<1x2x16xf32>
    tpu.vector_store %arg4[%c1_119, %c0_120, %c2304_121], %193 {strides = array<i32>} : memref<2x2x3072xf32, #tpu.memory_space<vmem>>, vector<1x2x16xf32>,
    %194 = vector.extract_strided_slice %63 {offsets = [0, 240], sizes = [2, 16], strides = [1, 1]} : vector<2x256xf32> to vector<2x16xf32>
    %c0_122 = arith.constant 0 : index
    %c0_123 = arith.constant 0 : index
    %c2432 = arith.constant 2432 : index
    %195 = vector.load %arg4[%c0_122, %c0_123, %c2432] : memref<2x2x3072xf32, #tpu.memory_space<vmem>>, vector<1x2x16xf32>
    %196 = vector.shape_cast %195 : vector<1x2x16xf32> to vector<2x16xf32>
    %197 = vector.shape_cast %194 : vector<2x16xf32> to vector<1x2x16xf32>
    tpu.vector_store %arg4[%c0_122, %c0_123, %c2432], %197 {strides = array<i32>} : memref<2x2x3072xf32, #tpu.memory_space<vmem>>, vector<1x2x16xf32>,
    %198 = vector.extract_strided_slice %65 {offsets = [0, 240], sizes = [2, 16], strides = [1, 1]} : vector<2x256xf32> to vector<2x16xf32>
    %c1_124 = arith.constant 1 : index
    %c0_125 = arith.constant 0 : index
    %c2432_126 = arith.constant 2432 : index
    %199 = vector.load %arg4[%c1_124, %c0_125, %c2432_126] : memref<2x2x3072xf32, #tpu.memory_space<vmem>>, vector<1x2x16xf32>
    %200 = vector.shape_cast %199 : vector<1x2x16xf32> to vector<2x16xf32>
    %201 = vector.shape_cast %198 : vector<2x16xf32> to vector<1x2x16xf32>
    tpu.vector_store %arg4[%c1_124, %c0_125, %c2432_126], %201 {strides = array<i32>} : memref<2x2x3072xf32, #tpu.memory_space<vmem>>, vector<1x2x16xf32>,
    %cst_127 = arith.constant 0.000000e+00 : f32
    %202 = vector.broadcast %cst_127 : f32 to vector<2x2048xf32>
    %c0_128 = arith.constant 0 : index
    %203 = memref.load %arg2[%c0_128] : memref<98xf32, #tpu.memory_space<smem>>
    %c0_129 = arith.constant 0 : index
    %c0_130 = arith.constant 0 : index
    %c0_131 = arith.constant 0 : index
    %204 = vector.load %arg4[%c0_129, %c0_130, %c0_131] : memref<2x2x3072xf32, #tpu.memory_space<vmem>>, vector<1x2x2304xf32>
    %205 = vector.shape_cast %204 : vector<1x2x2304xf32> to vector<2x2304xf32>
    %206 = vector.broadcast %203 : f32 to vector<2x2304xf32>
    %207 = arith.mulf %206, %205 : vector<2x2304xf32>
    %c7 = arith.constant 7 : index
    %208 = memref.load %arg2[%c7] : memref<98xf32, #tpu.memory_space<smem>>
    %c0_132 = arith.constant 0 : index
    %c0_133 = arith.constant 0 : index
    %c128 = arith.constant 128 : index
    %209 = vector.load %arg4[%c0_132, %c0_133, %c128] : memref<2x2x3072xf32, #tpu.memory_space<vmem>>, vector<1x2x2304xf32>
    %210 = vector.shape_cast %209 : vector<1x2x2304xf32> to vector<2x2304xf32>
    %211 = vector.broadcast %208 : f32 to vector<2x2304xf32>
    %212 = arith.mulf %211, %210 : vector<2x2304xf32>
    %213 = arith.addf %207, %212 : vector<2x2304xf32>
    %c14 = arith.constant 14 : index
    %214 = memref.load %arg2[%c14] : memref<98xf32, #tpu.memory_space<smem>>
    %c0_134 = arith.constant 0 : index
    %c0_135 = arith.constant 0 : index
    %c256 = arith.constant 256 : index
    %215 = vector.load %arg4[%c0_134, %c0_135, %c256] : memref<2x2x3072xf32, #tpu.memory_space<vmem>>, vector<1x2x2304xf32>
    %216 = vector.shape_cast %215 : vector<1x2x2304xf32> to vector<2x2304xf32>
    %217 = vector.broadcast %214 : f32 to vector<2x2304xf32>
    %218 = arith.mulf %217, %216 : vector<2x2304xf32>
    %219 = arith.addf %213, %218 : vector<2x2304xf32>
    %c21 = arith.constant 21 : index
    %220 = memref.load %arg2[%c21] : memref<98xf32, #tpu.memory_space<smem>>
    %c0_136 = arith.constant 0 : index
    %c0_137 = arith.constant 0 : index
    %c384 = arith.constant 384 : index
    %221 = vector.load %arg4[%c0_136, %c0_137, %c384] : memref<2x2x3072xf32, #tpu.memory_space<vmem>>, vector<1x2x2304xf32>
    %222 = vector.shape_cast %221 : vector<1x2x2304xf32> to vector<2x2304xf32>
    %223 = vector.broadcast %220 : f32 to vector<2x2304xf32>
    %224 = arith.mulf %223, %222 : vector<2x2304xf32>
    %225 = arith.addf %219, %224 : vector<2x2304xf32>
    %c28 = arith.constant 28 : index
    %226 = memref.load %arg2[%c28] : memref<98xf32, #tpu.memory_space<smem>>
    %c0_138 = arith.constant 0 : index
    %c0_139 = arith.constant 0 : index
    %c512_140 = arith.constant 512 : index
    %227 = vector.load %arg4[%c0_138, %c0_139, %c512_140] : memref<2x2x3072xf32, #tpu.memory_space<vmem>>, vector<1x2x2304xf32>
    %228 = vector.shape_cast %227 : vector<1x2x2304xf32> to vector<2x2304xf32>
    %229 = vector.broadcast %226 : f32 to vector<2x2304xf32>
    %230 = arith.mulf %229, %228 : vector<2x2304xf32>
    %231 = arith.addf %225, %230 : vector<2x2304xf32>
    %c35 = arith.constant 35 : index
    %232 = memref.load %arg2[%c35] : memref<98xf32, #tpu.memory_space<smem>>
    %c0_141 = arith.constant 0 : index
    %c0_142 = arith.constant 0 : index
    %c640_143 = arith.constant 640 : index
    %233 = vector.load %arg4[%c0_141, %c0_142, %c640_143] : memref<2x2x3072xf32, #tpu.memory_space<vmem>>, vector<1x2x2304xf32>
    %234 = vector.shape_cast %233 : vector<1x2x2304xf32> to vector<2x2304xf32>
    %235 = vector.broadcast %232 : f32 to vector<2x2304xf32>
    %236 = arith.mulf %235, %234 : vector<2x2304xf32>
    %237 = arith.addf %231, %236 : vector<2x2304xf32>
    %c42 = arith.constant 42 : index
    %238 = memref.load %arg2[%c42] : memref<98xf32, #tpu.memory_space<smem>>
    %c0_144 = arith.constant 0 : index
    %c0_145 = arith.constant 0 : index
    %c768_146 = arith.constant 768 : index
    %239 = vector.load %arg4[%c0_144, %c0_145, %c768_146] : memref<2x2x3072xf32, #tpu.memory_space<vmem>>, vector<1x2x2304xf32>
    %240 = vector.shape_cast %239 : vector<1x2x2304xf32> to vector<2x2304xf32>
    %241 = vector.broadcast %238 : f32 to vector<2x2304xf32>
    %242 = arith.mulf %241, %240 : vector<2x2304xf32>
    %243 = arith.addf %237, %242 : vector<2x2304xf32>
    %c49 = arith.constant 49 : index
    %244 = memref.load %arg2[%c49] : memref<98xf32, #tpu.memory_space<smem>>
    %c1_147 = arith.constant 1 : index
    %c0_148 = arith.constant 0 : index
    %c0_149 = arith.constant 0 : index
    %245 = vector.load %arg4[%c1_147, %c0_148, %c0_149] : memref<2x2x3072xf32, #tpu.memory_space<vmem>>, vector<1x2x2304xf32>
    %246 = vector.shape_cast %245 : vector<1x2x2304xf32> to vector<2x2304xf32>
    %247 = vector.broadcast %244 : f32 to vector<2x2304xf32>
    %248 = arith.mulf %247, %246 : vector<2x2304xf32>
    %249 = arith.addf %243, %248 : vector<2x2304xf32>
    %c56 = arith.constant 56 : index
    %250 = memref.load %arg2[%c56] : memref<98xf32, #tpu.memory_space<smem>>
    %c1_150 = arith.constant 1 : index
    %c0_151 = arith.constant 0 : index
    %c128_152 = arith.constant 128 : index
    %251 = vector.load %arg4[%c1_150, %c0_151, %c128_152] : memref<2x2x3072xf32, #tpu.memory_space<vmem>>, vector<1x2x2304xf32>
    %252 = vector.shape_cast %251 : vector<1x2x2304xf32> to vector<2x2304xf32>
    %253 = vector.broadcast %250 : f32 to vector<2x2304xf32>
    %254 = arith.mulf %253, %252 : vector<2x2304xf32>
    %255 = arith.addf %249, %254 : vector<2x2304xf32>
    %c63 = arith.constant 63 : index
    %256 = memref.load %arg2[%c63] : memref<98xf32, #tpu.memory_space<smem>>
    %c1_153 = arith.constant 1 : index
    %c0_154 = arith.constant 0 : index
    %c256_155 = arith.constant 256 : index
    %257 = vector.load %arg4[%c1_153, %c0_154, %c256_155] : memref<2x2x3072xf32, #tpu.memory_space<vmem>>, vector<1x2x2304xf32>
    %258 = vector.shape_cast %257 : vector<1x2x2304xf32> to vector<2x2304xf32>
    %259 = vector.broadcast %256 : f32 to vector<2x2304xf32>
    %260 = arith.mulf %259, %258 : vector<2x2304xf32>
    %261 = arith.addf %255, %260 : vector<2x2304xf32>
    %c70 = arith.constant 70 : index
    %262 = memref.load %arg2[%c70] : memref<98xf32, #tpu.memory_space<smem>>
    %c1_156 = arith.constant 1 : index
    %c0_157 = arith.constant 0 : index
    %c384_158 = arith.constant 384 : index
    %263 = vector.load %arg4[%c1_156, %c0_157, %c384_158] : memref<2x2x3072xf32, #tpu.memory_space<vmem>>, vector<1x2x2304xf32>
    %264 = vector.shape_cast %263 : vector<1x2x2304xf32> to vector<2x2304xf32>
    %265 = vector.broadcast %262 : f32 to vector<2x2304xf32>
    %266 = arith.mulf %265, %264 : vector<2x2304xf32>
    %267 = arith.addf %261, %266 : vector<2x2304xf32>
    %c77 = arith.constant 77 : index
    %268 = memref.load %arg2[%c77] : memref<98xf32, #tpu.memory_space<smem>>
    %c1_159 = arith.constant 1 : index
    %c0_160 = arith.constant 0 : index
    %c512_161 = arith.constant 512 : index
    %269 = vector.load %arg4[%c1_159, %c0_160, %c512_161] : memref<2x2x3072xf32, #tpu.memory_space<vmem>>, vector<1x2x2304xf32>
    %270 = vector.shape_cast %269 : vector<1x2x2304xf32> to vector<2x2304xf32>
    %271 = vector.broadcast %268 : f32 to vector<2x2304xf32>
    %272 = arith.mulf %271, %270 : vector<2x2304xf32>
    %273 = arith.addf %267, %272 : vector<2x2304xf32>
    %c84 = arith.constant 84 : index
    %274 = memref.load %arg2[%c84] : memref<98xf32, #tpu.memory_space<smem>>
    %c1_162 = arith.constant 1 : index
    %c0_163 = arith.constant 0 : index
    %c640_164 = arith.constant 640 : index
    %275 = vector.load %arg4[%c1_162, %c0_163, %c640_164] : memref<2x2x3072xf32, #tpu.memory_space<vmem>>, vector<1x2x2304xf32>
    %276 = vector.shape_cast %275 : vector<1x2x2304xf32> to vector<2x2304xf32>
    %277 = vector.broadcast %274 : f32 to vector<2x2304xf32>
    %278 = arith.mulf %277, %276 : vector<2x2304xf32>
    %279 = arith.addf %273, %278 : vector<2x2304xf32>
    %c91 = arith.constant 91 : index
    %280 = memref.load %arg2[%c91] : memref<98xf32, #tpu.memory_space<smem>>
    %c1_165 = arith.constant 1 : index
    %c0_166 = arith.constant 0 : index
    %c768_167 = arith.constant 768 : index
    %281 = vector.load %arg4[%c1_165, %c0_166, %c768_167] : memref<2x2x3072xf32, #tpu.memory_space<vmem>>, vector<1x2x2304xf32>
    %282 = vector.shape_cast %281 : vector<1x2x2304xf32> to vector<2x2304xf32>
    %283 = vector.broadcast %280 : f32 to vector<2x2304xf32>
    %284 = arith.mulf %283, %282 : vector<2x2304xf32>
    %285 = arith.addf %279, %284 : vector<2x2304xf32>
    %286 = vector.extract_strided_slice %285 {offsets = [0, 125], sizes = [2, 2048], strides = [1, 1]} : vector<2x2304xf32> to vector<2x2048xf32>
    %287 = arith.addf %202, %286 : vector<2x2048xf32>
    %c1_168 = arith.constant 1 : index
    %288 = memref.load %arg2[%c1_168] : memref<98xf32, #tpu.memory_space<smem>>
    %c0_169 = arith.constant 0 : index
    %c0_170 = arith.constant 0 : index
    %c0_171 = arith.constant 0 : index
    %289 = vector.load %arg4[%c0_169, %c0_170, %c0_171] : memref<2x2x3072xf32, #tpu.memory_space<vmem>>, vector<1x2x2304xf32>
    %290 = vector.shape_cast %289 : vector<1x2x2304xf32> to vector<2x2304xf32>
    %291 = vector.broadcast %288 : f32 to vector<2x2304xf32>
    %292 = arith.mulf %291, %290 : vector<2x2304xf32>
    %c8 = arith.constant 8 : index
    %293 = memref.load %arg2[%c8] : memref<98xf32, #tpu.memory_space<smem>>
    %c0_172 = arith.constant 0 : index
    %c0_173 = arith.constant 0 : index
    %c128_174 = arith.constant 128 : index
    %294 = vector.load %arg4[%c0_172, %c0_173, %c128_174] : memref<2x2x3072xf32, #tpu.memory_space<vmem>>, vector<1x2x2304xf32>
    %295 = vector.shape_cast %294 : vector<1x2x2304xf32> to vector<2x2304xf32>
    %296 = vector.broadcast %293 : f32 to vector<2x2304xf32>
    %297 = arith.mulf %296, %295 : vector<2x2304xf32>
    %298 = arith.addf %292, %297 : vector<2x2304xf32>
    %c15 = arith.constant 15 : index
    %299 = memref.load %arg2[%c15] : memref<98xf32, #tpu.memory_space<smem>>
    %c0_175 = arith.constant 0 : index
    %c0_176 = arith.constant 0 : index
    %c256_177 = arith.constant 256 : index
    %300 = vector.load %arg4[%c0_175, %c0_176, %c256_177] : memref<2x2x3072xf32, #tpu.memory_space<vmem>>, vector<1x2x2304xf32>
    %301 = vector.shape_cast %300 : vector<1x2x2304xf32> to vector<2x2304xf32>
    %302 = vector.broadcast %299 : f32 to vector<2x2304xf32>
    %303 = arith.mulf %302, %301 : vector<2x2304xf32>
    %304 = arith.addf %298, %303 : vector<2x2304xf32>
    %c22 = arith.constant 22 : index
    %305 = memref.load %arg2[%c22] : memref<98xf32, #tpu.memory_space<smem>>
    %c0_178 = arith.constant 0 : index
    %c0_179 = arith.constant 0 : index
    %c384_180 = arith.constant 384 : index
    %306 = vector.load %arg4[%c0_178, %c0_179, %c384_180] : memref<2x2x3072xf32, #tpu.memory_space<vmem>>, vector<1x2x2304xf32>
    %307 = vector.shape_cast %306 : vector<1x2x2304xf32> to vector<2x2304xf32>
    %308 = vector.broadcast %305 : f32 to vector<2x2304xf32>
    %309 = arith.mulf %308, %307 : vector<2x2304xf32>
    %310 = arith.addf %304, %309 : vector<2x2304xf32>
    %c29 = arith.constant 29 : index
    %311 = memref.load %arg2[%c29] : memref<98xf32, #tpu.memory_space<smem>>
    %c0_181 = arith.constant 0 : index
    %c0_182 = arith.constant 0 : index
    %c512_183 = arith.constant 512 : index
    %312 = vector.load %arg4[%c0_181, %c0_182, %c512_183] : memref<2x2x3072xf32, #tpu.memory_space<vmem>>, vector<1x2x2304xf32>
    %313 = vector.shape_cast %312 : vector<1x2x2304xf32> to vector<2x2304xf32>
    %314 = vector.broadcast %311 : f32 to vector<2x2304xf32>
    %315 = arith.mulf %314, %313 : vector<2x2304xf32>
    %316 = arith.addf %310, %315 : vector<2x2304xf32>
    %c36 = arith.constant 36 : index
    %317 = memref.load %arg2[%c36] : memref<98xf32, #tpu.memory_space<smem>>
    %c0_184 = arith.constant 0 : index
    %c0_185 = arith.constant 0 : index
    %c640_186 = arith.constant 640 : index
    %318 = vector.load %arg4[%c0_184, %c0_185, %c640_186] : memref<2x2x3072xf32, #tpu.memory_space<vmem>>, vector<1x2x2304xf32>
    %319 = vector.shape_cast %318 : vector<1x2x2304xf32> to vector<2x2304xf32>
    %320 = vector.broadcast %317 : f32 to vector<2x2304xf32>
    %321 = arith.mulf %320, %319 : vector<2x2304xf32>
    %322 = arith.addf %316, %321 : vector<2x2304xf32>
    %c43 = arith.constant 43 : index
    %323 = memref.load %arg2[%c43] : memref<98xf32, #tpu.memory_space<smem>>
    %c0_187 = arith.constant 0 : index
    %c0_188 = arith.constant 0 : index
    %c768_189 = arith.constant 768 : index
    %324 = vector.load %arg4[%c0_187, %c0_188, %c768_189] : memref<2x2x3072xf32, #tpu.memory_space<vmem>>, vector<1x2x2304xf32>
    %325 = vector.shape_cast %324 : vector<1x2x2304xf32> to vector<2x2304xf32>
    %326 = vector.broadcast %323 : f32 to vector<2x2304xf32>
    %327 = arith.mulf %326, %325 : vector<2x2304xf32>
    %328 = arith.addf %322, %327 : vector<2x2304xf32>
    %c50 = arith.constant 50 : index
    %329 = memref.load %arg2[%c50] : memref<98xf32, #tpu.memory_space<smem>>
    %c1_190 = arith.constant 1 : index
    %c0_191 = arith.constant 0 : index
    %c0_192 = arith.constant 0 : index
    %330 = vector.load %arg4[%c1_190, %c0_191, %c0_192] : memref<2x2x3072xf32, #tpu.memory_space<vmem>>, vector<1x2x2304xf32>
    %331 = vector.shape_cast %330 : vector<1x2x2304xf32> to vector<2x2304xf32>
    %332 = vector.broadcast %329 : f32 to vector<2x2304xf32>
    %333 = arith.mulf %332, %331 : vector<2x2304xf32>
    %334 = arith.addf %328, %333 : vector<2x2304xf32>
    %c57 = arith.constant 57 : index
    %335 = memref.load %arg2[%c57] : memref<98xf32, #tpu.memory_space<smem>>
    %c1_193 = arith.constant 1 : index
    %c0_194 = arith.constant 0 : index
    %c128_195 = arith.constant 128 : index
    %336 = vector.load %arg4[%c1_193, %c0_194, %c128_195] : memref<2x2x3072xf32, #tpu.memory_space<vmem>>, vector<1x2x2304xf32>
    %337 = vector.shape_cast %336 : vector<1x2x2304xf32> to vector<2x2304xf32>
    %338 = vector.broadcast %335 : f32 to vector<2x2304xf32>
    %339 = arith.mulf %338, %337 : vector<2x2304xf32>
    %340 = arith.addf %334, %339 : vector<2x2304xf32>
    %c64 = arith.constant 64 : index
    %341 = memref.load %arg2[%c64] : memref<98xf32, #tpu.memory_space<smem>>
    %c1_196 = arith.constant 1 : index
    %c0_197 = arith.constant 0 : index
    %c256_198 = arith.constant 256 : index
    %342 = vector.load %arg4[%c1_196, %c0_197, %c256_198] : memref<2x2x3072xf32, #tpu.memory_space<vmem>>, vector<1x2x2304xf32>
    %343 = vector.shape_cast %342 : vector<1x2x2304xf32> to vector<2x2304xf32>
    %344 = vector.broadcast %341 : f32 to vector<2x2304xf32>
    %345 = arith.mulf %344, %343 : vector<2x2304xf32>
    %346 = arith.addf %340, %345 : vector<2x2304xf32>
    %c71 = arith.constant 71 : index
    %347 = memref.load %arg2[%c71] : memref<98xf32, #tpu.memory_space<smem>>
    %c1_199 = arith.constant 1 : index
    %c0_200 = arith.constant 0 : index
    %c384_201 = arith.constant 384 : index
    %348 = vector.load %arg4[%c1_199, %c0_200, %c384_201] : memref<2x2x3072xf32, #tpu.memory_space<vmem>>, vector<1x2x2304xf32>
    %349 = vector.shape_cast %348 : vector<1x2x2304xf32> to vector<2x2304xf32>
    %350 = vector.broadcast %347 : f32 to vector<2x2304xf32>
    %351 = arith.mulf %350, %349 : vector<2x2304xf32>
    %352 = arith.addf %346, %351 : vector<2x2304xf32>
    %c78 = arith.constant 78 : index
    %353 = memref.load %arg2[%c78] : memref<98xf32, #tpu.memory_space<smem>>
    %c1_202 = arith.constant 1 : index
    %c0_203 = arith.constant 0 : index
    %c512_204 = arith.constant 512 : index
    %354 = vector.load %arg4[%c1_202, %c0_203, %c512_204] : memref<2x2x3072xf32, #tpu.memory_space<vmem>>, vector<1x2x2304xf32>
    %355 = vector.shape_cast %354 : vector<1x2x2304xf32> to vector<2x2304xf32>
    %356 = vector.broadcast %353 : f32 to vector<2x2304xf32>
    %357 = arith.mulf %356, %355 : vector<2x2304xf32>
    %358 = arith.addf %352, %357 : vector<2x2304xf32>
    %c85 = arith.constant 85 : index
    %359 = memref.load %arg2[%c85] : memref<98xf32, #tpu.memory_space<smem>>
    %c1_205 = arith.constant 1 : index
    %c0_206 = arith.constant 0 : index
    %c640_207 = arith.constant 640 : index
    %360 = vector.load %arg4[%c1_205, %c0_206, %c640_207] : memref<2x2x3072xf32, #tpu.memory_space<vmem>>, vector<1x2x2304xf32>
    %361 = vector.shape_cast %360 : vector<1x2x2304xf32> to vector<2x2304xf32>
    %362 = vector.broadcast %359 : f32 to vector<2x2304xf32>
    %363 = arith.mulf %362, %361 : vector<2x2304xf32>
    %364 = arith.addf %358, %363 : vector<2x2304xf32>
    %c92 = arith.constant 92 : index
    %365 = memref.load %arg2[%c92] : memref<98xf32, #tpu.memory_space<smem>>
    %c1_208 = arith.constant 1 : index
    %c0_209 = arith.constant 0 : index
    %c768_210 = arith.constant 768 : index
    %366 = vector.load %arg4[%c1_208, %c0_209, %c768_210] : memref<2x2x3072xf32, #tpu.memory_space<vmem>>, vector<1x2x2304xf32>
    %367 = vector.shape_cast %366 : vector<1x2x2304xf32> to vector<2x2304xf32>
    %368 = vector.broadcast %365 : f32 to vector<2x2304xf32>
    %369 = arith.mulf %368, %367 : vector<2x2304xf32>
    %370 = arith.addf %364, %369 : vector<2x2304xf32>
    %371 = vector.extract_strided_slice %370 {offsets = [0, 126], sizes = [2, 2048], strides = [1, 1]} : vector<2x2304xf32> to vector<2x2048xf32>
    %372 = arith.addf %287, %371 : vector<2x2048xf32>
    %c2 = arith.constant 2 : index
    %373 = memref.load %arg2[%c2] : memref<98xf32, #tpu.memory_space<smem>>
    %c0_211 = arith.constant 0 : index
    %c0_212 = arith.constant 0 : index
    %c0_213 = arith.constant 0 : index
    %374 = vector.load %arg4[%c0_211, %c0_212, %c0_213] : memref<2x2x3072xf32, #tpu.memory_space<vmem>>, vector<1x2x2304xf32>
    %375 = vector.shape_cast %374 : vector<1x2x2304xf32> to vector<2x2304xf32>
    %376 = vector.broadcast %373 : f32 to vector<2x2304xf32>
    %377 = arith.mulf %376, %375 : vector<2x2304xf32>
    %c9 = arith.constant 9 : index
    %378 = memref.load %arg2[%c9] : memref<98xf32, #tpu.memory_space<smem>>
    %c0_214 = arith.constant 0 : index
    %c0_215 = arith.constant 0 : index
    %c128_216 = arith.constant 128 : index
    %379 = vector.load %arg4[%c0_214, %c0_215, %c128_216] : memref<2x2x3072xf32, #tpu.memory_space<vmem>>, vector<1x2x2304xf32>
    %380 = vector.shape_cast %379 : vector<1x2x2304xf32> to vector<2x2304xf32>
    %381 = vector.broadcast %378 : f32 to vector<2x2304xf32>
    %382 = arith.mulf %381, %380 : vector<2x2304xf32>
    %383 = arith.addf %377, %382 : vector<2x2304xf32>
    %c16 = arith.constant 16 : index
    %384 = memref.load %arg2[%c16] : memref<98xf32, #tpu.memory_space<smem>>
    %c0_217 = arith.constant 0 : index
    %c0_218 = arith.constant 0 : index
    %c256_219 = arith.constant 256 : index
    %385 = vector.load %arg4[%c0_217, %c0_218, %c256_219] : memref<2x2x3072xf32, #tpu.memory_space<vmem>>, vector<1x2x2304xf32>
    %386 = vector.shape_cast %385 : vector<1x2x2304xf32> to vector<2x2304xf32>
    %387 = vector.broadcast %384 : f32 to vector<2x2304xf32>
    %388 = arith.mulf %387, %386 : vector<2x2304xf32>
    %389 = arith.addf %383, %388 : vector<2x2304xf32>
    %c23 = arith.constant 23 : index
    %390 = memref.load %arg2[%c23] : memref<98xf32, #tpu.memory_space<smem>>
    %c0_220 = arith.constant 0 : index
    %c0_221 = arith.constant 0 : index
    %c384_222 = arith.constant 384 : index
    %391 = vector.load %arg4[%c0_220, %c0_221, %c384_222] : memref<2x2x3072xf32, #tpu.memory_space<vmem>>, vector<1x2x2304xf32>
    %392 = vector.shape_cast %391 : vector<1x2x2304xf32> to vector<2x2304xf32>
    %393 = vector.broadcast %390 : f32 to vector<2x2304xf32>
    %394 = arith.mulf %393, %392 : vector<2x2304xf32>
    %395 = arith.addf %389, %394 : vector<2x2304xf32>
    %c30 = arith.constant 30 : index
    %396 = memref.load %arg2[%c30] : memref<98xf32, #tpu.memory_space<smem>>
    %c0_223 = arith.constant 0 : index
    %c0_224 = arith.constant 0 : index
    %c512_225 = arith.constant 512 : index
    %397 = vector.load %arg4[%c0_223, %c0_224, %c512_225] : memref<2x2x3072xf32, #tpu.memory_space<vmem>>, vector<1x2x2304xf32>
    %398 = vector.shape_cast %397 : vector<1x2x2304xf32> to vector<2x2304xf32>
    %399 = vector.broadcast %396 : f32 to vector<2x2304xf32>
    %400 = arith.mulf %399, %398 : vector<2x2304xf32>
    %401 = arith.addf %395, %400 : vector<2x2304xf32>
    %c37 = arith.constant 37 : index
    %402 = memref.load %arg2[%c37] : memref<98xf32, #tpu.memory_space<smem>>
    %c0_226 = arith.constant 0 : index
    %c0_227 = arith.constant 0 : index
    %c640_228 = arith.constant 640 : index
    %403 = vector.load %arg4[%c0_226, %c0_227, %c640_228] : memref<2x2x3072xf32, #tpu.memory_space<vmem>>, vector<1x2x2304xf32>
    %404 = vector.shape_cast %403 : vector<1x2x2304xf32> to vector<2x2304xf32>
    %405 = vector.broadcast %402 : f32 to vector<2x2304xf32>
    %406 = arith.mulf %405, %404 : vector<2x2304xf32>
    %407 = arith.addf %401, %406 : vector<2x2304xf32>
    %c44 = arith.constant 44 : index
    %408 = memref.load %arg2[%c44] : memref<98xf32, #tpu.memory_space<smem>>
    %c0_229 = arith.constant 0 : index
    %c0_230 = arith.constant 0 : index
    %c768_231 = arith.constant 768 : index
    %409 = vector.load %arg4[%c0_229, %c0_230, %c768_231] : memref<2x2x3072xf32, #tpu.memory_space<vmem>>, vector<1x2x2304xf32>
    %410 = vector.shape_cast %409 : vector<1x2x2304xf32> to vector<2x2304xf32>
    %411 = vector.broadcast %408 : f32 to vector<2x2304xf32>
    %412 = arith.mulf %411, %410 : vector<2x2304xf32>
    %413 = arith.addf %407, %412 : vector<2x2304xf32>
    %c51 = arith.constant 51 : index
    %414 = memref.load %arg2[%c51] : memref<98xf32, #tpu.memory_space<smem>>
    %c1_232 = arith.constant 1 : index
    %c0_233 = arith.constant 0 : index
    %c0_234 = arith.constant 0 : index
    %415 = vector.load %arg4[%c1_232, %c0_233, %c0_234] : memref<2x2x3072xf32, #tpu.memory_space<vmem>>, vector<1x2x2304xf32>
    %416 = vector.shape_cast %415 : vector<1x2x2304xf32> to vector<2x2304xf32>
    %417 = vector.broadcast %414 : f32 to vector<2x2304xf32>
    %418 = arith.mulf %417, %416 : vector<2x2304xf32>
    %419 = arith.addf %413, %418 : vector<2x2304xf32>
    %c58 = arith.constant 58 : index
    %420 = memref.load %arg2[%c58] : memref<98xf32, #tpu.memory_space<smem>>
    %c1_235 = arith.constant 1 : index
    %c0_236 = arith.constant 0 : index
    %c128_237 = arith.constant 128 : index
    %421 = vector.load %arg4[%c1_235, %c0_236, %c128_237] : memref<2x2x3072xf32, #tpu.memory_space<vmem>>, vector<1x2x2304xf32>
    %422 = vector.shape_cast %421 : vector<1x2x2304xf32> to vector<2x2304xf32>
    %423 = vector.broadcast %420 : f32 to vector<2x2304xf32>
    %424 = arith.mulf %423, %422 : vector<2x2304xf32>
    %425 = arith.addf %419, %424 : vector<2x2304xf32>
    %c65 = arith.constant 65 : index
    %426 = memref.load %arg2[%c65] : memref<98xf32, #tpu.memory_space<smem>>
    %c1_238 = arith.constant 1 : index
    %c0_239 = arith.constant 0 : index
    %c256_240 = arith.constant 256 : index
    %427 = vector.load %arg4[%c1_238, %c0_239, %c256_240] : memref<2x2x3072xf32, #tpu.memory_space<vmem>>, vector<1x2x2304xf32>
    %428 = vector.shape_cast %427 : vector<1x2x2304xf32> to vector<2x2304xf32>
    %429 = vector.broadcast %426 : f32 to vector<2x2304xf32>
    %430 = arith.mulf %429, %428 : vector<2x2304xf32>
    %431 = arith.addf %425, %430 : vector<2x2304xf32>
    %c72 = arith.constant 72 : index
    %432 = memref.load %arg2[%c72] : memref<98xf32, #tpu.memory_space<smem>>
    %c1_241 = arith.constant 1 : index
    %c0_242 = arith.constant 0 : index
    %c384_243 = arith.constant 384 : index
    %433 = vector.load %arg4[%c1_241, %c0_242, %c384_243] : memref<2x2x3072xf32, #tpu.memory_space<vmem>>, vector<1x2x2304xf32>
    %434 = vector.shape_cast %433 : vector<1x2x2304xf32> to vector<2x2304xf32>
    %435 = vector.broadcast %432 : f32 to vector<2x2304xf32>
    %436 = arith.mulf %435, %434 : vector<2x2304xf32>
    %437 = arith.addf %431, %436 : vector<2x2304xf32>
    %c79 = arith.constant 79 : index
    %438 = memref.load %arg2[%c79] : memref<98xf32, #tpu.memory_space<smem>>
    %c1_244 = arith.constant 1 : index
    %c0_245 = arith.constant 0 : index
    %c512_246 = arith.constant 512 : index
    %439 = vector.load %arg4[%c1_244, %c0_245, %c512_246] : memref<2x2x3072xf32, #tpu.memory_space<vmem>>, vector<1x2x2304xf32>
    %440 = vector.shape_cast %439 : vector<1x2x2304xf32> to vector<2x2304xf32>
    %441 = vector.broadcast %438 : f32 to vector<2x2304xf32>
    %442 = arith.mulf %441, %440 : vector<2x2304xf32>
    %443 = arith.addf %437, %442 : vector<2x2304xf32>
    %c86 = arith.constant 86 : index
    %444 = memref.load %arg2[%c86] : memref<98xf32, #tpu.memory_space<smem>>
    %c1_247 = arith.constant 1 : index
    %c0_248 = arith.constant 0 : index
    %c640_249 = arith.constant 640 : index
    %445 = vector.load %arg4[%c1_247, %c0_248, %c640_249] : memref<2x2x3072xf32, #tpu.memory_space<vmem>>, vector<1x2x2304xf32>
    %446 = vector.shape_cast %445 : vector<1x2x2304xf32> to vector<2x2304xf32>
    %447 = vector.broadcast %444 : f32 to vector<2x2304xf32>
    %448 = arith.mulf %447, %446 : vector<2x2304xf32>
    %449 = arith.addf %443, %448 : vector<2x2304xf32>
    %c93 = arith.constant 93 : index
    %450 = memref.load %arg2[%c93] : memref<98xf32, #tpu.memory_space<smem>>
    %c1_250 = arith.constant 1 : index
    %c0_251 = arith.constant 0 : index
    %c768_252 = arith.constant 768 : index
    %451 = vector.load %arg4[%c1_250, %c0_251, %c768_252] : memref<2x2x3072xf32, #tpu.memory_space<vmem>>, vector<1x2x2304xf32>
    %452 = vector.shape_cast %451 : vector<1x2x2304xf32> to vector<2x2304xf32>
    %453 = vector.broadcast %450 : f32 to vector<2x2304xf32>
    %454 = arith.mulf %453, %452 : vector<2x2304xf32>
    %455 = arith.addf %449, %454 : vector<2x2304xf32>
    %456 = vector.extract_strided_slice %455 {offsets = [0, 127], sizes = [2, 2048], strides = [1, 1]} : vector<2x2304xf32> to vector<2x2048xf32>
    %457 = arith.addf %372, %456 : vector<2x2048xf32>
    %c3 = arith.constant 3 : index
    %458 = memref.load %arg2[%c3] : memref<98xf32, #tpu.memory_space<smem>>
    %c0_253 = arith.constant 0 : index
    %c0_254 = arith.constant 0 : index
    %c0_255 = arith.constant 0 : index
    %459 = vector.load %arg4[%c0_253, %c0_254, %c0_255] : memref<2x2x3072xf32, #tpu.memory_space<vmem>>, vector<1x2x2304xf32>
    %460 = vector.shape_cast %459 : vector<1x2x2304xf32> to vector<2x2304xf32>
    %461 = vector.broadcast %458 : f32 to vector<2x2304xf32>
    %462 = arith.mulf %461, %460 : vector<2x2304xf32>
    %c10 = arith.constant 10 : index
    %463 = memref.load %arg2[%c10] : memref<98xf32, #tpu.memory_space<smem>>
    %c0_256 = arith.constant 0 : index
    %c0_257 = arith.constant 0 : index
    %c128_258 = arith.constant 128 : index
    %464 = vector.load %arg4[%c0_256, %c0_257, %c128_258] : memref<2x2x3072xf32, #tpu.memory_space<vmem>>, vector<1x2x2304xf32>
    %465 = vector.shape_cast %464 : vector<1x2x2304xf32> to vector<2x2304xf32>
    %466 = vector.broadcast %463 : f32 to vector<2x2304xf32>
    %467 = arith.mulf %466, %465 : vector<2x2304xf32>
    %468 = arith.addf %462, %467 : vector<2x2304xf32>
    %c17 = arith.constant 17 : index
    %469 = memref.load %arg2[%c17] : memref<98xf32, #tpu.memory_space<smem>>
    %c0_259 = arith.constant 0 : index
    %c0_260 = arith.constant 0 : index
    %c256_261 = arith.constant 256 : index
    %470 = vector.load %arg4[%c0_259, %c0_260, %c256_261] : memref<2x2x3072xf32, #tpu.memory_space<vmem>>, vector<1x2x2304xf32>
    %471 = vector.shape_cast %470 : vector<1x2x2304xf32> to vector<2x2304xf32>
    %472 = vector.broadcast %469 : f32 to vector<2x2304xf32>
    %473 = arith.mulf %472, %471 : vector<2x2304xf32>
    %474 = arith.addf %468, %473 : vector<2x2304xf32>
    %c24 = arith.constant 24 : index
    %475 = memref.load %arg2[%c24] : memref<98xf32, #tpu.memory_space<smem>>
    %c0_262 = arith.constant 0 : index
    %c0_263 = arith.constant 0 : index
    %c384_264 = arith.constant 384 : index
    %476 = vector.load %arg4[%c0_262, %c0_263, %c384_264] : memref<2x2x3072xf32, #tpu.memory_space<vmem>>, vector<1x2x2304xf32>
    %477 = vector.shape_cast %476 : vector<1x2x2304xf32> to vector<2x2304xf32>
    %478 = vector.broadcast %475 : f32 to vector<2x2304xf32>
    %479 = arith.mulf %478, %477 : vector<2x2304xf32>
    %480 = arith.addf %474, %479 : vector<2x2304xf32>
    %c31 = arith.constant 31 : index
    %481 = memref.load %arg2[%c31] : memref<98xf32, #tpu.memory_space<smem>>
    %c0_265 = arith.constant 0 : index
    %c0_266 = arith.constant 0 : index
    %c512_267 = arith.constant 512 : index
    %482 = vector.load %arg4[%c0_265, %c0_266, %c512_267] : memref<2x2x3072xf32, #tpu.memory_space<vmem>>, vector<1x2x2304xf32>
    %483 = vector.shape_cast %482 : vector<1x2x2304xf32> to vector<2x2304xf32>
    %484 = vector.broadcast %481 : f32 to vector<2x2304xf32>
    %485 = arith.mulf %484, %483 : vector<2x2304xf32>
    %486 = arith.addf %480, %485 : vector<2x2304xf32>
    %c38 = arith.constant 38 : index
    %487 = memref.load %arg2[%c38] : memref<98xf32, #tpu.memory_space<smem>>
    %c0_268 = arith.constant 0 : index
    %c0_269 = arith.constant 0 : index
    %c640_270 = arith.constant 640 : index
    %488 = vector.load %arg4[%c0_268, %c0_269, %c640_270] : memref<2x2x3072xf32, #tpu.memory_space<vmem>>, vector<1x2x2304xf32>
    %489 = vector.shape_cast %488 : vector<1x2x2304xf32> to vector<2x2304xf32>
    %490 = vector.broadcast %487 : f32 to vector<2x2304xf32>
    %491 = arith.mulf %490, %489 : vector<2x2304xf32>
    %492 = arith.addf %486, %491 : vector<2x2304xf32>
    %c45 = arith.constant 45 : index
    %493 = memref.load %arg2[%c45] : memref<98xf32, #tpu.memory_space<smem>>
    %c0_271 = arith.constant 0 : index
    %c0_272 = arith.constant 0 : index
    %c768_273 = arith.constant 768 : index
    %494 = vector.load %arg4[%c0_271, %c0_272, %c768_273] : memref<2x2x3072xf32, #tpu.memory_space<vmem>>, vector<1x2x2304xf32>
    %495 = vector.shape_cast %494 : vector<1x2x2304xf32> to vector<2x2304xf32>
    %496 = vector.broadcast %493 : f32 to vector<2x2304xf32>
    %497 = arith.mulf %496, %495 : vector<2x2304xf32>
    %498 = arith.addf %492, %497 : vector<2x2304xf32>
    %c52 = arith.constant 52 : index
    %499 = memref.load %arg2[%c52] : memref<98xf32, #tpu.memory_space<smem>>
    %c1_274 = arith.constant 1 : index
    %c0_275 = arith.constant 0 : index
    %c0_276 = arith.constant 0 : index
    %500 = vector.load %arg4[%c1_274, %c0_275, %c0_276] : memref<2x2x3072xf32, #tpu.memory_space<vmem>>, vector<1x2x2304xf32>
    %501 = vector.shape_cast %500 : vector<1x2x2304xf32> to vector<2x2304xf32>
    %502 = vector.broadcast %499 : f32 to vector<2x2304xf32>
    %503 = arith.mulf %502, %501 : vector<2x2304xf32>
    %504 = arith.addf %498, %503 : vector<2x2304xf32>
    %c59 = arith.constant 59 : index
    %505 = memref.load %arg2[%c59] : memref<98xf32, #tpu.memory_space<smem>>
    %c1_277 = arith.constant 1 : index
    %c0_278 = arith.constant 0 : index
    %c128_279 = arith.constant 128 : index
    %506 = vector.load %arg4[%c1_277, %c0_278, %c128_279] : memref<2x2x3072xf32, #tpu.memory_space<vmem>>, vector<1x2x2304xf32>
    %507 = vector.shape_cast %506 : vector<1x2x2304xf32> to vector<2x2304xf32>
    %508 = vector.broadcast %505 : f32 to vector<2x2304xf32>
    %509 = arith.mulf %508, %507 : vector<2x2304xf32>
    %510 = arith.addf %504, %509 : vector<2x2304xf32>
    %c66 = arith.constant 66 : index
    %511 = memref.load %arg2[%c66] : memref<98xf32, #tpu.memory_space<smem>>
    %c1_280 = arith.constant 1 : index
    %c0_281 = arith.constant 0 : index
    %c256_282 = arith.constant 256 : index
    %512 = vector.load %arg4[%c1_280, %c0_281, %c256_282] : memref<2x2x3072xf32, #tpu.memory_space<vmem>>, vector<1x2x2304xf32>
    %513 = vector.shape_cast %512 : vector<1x2x2304xf32> to vector<2x2304xf32>
    %514 = vector.broadcast %511 : f32 to vector<2x2304xf32>
    %515 = arith.mulf %514, %513 : vector<2x2304xf32>
    %516 = arith.addf %510, %515 : vector<2x2304xf32>
    %c73 = arith.constant 73 : index
    %517 = memref.load %arg2[%c73] : memref<98xf32, #tpu.memory_space<smem>>
    %c1_283 = arith.constant 1 : index
    %c0_284 = arith.constant 0 : index
    %c384_285 = arith.constant 384 : index
    %518 = vector.load %arg4[%c1_283, %c0_284, %c384_285] : memref<2x2x3072xf32, #tpu.memory_space<vmem>>, vector<1x2x2304xf32>
    %519 = vector.shape_cast %518 : vector<1x2x2304xf32> to vector<2x2304xf32>
    %520 = vector.broadcast %517 : f32 to vector<2x2304xf32>
    %521 = arith.mulf %520, %519 : vector<2x2304xf32>
    %522 = arith.addf %516, %521 : vector<2x2304xf32>
    %c80 = arith.constant 80 : index
    %523 = memref.load %arg2[%c80] : memref<98xf32, #tpu.memory_space<smem>>
    %c1_286 = arith.constant 1 : index
    %c0_287 = arith.constant 0 : index
    %c512_288 = arith.constant 512 : index
    %524 = vector.load %arg4[%c1_286, %c0_287, %c512_288] : memref<2x2x3072xf32, #tpu.memory_space<vmem>>, vector<1x2x2304xf32>
    %525 = vector.shape_cast %524 : vector<1x2x2304xf32> to vector<2x2304xf32>
    %526 = vector.broadcast %523 : f32 to vector<2x2304xf32>
    %527 = arith.mulf %526, %525 : vector<2x2304xf32>
    %528 = arith.addf %522, %527 : vector<2x2304xf32>
    %c87 = arith.constant 87 : index
    %529 = memref.load %arg2[%c87] : memref<98xf32, #tpu.memory_space<smem>>
    %c1_289 = arith.constant 1 : index
    %c0_290 = arith.constant 0 : index
    %c640_291 = arith.constant 640 : index
    %530 = vector.load %arg4[%c1_289, %c0_290, %c640_291] : memref<2x2x3072xf32, #tpu.memory_space<vmem>>, vector<1x2x2304xf32>
    %531 = vector.shape_cast %530 : vector<1x2x2304xf32> to vector<2x2304xf32>
    %532 = vector.broadcast %529 : f32 to vector<2x2304xf32>
    %533 = arith.mulf %532, %531 : vector<2x2304xf32>
    %534 = arith.addf %528, %533 : vector<2x2304xf32>
    %c94 = arith.constant 94 : index
    %535 = memref.load %arg2[%c94] : memref<98xf32, #tpu.memory_space<smem>>
    %c1_292 = arith.constant 1 : index
    %c0_293 = arith.constant 0 : index
    %c768_294 = arith.constant 768 : index
    %536 = vector.load %arg4[%c1_292, %c0_293, %c768_294] : memref<2x2x3072xf32, #tpu.memory_space<vmem>>, vector<1x2x2304xf32>
    %537 = vector.shape_cast %536 : vector<1x2x2304xf32> to vector<2x2304xf32>
    %538 = vector.broadcast %535 : f32 to vector<2x2304xf32>
    %539 = arith.mulf %538, %537 : vector<2x2304xf32>
    %540 = arith.addf %534, %539 : vector<2x2304xf32>
    %541 = vector.extract_strided_slice %540 {offsets = [0, 128], sizes = [2, 2048], strides = [1, 1]} : vector<2x2304xf32> to vector<2x2048xf32>
    %542 = arith.addf %457, %541 : vector<2x2048xf32>
    %c4 = arith.constant 4 : index
    %543 = memref.load %arg2[%c4] : memref<98xf32, #tpu.memory_space<smem>>
    %c0_295 = arith.constant 0 : index
    %c0_296 = arith.constant 0 : index
    %c0_297 = arith.constant 0 : index
    %544 = vector.load %arg4[%c0_295, %c0_296, %c0_297] : memref<2x2x3072xf32, #tpu.memory_space<vmem>>, vector<1x2x2304xf32>
    %545 = vector.shape_cast %544 : vector<1x2x2304xf32> to vector<2x2304xf32>
    %546 = vector.broadcast %543 : f32 to vector<2x2304xf32>
    %547 = arith.mulf %546, %545 : vector<2x2304xf32>
    %c11 = arith.constant 11 : index
    %548 = memref.load %arg2[%c11] : memref<98xf32, #tpu.memory_space<smem>>
    %c0_298 = arith.constant 0 : index
    %c0_299 = arith.constant 0 : index
    %c128_300 = arith.constant 128 : index
    %549 = vector.load %arg4[%c0_298, %c0_299, %c128_300] : memref<2x2x3072xf32, #tpu.memory_space<vmem>>, vector<1x2x2304xf32>
    %550 = vector.shape_cast %549 : vector<1x2x2304xf32> to vector<2x2304xf32>
    %551 = vector.broadcast %548 : f32 to vector<2x2304xf32>
    %552 = arith.mulf %551, %550 : vector<2x2304xf32>
    %553 = arith.addf %547, %552 : vector<2x2304xf32>
    %c18 = arith.constant 18 : index
    %554 = memref.load %arg2[%c18] : memref<98xf32, #tpu.memory_space<smem>>
    %c0_301 = arith.constant 0 : index
    %c0_302 = arith.constant 0 : index
    %c256_303 = arith.constant 256 : index
    %555 = vector.load %arg4[%c0_301, %c0_302, %c256_303] : memref<2x2x3072xf32, #tpu.memory_space<vmem>>, vector<1x2x2304xf32>
    %556 = vector.shape_cast %555 : vector<1x2x2304xf32> to vector<2x2304xf32>
    %557 = vector.broadcast %554 : f32 to vector<2x2304xf32>
    %558 = arith.mulf %557, %556 : vector<2x2304xf32>
    %559 = arith.addf %553, %558 : vector<2x2304xf32>
    %c25 = arith.constant 25 : index
    %560 = memref.load %arg2[%c25] : memref<98xf32, #tpu.memory_space<smem>>
    %c0_304 = arith.constant 0 : index
    %c0_305 = arith.constant 0 : index
    %c384_306 = arith.constant 384 : index
    %561 = vector.load %arg4[%c0_304, %c0_305, %c384_306] : memref<2x2x3072xf32, #tpu.memory_space<vmem>>, vector<1x2x2304xf32>
    %562 = vector.shape_cast %561 : vector<1x2x2304xf32> to vector<2x2304xf32>
    %563 = vector.broadcast %560 : f32 to vector<2x2304xf32>
    %564 = arith.mulf %563, %562 : vector<2x2304xf32>
    %565 = arith.addf %559, %564 : vector<2x2304xf32>
    %c32 = arith.constant 32 : index
    %566 = memref.load %arg2[%c32] : memref<98xf32, #tpu.memory_space<smem>>
    %c0_307 = arith.constant 0 : index
    %c0_308 = arith.constant 0 : index
    %c512_309 = arith.constant 512 : index
    %567 = vector.load %arg4[%c0_307, %c0_308, %c512_309] : memref<2x2x3072xf32, #tpu.memory_space<vmem>>, vector<1x2x2304xf32>
    %568 = vector.shape_cast %567 : vector<1x2x2304xf32> to vector<2x2304xf32>
    %569 = vector.broadcast %566 : f32 to vector<2x2304xf32>
    %570 = arith.mulf %569, %568 : vector<2x2304xf32>
    %571 = arith.addf %565, %570 : vector<2x2304xf32>
    %c39 = arith.constant 39 : index
    %572 = memref.load %arg2[%c39] : memref<98xf32, #tpu.memory_space<smem>>
    %c0_310 = arith.constant 0 : index
    %c0_311 = arith.constant 0 : index
    %c640_312 = arith.constant 640 : index
    %573 = vector.load %arg4[%c0_310, %c0_311, %c640_312] : memref<2x2x3072xf32, #tpu.memory_space<vmem>>, vector<1x2x2304xf32>
    %574 = vector.shape_cast %573 : vector<1x2x2304xf32> to vector<2x2304xf32>
    %575 = vector.broadcast %572 : f32 to vector<2x2304xf32>
    %576 = arith.mulf %575, %574 : vector<2x2304xf32>
    %577 = arith.addf %571, %576 : vector<2x2304xf32>
    %c46 = arith.constant 46 : index
    %578 = memref.load %arg2[%c46] : memref<98xf32, #tpu.memory_space<smem>>
    %c0_313 = arith.constant 0 : index
    %c0_314 = arith.constant 0 : index
    %c768_315 = arith.constant 768 : index
    %579 = vector.load %arg4[%c0_313, %c0_314, %c768_315] : memref<2x2x3072xf32, #tpu.memory_space<vmem>>, vector<1x2x2304xf32>
    %580 = vector.shape_cast %579 : vector<1x2x2304xf32> to vector<2x2304xf32>
    %581 = vector.broadcast %578 : f32 to vector<2x2304xf32>
    %582 = arith.mulf %581, %580 : vector<2x2304xf32>
    %583 = arith.addf %577, %582 : vector<2x2304xf32>
    %c53 = arith.constant 53 : index
    %584 = memref.load %arg2[%c53] : memref<98xf32, #tpu.memory_space<smem>>
    %c1_316 = arith.constant 1 : index
    %c0_317 = arith.constant 0 : index
    %c0_318 = arith.constant 0 : index
    %585 = vector.load %arg4[%c1_316, %c0_317, %c0_318] : memref<2x2x3072xf32, #tpu.memory_space<vmem>>, vector<1x2x2304xf32>
    %586 = vector.shape_cast %585 : vector<1x2x2304xf32> to vector<2x2304xf32>
    %587 = vector.broadcast %584 : f32 to vector<2x2304xf32>
    %588 = arith.mulf %587, %586 : vector<2x2304xf32>
    %589 = arith.addf %583, %588 : vector<2x2304xf32>
    %c60 = arith.constant 60 : index
    %590 = memref.load %arg2[%c60] : memref<98xf32, #tpu.memory_space<smem>>
    %c1_319 = arith.constant 1 : index
    %c0_320 = arith.constant 0 : index
    %c128_321 = arith.constant 128 : index
    %591 = vector.load %arg4[%c1_319, %c0_320, %c128_321] : memref<2x2x3072xf32, #tpu.memory_space<vmem>>, vector<1x2x2304xf32>
    %592 = vector.shape_cast %591 : vector<1x2x2304xf32> to vector<2x2304xf32>
    %593 = vector.broadcast %590 : f32 to vector<2x2304xf32>
    %594 = arith.mulf %593, %592 : vector<2x2304xf32>
    %595 = arith.addf %589, %594 : vector<2x2304xf32>
    %c67 = arith.constant 67 : index
    %596 = memref.load %arg2[%c67] : memref<98xf32, #tpu.memory_space<smem>>
    %c1_322 = arith.constant 1 : index
    %c0_323 = arith.constant 0 : index
    %c256_324 = arith.constant 256 : index
    %597 = vector.load %arg4[%c1_322, %c0_323, %c256_324] : memref<2x2x3072xf32, #tpu.memory_space<vmem>>, vector<1x2x2304xf32>
    %598 = vector.shape_cast %597 : vector<1x2x2304xf32> to vector<2x2304xf32>
    %599 = vector.broadcast %596 : f32 to vector<2x2304xf32>
    %600 = arith.mulf %599, %598 : vector<2x2304xf32>
    %601 = arith.addf %595, %600 : vector<2x2304xf32>
    %c74 = arith.constant 74 : index
    %602 = memref.load %arg2[%c74] : memref<98xf32, #tpu.memory_space<smem>>
    %c1_325 = arith.constant 1 : index
    %c0_326 = arith.constant 0 : index
    %c384_327 = arith.constant 384 : index
    %603 = vector.load %arg4[%c1_325, %c0_326, %c384_327] : memref<2x2x3072xf32, #tpu.memory_space<vmem>>, vector<1x2x2304xf32>
    %604 = vector.shape_cast %603 : vector<1x2x2304xf32> to vector<2x2304xf32>
    %605 = vector.broadcast %602 : f32 to vector<2x2304xf32>
    %606 = arith.mulf %605, %604 : vector<2x2304xf32>
    %607 = arith.addf %601, %606 : vector<2x2304xf32>
    %c81 = arith.constant 81 : index
    %608 = memref.load %arg2[%c81] : memref<98xf32, #tpu.memory_space<smem>>
    %c1_328 = arith.constant 1 : index
    %c0_329 = arith.constant 0 : index
    %c512_330 = arith.constant 512 : index
    %609 = vector.load %arg4[%c1_328, %c0_329, %c512_330] : memref<2x2x3072xf32, #tpu.memory_space<vmem>>, vector<1x2x2304xf32>
    %610 = vector.shape_cast %609 : vector<1x2x2304xf32> to vector<2x2304xf32>
    %611 = vector.broadcast %608 : f32 to vector<2x2304xf32>
    %612 = arith.mulf %611, %610 : vector<2x2304xf32>
    %613 = arith.addf %607, %612 : vector<2x2304xf32>
    %c88 = arith.constant 88 : index
    %614 = memref.load %arg2[%c88] : memref<98xf32, #tpu.memory_space<smem>>
    %c1_331 = arith.constant 1 : index
    %c0_332 = arith.constant 0 : index
    %c640_333 = arith.constant 640 : index
    %615 = vector.load %arg4[%c1_331, %c0_332, %c640_333] : memref<2x2x3072xf32, #tpu.memory_space<vmem>>, vector<1x2x2304xf32>
    %616 = vector.shape_cast %615 : vector<1x2x2304xf32> to vector<2x2304xf32>
    %617 = vector.broadcast %614 : f32 to vector<2x2304xf32>
    %618 = arith.mulf %617, %616 : vector<2x2304xf32>
    %619 = arith.addf %613, %618 : vector<2x2304xf32>
    %c95 = arith.constant 95 : index
    %620 = memref.load %arg2[%c95] : memref<98xf32, #tpu.memory_space<smem>>
    %c1_334 = arith.constant 1 : index
    %c0_335 = arith.constant 0 : index
    %c768_336 = arith.constant 768 : index
    %621 = vector.load %arg4[%c1_334, %c0_335, %c768_336] : memref<2x2x3072xf32, #tpu.memory_space<vmem>>, vector<1x2x2304xf32>
    %622 = vector.shape_cast %621 : vector<1x2x2304xf32> to vector<2x2304xf32>
    %623 = vector.broadcast %620 : f32 to vector<2x2304xf32>
    %624 = arith.mulf %623, %622 : vector<2x2304xf32>
    %625 = arith.addf %619, %624 : vector<2x2304xf32>
    %626 = vector.extract_strided_slice %625 {offsets = [0, 129], sizes = [2, 2048], strides = [1, 1]} : vector<2x2304xf32> to vector<2x2048xf32>
    %627 = arith.addf %542, %626 : vector<2x2048xf32>
    %c5 = arith.constant 5 : index
    %628 = memref.load %arg2[%c5] : memref<98xf32, #tpu.memory_space<smem>>
    %c0_337 = arith.constant 0 : index
    %c0_338 = arith.constant 0 : index
    %c0_339 = arith.constant 0 : index
    %629 = vector.load %arg4[%c0_337, %c0_338, %c0_339] : memref<2x2x3072xf32, #tpu.memory_space<vmem>>, vector<1x2x2304xf32>
    %630 = vector.shape_cast %629 : vector<1x2x2304xf32> to vector<2x2304xf32>
    %631 = vector.broadcast %628 : f32 to vector<2x2304xf32>
    %632 = arith.mulf %631, %630 : vector<2x2304xf32>
    %c12 = arith.constant 12 : index
    %633 = memref.load %arg2[%c12] : memref<98xf32, #tpu.memory_space<smem>>
    %c0_340 = arith.constant 0 : index
    %c0_341 = arith.constant 0 : index
    %c128_342 = arith.constant 128 : index
    %634 = vector.load %arg4[%c0_340, %c0_341, %c128_342] : memref<2x2x3072xf32, #tpu.memory_space<vmem>>, vector<1x2x2304xf32>
    %635 = vector.shape_cast %634 : vector<1x2x2304xf32> to vector<2x2304xf32>
    %636 = vector.broadcast %633 : f32 to vector<2x2304xf32>
    %637 = arith.mulf %636, %635 : vector<2x2304xf32>
    %638 = arith.addf %632, %637 : vector<2x2304xf32>
    %c19 = arith.constant 19 : index
    %639 = memref.load %arg2[%c19] : memref<98xf32, #tpu.memory_space<smem>>
    %c0_343 = arith.constant 0 : index
    %c0_344 = arith.constant 0 : index
    %c256_345 = arith.constant 256 : index
    %640 = vector.load %arg4[%c0_343, %c0_344, %c256_345] : memref<2x2x3072xf32, #tpu.memory_space<vmem>>, vector<1x2x2304xf32>
    %641 = vector.shape_cast %640 : vector<1x2x2304xf32> to vector<2x2304xf32>
    %642 = vector.broadcast %639 : f32 to vector<2x2304xf32>
    %643 = arith.mulf %642, %641 : vector<2x2304xf32>
    %644 = arith.addf %638, %643 : vector<2x2304xf32>
    %c26 = arith.constant 26 : index
    %645 = memref.load %arg2[%c26] : memref<98xf32, #tpu.memory_space<smem>>
    %c0_346 = arith.constant 0 : index
    %c0_347 = arith.constant 0 : index
    %c384_348 = arith.constant 384 : index
    %646 = vector.load %arg4[%c0_346, %c0_347, %c384_348] : memref<2x2x3072xf32, #tpu.memory_space<vmem>>, vector<1x2x2304xf32>
    %647 = vector.shape_cast %646 : vector<1x2x2304xf32> to vector<2x2304xf32>
    %648 = vector.broadcast %645 : f32 to vector<2x2304xf32>
    %649 = arith.mulf %648, %647 : vector<2x2304xf32>
    %650 = arith.addf %644, %649 : vector<2x2304xf32>
    %c33 = arith.constant 33 : index
    %651 = memref.load %arg2[%c33] : memref<98xf32, #tpu.memory_space<smem>>
    %c0_349 = arith.constant 0 : index
    %c0_350 = arith.constant 0 : index
    %c512_351 = arith.constant 512 : index
    %652 = vector.load %arg4[%c0_349, %c0_350, %c512_351] : memref<2x2x3072xf32, #tpu.memory_space<vmem>>, vector<1x2x2304xf32>
    %653 = vector.shape_cast %652 : vector<1x2x2304xf32> to vector<2x2304xf32>
    %654 = vector.broadcast %651 : f32 to vector<2x2304xf32>
    %655 = arith.mulf %654, %653 : vector<2x2304xf32>
    %656 = arith.addf %650, %655 : vector<2x2304xf32>
    %c40 = arith.constant 40 : index
    %657 = memref.load %arg2[%c40] : memref<98xf32, #tpu.memory_space<smem>>
    %c0_352 = arith.constant 0 : index
    %c0_353 = arith.constant 0 : index
    %c640_354 = arith.constant 640 : index
    %658 = vector.load %arg4[%c0_352, %c0_353, %c640_354] : memref<2x2x3072xf32, #tpu.memory_space<vmem>>, vector<1x2x2304xf32>
    %659 = vector.shape_cast %658 : vector<1x2x2304xf32> to vector<2x2304xf32>
    %660 = vector.broadcast %657 : f32 to vector<2x2304xf32>
    %661 = arith.mulf %660, %659 : vector<2x2304xf32>
    %662 = arith.addf %656, %661 : vector<2x2304xf32>
    %c47 = arith.constant 47 : index
    %663 = memref.load %arg2[%c47] : memref<98xf32, #tpu.memory_space<smem>>
    %c0_355 = arith.constant 0 : index
    %c0_356 = arith.constant 0 : index
    %c768_357 = arith.constant 768 : index
    %664 = vector.load %arg4[%c0_355, %c0_356, %c768_357] : memref<2x2x3072xf32, #tpu.memory_space<vmem>>, vector<1x2x2304xf32>
    %665 = vector.shape_cast %664 : vector<1x2x2304xf32> to vector<2x2304xf32>
    %666 = vector.broadcast %663 : f32 to vector<2x2304xf32>
    %667 = arith.mulf %666, %665 : vector<2x2304xf32>
    %668 = arith.addf %662, %667 : vector<2x2304xf32>
    %c54 = arith.constant 54 : index
    %669 = memref.load %arg2[%c54] : memref<98xf32, #tpu.memory_space<smem>>
    %c1_358 = arith.constant 1 : index
    %c0_359 = arith.constant 0 : index
    %c0_360 = arith.constant 0 : index
    %670 = vector.load %arg4[%c1_358, %c0_359, %c0_360] : memref<2x2x3072xf32, #tpu.memory_space<vmem>>, vector<1x2x2304xf32>
    %671 = vector.shape_cast %670 : vector<1x2x2304xf32> to vector<2x2304xf32>
    %672 = vector.broadcast %669 : f32 to vector<2x2304xf32>
    %673 = arith.mulf %672, %671 : vector<2x2304xf32>
    %674 = arith.addf %668, %673 : vector<2x2304xf32>
    %c61 = arith.constant 61 : index
    %675 = memref.load %arg2[%c61] : memref<98xf32, #tpu.memory_space<smem>>
    %c1_361 = arith.constant 1 : index
    %c0_362 = arith.constant 0 : index
    %c128_363 = arith.constant 128 : index
    %676 = vector.load %arg4[%c1_361, %c0_362, %c128_363] : memref<2x2x3072xf32, #tpu.memory_space<vmem>>, vector<1x2x2304xf32>
    %677 = vector.shape_cast %676 : vector<1x2x2304xf32> to vector<2x2304xf32>
    %678 = vector.broadcast %675 : f32 to vector<2x2304xf32>
    %679 = arith.mulf %678, %677 : vector<2x2304xf32>
    %680 = arith.addf %674, %679 : vector<2x2304xf32>
    %c68 = arith.constant 68 : index
    %681 = memref.load %arg2[%c68] : memref<98xf32, #tpu.memory_space<smem>>
    %c1_364 = arith.constant 1 : index
    %c0_365 = arith.constant 0 : index
    %c256_366 = arith.constant 256 : index
    %682 = vector.load %arg4[%c1_364, %c0_365, %c256_366] : memref<2x2x3072xf32, #tpu.memory_space<vmem>>, vector<1x2x2304xf32>
    %683 = vector.shape_cast %682 : vector<1x2x2304xf32> to vector<2x2304xf32>
    %684 = vector.broadcast %681 : f32 to vector<2x2304xf32>
    %685 = arith.mulf %684, %683 : vector<2x2304xf32>
    %686 = arith.addf %680, %685 : vector<2x2304xf32>
    %c75 = arith.constant 75 : index
    %687 = memref.load %arg2[%c75] : memref<98xf32, #tpu.memory_space<smem>>
    %c1_367 = arith.constant 1 : index
    %c0_368 = arith.constant 0 : index
    %c384_369 = arith.constant 384 : index
    %688 = vector.load %arg4[%c1_367, %c0_368, %c384_369] : memref<2x2x3072xf32, #tpu.memory_space<vmem>>, vector<1x2x2304xf32>
    %689 = vector.shape_cast %688 : vector<1x2x2304xf32> to vector<2x2304xf32>
    %690 = vector.broadcast %687 : f32 to vector<2x2304xf32>
    %691 = arith.mulf %690, %689 : vector<2x2304xf32>
    %692 = arith.addf %686, %691 : vector<2x2304xf32>
    %c82 = arith.constant 82 : index
    %693 = memref.load %arg2[%c82] : memref<98xf32, #tpu.memory_space<smem>>
    %c1_370 = arith.constant 1 : index
    %c0_371 = arith.constant 0 : index
    %c512_372 = arith.constant 512 : index
    %694 = vector.load %arg4[%c1_370, %c0_371, %c512_372] : memref<2x2x3072xf32, #tpu.memory_space<vmem>>, vector<1x2x2304xf32>
    %695 = vector.shape_cast %694 : vector<1x2x2304xf32> to vector<2x2304xf32>
    %696 = vector.broadcast %693 : f32 to vector<2x2304xf32>
    %697 = arith.mulf %696, %695 : vector<2x2304xf32>
    %698 = arith.addf %692, %697 : vector<2x2304xf32>
    %c89 = arith.constant 89 : index
    %699 = memref.load %arg2[%c89] : memref<98xf32, #tpu.memory_space<smem>>
    %c1_373 = arith.constant 1 : index
    %c0_374 = arith.constant 0 : index
    %c640_375 = arith.constant 640 : index
    %700 = vector.load %arg4[%c1_373, %c0_374, %c640_375] : memref<2x2x3072xf32, #tpu.memory_space<vmem>>, vector<1x2x2304xf32>
    %701 = vector.shape_cast %700 : vector<1x2x2304xf32> to vector<2x2304xf32>
    %702 = vector.broadcast %699 : f32 to vector<2x2304xf32>
    %703 = arith.mulf %702, %701 : vector<2x2304xf32>
    %704 = arith.addf %698, %703 : vector<2x2304xf32>
    %c96 = arith.constant 96 : index
    %705 = memref.load %arg2[%c96] : memref<98xf32, #tpu.memory_space<smem>>
    %c1_376 = arith.constant 1 : index
    %c0_377 = arith.constant 0 : index
    %c768_378 = arith.constant 768 : index
    %706 = vector.load %arg4[%c1_376, %c0_377, %c768_378] : memref<2x2x3072xf32, #tpu.memory_space<vmem>>, vector<1x2x2304xf32>
    %707 = vector.shape_cast %706 : vector<1x2x2304xf32> to vector<2x2304xf32>
    %708 = vector.broadcast %705 : f32 to vector<2x2304xf32>
    %709 = arith.mulf %708, %707 : vector<2x2304xf32>
    %710 = arith.addf %704, %709 : vector<2x2304xf32>
    %711 = vector.extract_strided_slice %710 {offsets = [0, 130], sizes = [2, 2048], strides = [1, 1]} : vector<2x2304xf32> to vector<2x2048xf32>
    %712 = arith.addf %627, %711 : vector<2x2048xf32>
    %c6 = arith.constant 6 : index
    %713 = memref.load %arg2[%c6] : memref<98xf32, #tpu.memory_space<smem>>
    %c0_379 = arith.constant 0 : index
    %c0_380 = arith.constant 0 : index
    %c0_381 = arith.constant 0 : index
    %714 = vector.load %arg4[%c0_379, %c0_380, %c0_381] : memref<2x2x3072xf32, #tpu.memory_space<vmem>>, vector<1x2x2304xf32>
    %715 = vector.shape_cast %714 : vector<1x2x2304xf32> to vector<2x2304xf32>
    %716 = vector.broadcast %713 : f32 to vector<2x2304xf32>
    %717 = arith.mulf %716, %715 : vector<2x2304xf32>
    %c13 = arith.constant 13 : index
    %718 = memref.load %arg2[%c13] : memref<98xf32, #tpu.memory_space<smem>>
    %c0_382 = arith.constant 0 : index
    %c0_383 = arith.constant 0 : index
    %c128_384 = arith.constant 128 : index
    %719 = vector.load %arg4[%c0_382, %c0_383, %c128_384] : memref<2x2x3072xf32, #tpu.memory_space<vmem>>, vector<1x2x2304xf32>
    %720 = vector.shape_cast %719 : vector<1x2x2304xf32> to vector<2x2304xf32>
    %721 = vector.broadcast %718 : f32 to vector<2x2304xf32>
    %722 = arith.mulf %721, %720 : vector<2x2304xf32>
    %723 = arith.addf %717, %722 : vector<2x2304xf32>
    %c20 = arith.constant 20 : index
    %724 = memref.load %arg2[%c20] : memref<98xf32, #tpu.memory_space<smem>>
    %c0_385 = arith.constant 0 : index
    %c0_386 = arith.constant 0 : index
    %c256_387 = arith.constant 256 : index
    %725 = vector.load %arg4[%c0_385, %c0_386, %c256_387] : memref<2x2x3072xf32, #tpu.memory_space<vmem>>, vector<1x2x2304xf32>
    %726 = vector.shape_cast %725 : vector<1x2x2304xf32> to vector<2x2304xf32>
    %727 = vector.broadcast %724 : f32 to vector<2x2304xf32>
    %728 = arith.mulf %727, %726 : vector<2x2304xf32>
    %729 = arith.addf %723, %728 : vector<2x2304xf32>
    %c27 = arith.constant 27 : index
    %730 = memref.load %arg2[%c27] : memref<98xf32, #tpu.memory_space<smem>>
    %c0_388 = arith.constant 0 : index
    %c0_389 = arith.constant 0 : index
    %c384_390 = arith.constant 384 : index
    %731 = vector.load %arg4[%c0_388, %c0_389, %c384_390] : memref<2x2x3072xf32, #tpu.memory_space<vmem>>, vector<1x2x2304xf32>
    %732 = vector.shape_cast %731 : vector<1x2x2304xf32> to vector<2x2304xf32>
    %733 = vector.broadcast %730 : f32 to vector<2x2304xf32>
    %734 = arith.mulf %733, %732 : vector<2x2304xf32>
    %735 = arith.addf %729, %734 : vector<2x2304xf32>
    %c34 = arith.constant 34 : index
    %736 = memref.load %arg2[%c34] : memref<98xf32, #tpu.memory_space<smem>>
    %c0_391 = arith.constant 0 : index
    %c0_392 = arith.constant 0 : index
    %c512_393 = arith.constant 512 : index
    %737 = vector.load %arg4[%c0_391, %c0_392, %c512_393] : memref<2x2x3072xf32, #tpu.memory_space<vmem>>, vector<1x2x2304xf32>
    %738 = vector.shape_cast %737 : vector<1x2x2304xf32> to vector<2x2304xf32>
    %739 = vector.broadcast %736 : f32 to vector<2x2304xf32>
    %740 = arith.mulf %739, %738 : vector<2x2304xf32>
    %741 = arith.addf %735, %740 : vector<2x2304xf32>
    %c41 = arith.constant 41 : index
    %742 = memref.load %arg2[%c41] : memref<98xf32, #tpu.memory_space<smem>>
    %c0_394 = arith.constant 0 : index
    %c0_395 = arith.constant 0 : index
    %c640_396 = arith.constant 640 : index
    %743 = vector.load %arg4[%c0_394, %c0_395, %c640_396] : memref<2x2x3072xf32, #tpu.memory_space<vmem>>, vector<1x2x2304xf32>
    %744 = vector.shape_cast %743 : vector<1x2x2304xf32> to vector<2x2304xf32>
    %745 = vector.broadcast %742 : f32 to vector<2x2304xf32>
    %746 = arith.mulf %745, %744 : vector<2x2304xf32>
    %747 = arith.addf %741, %746 : vector<2x2304xf32>
    %c48 = arith.constant 48 : index
    %748 = memref.load %arg2[%c48] : memref<98xf32, #tpu.memory_space<smem>>
    %c0_397 = arith.constant 0 : index
    %c0_398 = arith.constant 0 : index
    %c768_399 = arith.constant 768 : index
    %749 = vector.load %arg4[%c0_397, %c0_398, %c768_399] : memref<2x2x3072xf32, #tpu.memory_space<vmem>>, vector<1x2x2304xf32>
    %750 = vector.shape_cast %749 : vector<1x2x2304xf32> to vector<2x2304xf32>
    %751 = vector.broadcast %748 : f32 to vector<2x2304xf32>
    %752 = arith.mulf %751, %750 : vector<2x2304xf32>
    %753 = arith.addf %747, %752 : vector<2x2304xf32>
    %c55 = arith.constant 55 : index
    %754 = memref.load %arg2[%c55] : memref<98xf32, #tpu.memory_space<smem>>
    %c1_400 = arith.constant 1 : index
    %c0_401 = arith.constant 0 : index
    %c0_402 = arith.constant 0 : index
    %755 = vector.load %arg4[%c1_400, %c0_401, %c0_402] : memref<2x2x3072xf32, #tpu.memory_space<vmem>>, vector<1x2x2304xf32>
    %756 = vector.shape_cast %755 : vector<1x2x2304xf32> to vector<2x2304xf32>
    %757 = vector.broadcast %754 : f32 to vector<2x2304xf32>
    %758 = arith.mulf %757, %756 : vector<2x2304xf32>
    %759 = arith.addf %753, %758 : vector<2x2304xf32>
    %c62 = arith.constant 62 : index
    %760 = memref.load %arg2[%c62] : memref<98xf32, #tpu.memory_space<smem>>
    %c1_403 = arith.constant 1 : index
    %c0_404 = arith.constant 0 : index
    %c128_405 = arith.constant 128 : index
    %761 = vector.load %arg4[%c1_403, %c0_404, %c128_405] : memref<2x2x3072xf32, #tpu.memory_space<vmem>>, vector<1x2x2304xf32>
    %762 = vector.shape_cast %761 : vector<1x2x2304xf32> to vector<2x2304xf32>
    %763 = vector.broadcast %760 : f32 to vector<2x2304xf32>
    %764 = arith.mulf %763, %762 : vector<2x2304xf32>
    %765 = arith.addf %759, %764 : vector<2x2304xf32>
    %c69 = arith.constant 69 : index
    %766 = memref.load %arg2[%c69] : memref<98xf32, #tpu.memory_space<smem>>
    %c1_406 = arith.constant 1 : index
    %c0_407 = arith.constant 0 : index
    %c256_408 = arith.constant 256 : index
    %767 = vector.load %arg4[%c1_406, %c0_407, %c256_408] : memref<2x2x3072xf32, #tpu.memory_space<vmem>>, vector<1x2x2304xf32>
    %768 = vector.shape_cast %767 : vector<1x2x2304xf32> to vector<2x2304xf32>
    %769 = vector.broadcast %766 : f32 to vector<2x2304xf32>
    %770 = arith.mulf %769, %768 : vector<2x2304xf32>
    %771 = arith.addf %765, %770 : vector<2x2304xf32>
    %c76 = arith.constant 76 : index
    %772 = memref.load %arg2[%c76] : memref<98xf32, #tpu.memory_space<smem>>
    %c1_409 = arith.constant 1 : index
    %c0_410 = arith.constant 0 : index
    %c384_411 = arith.constant 384 : index
    %773 = vector.load %arg4[%c1_409, %c0_410, %c384_411] : memref<2x2x3072xf32, #tpu.memory_space<vmem>>, vector<1x2x2304xf32>
    %774 = vector.shape_cast %773 : vector<1x2x2304xf32> to vector<2x2304xf32>
    %775 = vector.broadcast %772 : f32 to vector<2x2304xf32>
    %776 = arith.mulf %775, %774 : vector<2x2304xf32>
    %777 = arith.addf %771, %776 : vector<2x2304xf32>
    %c83 = arith.constant 83 : index
    %778 = memref.load %arg2[%c83] : memref<98xf32, #tpu.memory_space<smem>>
    %c1_412 = arith.constant 1 : index
    %c0_413 = arith.constant 0 : index
    %c512_414 = arith.constant 512 : index
    %779 = vector.load %arg4[%c1_412, %c0_413, %c512_414] : memref<2x2x3072xf32, #tpu.memory_space<vmem>>, vector<1x2x2304xf32>
    %780 = vector.shape_cast %779 : vector<1x2x2304xf32> to vector<2x2304xf32>
    %781 = vector.broadcast %778 : f32 to vector<2x2304xf32>
    %782 = arith.mulf %781, %780 : vector<2x2304xf32>
    %783 = arith.addf %777, %782 : vector<2x2304xf32>
    %c90 = arith.constant 90 : index
    %784 = memref.load %arg2[%c90] : memref<98xf32, #tpu.memory_space<smem>>
    %c1_415 = arith.constant 1 : index
    %c0_416 = arith.constant 0 : index
    %c640_417 = arith.constant 640 : index
    %785 = vector.load %arg4[%c1_415, %c0_416, %c640_417] : memref<2x2x3072xf32, #tpu.memory_space<vmem>>, vector<1x2x2304xf32>
    %786 = vector.shape_cast %785 : vector<1x2x2304xf32> to vector<2x2304xf32>
    %787 = vector.broadcast %784 : f32 to vector<2x2304xf32>
    %788 = arith.mulf %787, %786 : vector<2x2304xf32>
    %789 = arith.addf %783, %788 : vector<2x2304xf32>
    %c97 = arith.constant 97 : index
    %790 = memref.load %arg2[%c97] : memref<98xf32, #tpu.memory_space<smem>>
    %c1_418 = arith.constant 1 : index
    %c0_419 = arith.constant 0 : index
    %c768_420 = arith.constant 768 : index
    %791 = vector.load %arg4[%c1_418, %c0_419, %c768_420] : memref<2x2x3072xf32, #tpu.memory_space<vmem>>, vector<1x2x2304xf32>
    %792 = vector.shape_cast %791 : vector<1x2x2304xf32> to vector<2x2304xf32>
    %793 = vector.broadcast %790 : f32 to vector<2x2304xf32>
    %794 = arith.mulf %793, %792 : vector<2x2304xf32>
    %795 = arith.addf %789, %794 : vector<2x2304xf32>
    %796 = vector.extract_strided_slice %795 {offsets = [0, 131], sizes = [2, 2048], strides = [1, 1]} : vector<2x2304xf32> to vector<2x2048xf32>
    %797 = arith.addf %712, %796 : vector<2x2048xf32>
    %798 = arith.negf %797 : vector<2x2048xf32>
    %799 = math.exp %798 : vector<2x2048xf32>
    %cst_421 = arith.constant 1.000000e+00 : f32
    %800 = vector.broadcast %cst_421 : f32 to vector<2x2048xf32>
    %801 = arith.addf %800, %799 : vector<2x2048xf32>
    %802 = arith.divf %800, %801 : vector<2x2048xf32>
    %c0_422 = arith.constant 0 : index
    %c0_423 = arith.constant 0 : index
    %803 = vector.load %arg3[%c0_422, %c0_423] : memref<2x2048xf32, #tpu.memory_space<vmem>>, vector<2x2048xf32>
    tpu.vector_store %arg3[%c0_422, %c0_423], %802 {strides = array<i32>} : memref<2x2048xf32, #tpu.memory_space<vmem>>, vector<2x2048xf32>,
    return
  }
  func.func @transform_0(%arg0: i32) -> (i32, i32, i32) {
    %c0_i32 = arith.constant 0 : i32
    %c0_i32_0 = arith.constant 0 : i32
    %c0_i32_1 = arith.constant 0 : i32
    return %arg0, %c0_i32, %c0_i32_0 : i32, i32, i32
  }
  func.func @transform_1(%arg0: i32) -> i32 {
    %c0_i32 = arith.constant 0 : i32
    %c0_i32_0 = arith.constant 0 : i32
    return %c0_i32 : i32
  }
  func.func @transform_2(%arg0: i32) -> (i32, i32) {
    %c0_i32 = arith.constant 0 : i32
    %c0_i32_0 = arith.constant 0 : i32
    return %arg0, %c0_i32 : i32, i32
  }
}

</mosaic_0001>

<llo_original>
// kernel: spatial_attention.1
$region0: #{spatial_attention.1}
  #allocation0 [shape = 'u32[]', space=smem, size = 0x4, offset = 0x4, fixed_abs, tag = 'smem constant byte address 0x4 - core index']
  #allocation1 [shape = 'u32[144,128]{1,0:T(1,128)}', space=vmem, size = 0x12000, scoped, tag = 'internal scratch']
  #allocation2 [shape = 'f32[2,2,3072]{2,1,0:T(2,128)}', space=vmem, size = 0xc000, scoped, tag = 'scratch operand']
  %s0 = inlined_call_operand.vmem [shape: f32[2,64,256], index: 0, kind: input, shape index: {}]
  %s1 = inlined_call_operand.vmem [shape: f32[98], index: 1, kind: input, shape index: {}]
  %s2 = inlined_call_operand.vmem [shape: f32[2,2048], index: 2, kind: output, shape index: {}]
  %s3 = sld [smem:[#allocation0]]
  $region22: #{spatial_attention.1} parent=0
    _
  %s5 = ssub.s32 1, %s3
  %s6 = scalar_select 0, %s5, %s3
  $region1: #{spatial_attention.1} parent=0
    #allocation3 [shape = 'u8[512]{0}', space=smem, size = 0x200, scoped, tag = 'input window, operand 1, single buffered']
    #allocation4 [shape = 's32[1]{0}', space=sflag, size = 0x4, scoped, tag = 'scoped memory for spatial_attention.1']
    %7 = vsyncpa [#allocation4], 0
    // Predicated region
    $region2: #{spatial_attention.1} parent=1 // pred_check
      _
    $region3: #{spatial_attention.1} parent=1 // pred_check_branch
      %9 = sbr.rel (0) target = $region5
    $region4: #{spatial_attention.1} parent=1 // pred_region
      _
    $region5: #{spatial_attention.1} parent=1 // pred_fallthru
      _
    // Predicated region
    $region6: #{spatial_attention.1} parent=1 // pred_check
      _
    $region7: #{spatial_attention.1} parent=1 // pred_check_branch
      %11 = sbr.rel (0) target = $region9
    $region8: #{spatial_attention.1} parent=1 // pred_region
      %s13 = ssub.s32 16, 16
      %14 = vsyncadd [#allocation4], %s13
      %s16 = sshll.u32 %s1, 4
      %s17 = int_to_ptr.vmem [resolvable:$true] %s16
      %19 = dma.vmem_to_smem %s17, 16, [#allocation3], [#allocation4]
    $region9: #{spatial_attention.1} parent=1 // pred_fallthru
      _
    // Predicated region
    $region10: #{spatial_attention.1} parent=1 // pred_check
      _
    $region11: #{spatial_attention.1} parent=1 // pred_check_branch
      %21 = sbr.rel (0) target = $region13
    $region12: #{spatial_attention.1} parent=1 // pred_region
      %22 = dma.done [#allocation4], 16
    $region13: #{spatial_attention.1} parent=1 // pred_fallthru
      _
    %23 = sfence
    %s24 = smul.u32 0, 2
    %s25 = smul.addr %s24, 8
    %s26 = scalar_lea.vmem %s0, %s25
    %v27 = vld [vmem:[%s26] sm:$0xff]
    %v28 = vld [vmem:[%s26 + $0x8] sm:$0xff]
    %v29 = vld [vmem:[%s26 + $0x80] sm:$0xff]
    %v30 = vld [vmem:[%s26 + $0x88] sm:$0xff]
    %v31 = vrot.slane %v27, 4
    %v32 = vadd.f32 %v27, %v31
    %v33 = vrot.slane %v32, 2
    %v34 = vadd.f32 %v32, %v33
    %v35 = vrot.slane %v34, 1
    %v36 = vadd.f32 %v34, %v35
    %v37 = vrot.slane %v28, 4
    %v38 = vadd.f32 %v28, %v37
    %v39 = vrot.slane %v38, 2
    %v40 = vadd.f32 %v38, %v39
    %v41 = vrot.slane %v40, 1
    %v42 = vadd.f32 %v40, %v41
    %v43 = vrot.slane %v29, 4
    %v44 = vadd.f32 %v29, %v43
    %v45 = vrot.slane %v44, 2
    %v46 = vadd.f32 %v44, %v45
    %v47 = vrot.slane %v46, 1
    %v48 = vadd.f32 %v46, %v47
    %v49 = vrot.slane %v30, 4
    %v50 = vadd.f32 %v30, %v49
    %v51 = vrot.slane %v50, 2
    %v52 = vadd.f32 %v50, %v51
    %v53 = vrot.slane %v52, 1
    %v54 = vadd.f32 %v52, %v53
    %v55 = vadd.f32 %v36, 0.0
    %v56 = vadd.f32 %v42, 0.0
    %v57 = vadd.f32 %v48, 0.0
    %v58 = vadd.f32 %v54, 0.0
    %v59 = vrot.slane %v27, 4
    %v60 = vmax.f32 %v27, %v59
    %v61 = vrot.slane %v60, 2
    %v62 = vmax.f32 %v60, %v61
    %v63 = vrot.slane %v62, 1
    %v64 = vmax.f32 %v62, %v63
    %v65 = vrot.slane %v28, 4
    %v66 = vmax.f32 %v28, %v65
    %v67 = vrot.slane %v66, 2
    %v68 = vmax.f32 %v66, %v67
    %v69 = vrot.slane %v68, 1
    %v70 = vmax.f32 %v68, %v69
    %v71 = vrot.slane %v29, 4
    %v72 = vmax.f32 %v29, %v71
    %v73 = vrot.slane %v72, 2
    %v74 = vmax.f32 %v72, %v73
    %v75 = vrot.slane %v74, 1
    %v76 = vmax.f32 %v74, %v75
    %v77 = vrot.slane %v30, 4
    %v78 = vmax.f32 %v30, %v77
    %v79 = vrot.slane %v78, 2
    %v80 = vmax.f32 %v78, %v79
    %v81 = vrot.slane %v80, 1
    %v82 = vmax.f32 %v80, %v81
    %s83 = smul.u32 1, 2
    %s84 = smul.addr %s83, 8
    %s85 = scalar_lea.vmem %s0, %s84
    %v86 = vld [vmem:[%s85] sm:$0xff]
    %v87 = vld [vmem:[%s85 + $0x8] sm:$0xff]
    %v88 = vld [vmem:[%s85 + $0x80] sm:$0xff]
    %v89 = vld [vmem:[%s85 + $0x88] sm:$0xff]
    %v90 = vrot.slane %v86, 4
    %v91 = vadd.f32 %v86, %v90
    %v92 = vrot.slane %v91, 2
    %v93 = vadd.f32 %v91, %v92
    %v94 = vrot.slane %v93, 1
    %v95 = vadd.f32 %v93, %v94
    %v96 = vrot.slane %v87, 4
    %v97 = vadd.f32 %v87, %v96
    %v98 = vrot.slane %v97, 2
    %v99 = vadd.f32 %v97, %v98
    %v100 = vrot.slane %v99, 1
    %v101 = vadd.f32 %v99, %v100
    %v102 = vrot.slane %v88, 4
    %v103 = vadd.f32 %v88, %v102
    %v104 = vrot.slane %v103, 2
    %v105 = vadd.f32 %v103, %v104
    %v106 = vrot.slane %v105, 1
    %v107 = vadd.f32 %v105, %v106
    %v108 = vrot.slane %v89, 4
    %v109 = vadd.f32 %v89, %v108
    %v110 = vrot.slane %v109, 2
    %v111 = vadd.f32 %v109, %v110
    %v112 = vrot.slane %v111, 1
    %v113 = vadd.f32 %v111, %v112
    %v114 = vadd.f32 %v55, %v95
    %v115 = vadd.f32 %v56, %v101
    %v116 = vadd.f32 %v57, %v107
    %v117 = vadd.f32 %v58, %v113
    %v118 = vrot.slane %v86, 4
    %v119 = vmax.f32 %v86, %v118
    %v120 = vrot.slane %v119, 2
    %v121 = vmax.f32 %v119, %v120
    %v122 = vrot.slane %v121, 1
    %v123 = vmax.f32 %v121, %v122
    %v124 = vrot.slane %v87, 4
    %v125 = vmax.f32 %v87, %v124
    %v126 = vrot.slane %v125, 2
    %v127 = vmax.f32 %v125, %v126
    %v128 = vrot.slane %v127, 1
    %v129 = vmax.f32 %v127, %v128
    %v130 = vrot.slane %v88, 4
    %v131 = vmax.f32 %v88, %v130
    %v132 = vrot.slane %v131, 2
    %v133 = vmax.f32 %v131, %v132
    %v134 = vrot.slane %v133, 1
    %v135 = vmax.f32 %v133, %v134
    %v136 = vrot.slane %v89, 4
    %v137 = vmax.f32 %v89, %v136
    %v138 = vrot.slane %v137, 2
    %v139 = vmax.f32 %v137, %v138
    %v140 = vrot.slane %v139, 1
    %v141 = vmax.f32 %v139, %v140
    %v142 = vmax.f32 %v64, %v123
    %v143 = vmax.f32 %v70, %v129
    %v144 = vmax.f32 %v76, %v135
    %v145 = vmax.f32 %v82, %v141
    %s146 = smul.u32 2, 2
    %s147 = smul.addr %s146, 8
    %s148 = scalar_lea.vmem %s0, %s147
    %v149 = vld [vmem:[%s148] sm:$0xff]
    %v150 = vld [vmem:[%s148 + $0x8] sm:$0xff]
    %v151 = vld [vmem:[%s148 + $0x80] sm:$0xff]
    %v152 = vld [vmem:[%s148 + $0x88] sm:$0xff]
    %v153 = vrot.slane %v149, 4
    %v154 = vadd.f32 %v149, %v153
    %v155 = vrot.slane %v154, 2
    %v156 = vadd.f32 %v154, %v155
    %v157 = vrot.slane %v156, 1
    %v158 = vadd.f32 %v156, %v157
    %v159 = vrot.slane %v150, 4
    %v160 = vadd.f32 %v150, %v159
    %v161 = vrot.slane %v160, 2
    %v162 = vadd.f32 %v160, %v161
    %v163 = vrot.slane %v162, 1
    %v164 = vadd.f32 %v162, %v163
    %v165 = vrot.slane %v151, 4
    %v166 = vadd.f32 %v151, %v165
    %v167 = vrot.slane %v166, 2
    %v168 = vadd.f32 %v166, %v167
    %v169 = vrot.slane %v168, 1
    %v170 = vadd.f32 %v168, %v169
    %v171 = vrot.slane %v152, 4
    %v172 = vadd.f32 %v152, %v171
    %v173 = vrot.slane %v172, 2
    %v174 = vadd.f32 %v172, %v173
    %v175 = vrot.slane %v174, 1
    %v176 = vadd.f32 %v174, %v175
    %v177 = vadd.f32 %v114, %v158
    %v178 = vadd.f32 %v115, %v164
    %v179 = vadd.f32 %v116, %v170
    %v180 = vadd.f32 %v117, %v176
    %v181 = vrot.slane %v149, 4
    %v182 = vmax.f32 %v149, %v181
    %v183 = vrot.slane %v182, 2
    %v184 = vmax.f32 %v182, %v183
    %v185 = vrot.slane %v184, 1
    %v186 = vmax.f32 %v184, %v185
    %v187 = vrot.slane %v150, 4
    %v188 = vmax.f32 %v150, %v187
    %v189 = vrot.slane %v188, 2
    %v190 = vmax.f32 %v188, %v189
    %v191 = vrot.slane %v190, 1
    %v192 = vmax.f32 %v190, %v191
    %v193 = vrot.slane %v151, 4
    %v194 = vmax.f32 %v151, %v193
    %v195 = vrot.slane %v194, 2
    %v196 = vmax.f32 %v194, %v195
    %v197 = vrot.slane %v196, 1
    %v198 = vmax.f32 %v196, %v197
    %v199 = vrot.slane %v152, 4
    %v200 = vmax.f32 %v152, %v199
    %v201 = vrot.slane %v200, 2
    %v202 = vmax.f32 %v200, %v201
    %v203 = vrot.slane %v202, 1
    %v204 = vmax.f32 %v202, %v203
    %v205 = vmax.f32 %v142, %v186
    %v206 = vmax.f32 %v143, %v192
    %v207 = vmax.f32 %v144, %v198
    %v208 = vmax.f32 %v145, %v204
    %s209 = smul.u32 3, 2
    %s210 = smul.addr %s209, 8
    %s211 = scalar_lea.vmem %s0, %s210
    %v212 = vld [vmem:[%s211] sm:$0xff]
    %v213 = vld [vmem:[%s211 + $0x8] sm:$0xff]
    %v214 = vld [vmem:[%s211 + $0x80] sm:$0xff]
    %v215 = vld [vmem:[%s211 + $0x88] sm:$0xff]
    %v216 = vrot.slane %v212, 4
    %v217 = vadd.f32 %v212, %v216
    %v218 = vrot.slane %v217, 2
    %v219 = vadd.f32 %v217, %v218
    %v220 = vrot.slane %v219, 1
    %v221 = vadd.f32 %v219, %v220
    %v222 = vrot.slane %v213, 4
    %v223 = vadd.f32 %v213, %v222
    %v224 = vrot.slane %v223, 2
    %v225 = vadd.f32 %v223, %v224
    %v226 = vrot.slane %v225, 1
    %v227 = vadd.f32 %v225, %v226
    %v228 = vrot.slane %v214, 4
    %v229 = vadd.f32 %v214, %v228
    %v230 = vrot.slane %v229, 2
    %v231 = vadd.f32 %v229, %v230
    %v232 = vrot.slane %v231, 1
    %v233 = vadd.f32 %v231, %v232
    %v234 = vrot.slane %v215, 4
    %v235 = vadd.f32 %v215, %v234
    %v236 = vrot.slane %v235, 2
    %v237 = vadd.f32 %v235, %v236
    %v238 = vrot.slane %v237, 1
    %v239 = vadd.f32 %v237, %v238
    %v240 = vadd.f32 %v177, %v221
    %v241 = vadd.f32 %v178, %v227
    %v242 = vadd.f32 %v179, %v233
    %v243 = vadd.f32 %v180, %v239
    %v244 = vrot.slane %v212, 4
    %v245 = vmax.f32 %v212, %v244
    %v246 = vrot.slane %v245, 2
    %v247 = vmax.f32 %v245, %v246
    %v248 = vrot.slane %v247, 1
    %v249 = vmax.f32 %v247, %v248
    %v250 = vrot.slane %v213, 4
    %v251 = vmax.f32 %v213, %v250
    %v252 = vrot.slane %v251, 2
    %v253 = vmax.f32 %v251, %v252
    %v254 = vrot.slane %v253, 1
    %v255 = vmax.f32 %v253, %v254
    %v256 = vrot.slane %v214, 4
    %v257 = vmax.f32 %v214, %v256
    %v258 = vrot.slane %v257, 2
    %v259 = vmax.f32 %v257, %v258
    %v260 = vrot.slane %v259, 1
    %v261 = vmax.f32 %v259, %v260
    %v262 = vrot.slane %v215, 4
    %v263 = vmax.f32 %v215, %v262
    %v264 = vrot.slane %v263, 2
    %v265 = vmax.f32 %v263, %v264
    %v266 = vrot.slane %v265, 1
    %v267 = vmax.f32 %v265, %v266
    %v268 = vmax.f32 %v205, %v249
    %v269 = vmax.f32 %v206, %v255
    %v270 = vmax.f32 %v207, %v261
    %v271 = vmax.f32 %v208, %v267
    %s272 = smul.u32 4, 2
    %s273 = smul.addr %s272, 8
    %s274 = scalar_lea.vmem %s0, %s273
    %v275 = vld [vmem:[%s274] sm:$0xff]
    %v276 = vld [vmem:[%s274 + $0x8] sm:$0xff]
    %v277 = vld [vmem:[%s274 + $0x80] sm:$0xff]
    %v278 = vld [vmem:[%s274 + $0x88] sm:$0xff]
    %v279 = vrot.slane %v275, 4
    %v280 = vadd.f32 %v275, %v279
    %v281 = vrot.slane %v280, 2
    %v282 = vadd.f32 %v280, %v281
    %v283 = vrot.slane %v282, 1
    %v284 = vadd.f32 %v282, %v283
    %v285 = vrot.slane %v276, 4
    %v286 = vadd.f32 %v276, %v285
    %v287 = vrot.slane %v286, 2
    %v288 = vadd.f32 %v286, %v287
    %v289 = vrot.slane %v288, 1
    %v290 = vadd.f32 %v288, %v289
    %v291 = vrot.slane %v277, 4
    %v292 = vadd.f32 %v277, %v291
    %v293 = vrot.slane %v292, 2
    %v294 = vadd.f32 %v292, %v293
    %v295 = vrot.slane %v294, 1
    %v296 = vadd.f32 %v294, %v295
    %v297 = vrot.slane %v278, 4
    %v298 = vadd.f32 %v278, %v297
    %v299 = vrot.slane %v298, 2
    %v300 = vadd.f32 %v298, %v299
    %v301 = vrot.slane %v300, 1
    %v302 = vadd.f32 %v300, %v301
    %v303 = vadd.f32 %v240, %v284
    %v304 = vadd.f32 %v241, %v290
    %v305 = vadd.f32 %v242, %v296
    %v306 = vadd.f32 %v243, %v302
    %v307 = vrot.slane %v275, 4
    %v308 = vmax.f32 %v275, %v307
    %v309 = vrot.slane %v308, 2
    %v310 = vmax.f32 %v308, %v309
    %v311 = vrot.slane %v310, 1
    %v312 = vmax.f32 %v310, %v311
    %v313 = vrot.slane %v276, 4
    %v314 = vmax.f32 %v276, %v313
    %v315 = vrot.slane %v314, 2
    %v316 = vmax.f32 %v314, %v315
    %v317 = vrot.slane %v316, 1
    %v318 = vmax.f32 %v316, %v317
    %v319 = vrot.slane %v277, 4
    %v320 = vmax.f32 %v277, %v319
    %v321 = vrot.slane %v320, 2
    %v322 = vmax.f32 %v320, %v321
    %v323 = vrot.slane %v322, 1
    %v324 = vmax.f32 %v322, %v323
    %v325 = vrot.slane %v278, 4
    %v326 = vmax.f32 %v278, %v325
    %v327 = vrot.slane %v326, 2
    %v328 = vmax.f32 %v326, %v327
    %v329 = vrot.slane %v328, 1
    %v330 = vmax.f32 %v328, %v329
    %v331 = vmax.f32 %v268, %v312
    %v332 = vmax.f32 %v269, %v318
    %v333 = vmax.f32 %v270, %v324
    %v334 = vmax.f32 %v271, %v330
    %s335 = smul.u32 5, 2
    %s336 = smul.addr %s335, 8
    %s337 = scalar_lea.vmem %s0, %s336
    %v338 = vld [vmem:[%s337] sm:$0xff]
    %v339 = vld [vmem:[%s337 + $0x8] sm:$0xff]
    %v340 = vld [vmem:[%s337 + $0x80] sm:$0xff]
    %v341 = vld [vmem:[%s337 + $0x88] sm:$0xff]
    %v342 = vrot.slane %v338, 4
    %v343 = vadd.f32 %v338, %v342
    %v344 = vrot.slane %v343, 2
    %v345 = vadd.f32 %v343, %v344
    %v346 = vrot.slane %v345, 1
    %v347 = vadd.f32 %v345, %v346
    %v348 = vrot.slane %v339, 4
    %v349 = vadd.f32 %v339, %v348
    %v350 = vrot.slane %v349, 2
    %v351 = vadd.f32 %v349, %v350
    %v352 = vrot.slane %v351, 1
    %v353 = vadd.f32 %v351, %v352
    %v354 = vrot.slane %v340, 4
    %v355 = vadd.f32 %v340, %v354
    %v356 = vrot.slane %v355, 2
    %v357 = vadd.f32 %v355, %v356
    %v358 = vrot.slane %v357, 1
    %v359 = vadd.f32 %v357, %v358
    %v360 = vrot.slane %v341, 4
    %v361 = vadd.f32 %v341, %v360
    %v362 = vrot.slane %v361, 2
    %v363 = vadd.f32 %v361, %v362
    %v364 = vrot.slane %v363, 1
    %v365 = vadd.f32 %v363, %v364
    %v366 = vadd.f32 %v303, %v347
    %v367 = vadd.f32 %v304, %v353
    %v368 = vadd.f32 %v305, %v359
    %v369 = vadd.f32 %v306, %v365
    %v370 = vrot.slane %v338, 4
    %v371 = vmax.f32 %v338, %v370
    %v372 = vrot.slane %v371, 2
    %v373 = vmax.f32 %v371, %v372
    %v374 = vrot.slane %v373, 1
    %v375 = vmax.f32 %v373, %v374
    %v376 = vrot.slane %v339, 4
    %v377 = vmax.f32 %v339, %v376
    %v378 = vrot.slane %v377, 2
    %v379 = vmax.f32 %v377, %v378
    %v380 = vrot.slane %v379, 1
    %v381 = vmax.f32 %v379, %v380
    %v382 = vrot.slane %v340, 4
    %v383 = vmax.f32 %v340, %v382
    %v384 = vrot.slane %v383, 2
    %v385 = vmax.f32 %v383, %v384
    %v386 = vrot.slane %v385, 1
    %v387 = vmax.f32 %v385, %v386
    %v388 = vrot.slane %v341, 4
    %v389 = vmax.f32 %v341, %v388
    %v390 = vrot.slane %v389, 2
    %v391 = vmax.f32 %v389, %v390
    %v392 = vrot.slane %v391, 1
    %v393 = vmax.f32 %v391, %v392
    %v394 = vmax.f32 %v331, %v375
    %v395 = vmax.f32 %v332, %v381
    %v396 = vmax.f32 %v333, %v387
    %v397 = vmax.f32 %v334, %v393
    %s398 = smul.u32 6, 2
    %s399 = smul.addr %s398, 8
    %s400 = scalar_lea.vmem %s0, %s399
    %v401 = vld [vmem:[%s400] sm:$0xff]
    %v402 = vld [vmem:[%s400 + $0x8] sm:$0xff]
    %v403 = vld [vmem:[%s400 + $0x80] sm:$0xff]
    %v404 = vld [vmem:[%s400 + $0x88] sm:$0xff]
    %v405 = vrot.slane %v401, 4
    %v406 = vadd.f32 %v401, %v405
    %v407 = vrot.slane %v406, 2
    %v408 = vadd.f32 %v406, %v407
    %v409 = vrot.slane %v408, 1
    %v410 = vadd.f32 %v408, %v409
    %v411 = vrot.slane %v402, 4
    %v412 = vadd.f32 %v402, %v411
    %v413 = vrot.slane %v412, 2
    %v414 = vadd.f32 %v412, %v413
    %v415 = vrot.slane %v414, 1
    %v416 = vadd.f32 %v414, %v415
    %v417 = vrot.slane %v403, 4
    %v418 = vadd.f32 %v403, %v417
    %v419 = vrot.slane %v418, 2
    %v420 = vadd.f32 %v418, %v419
    %v421 = vrot.slane %v420, 1
    %v422 = vadd.f32 %v420, %v421
    %v423 = vrot.slane %v404, 4
    %v424 = vadd.f32 %v404, %v423
    %v425 = vrot.slane %v424, 2
    %v426 = vadd.f32 %v424, %v425
    %v427 = vrot.slane %v426, 1
    %v428 = vadd.f32 %v426, %v427
    %v429 = vadd.f32 %v366, %v410
    %v430 = vadd.f32 %v367, %v416
    %v431 = vadd.f32 %v368, %v422
    %v432 = vadd.f32 %v369, %v428
    %v433 = vrot.slane %v401, 4
    %v434 = vmax.f32 %v401, %v433
    %v435 = vrot.slane %v434, 2
    %v436 = vmax.f32 %v434, %v435
    %v437 = vrot.slane %v436, 1
    %v438 = vmax.f32 %v436, %v437
    %v439 = vrot.slane %v402, 4
    %v440 = vmax.f32 %v402, %v439
    %v441 = vrot.slane %v440, 2
    %v442 = vmax.f32 %v440, %v441
    %v443 = vrot.slane %v442, 1
    %v444 = vmax.f32 %v442, %v443
    %v445 = vrot.slane %v403, 4
    %v446 = vmax.f32 %v403, %v445
    %v447 = vrot.slane %v446, 2
    %v448 = vmax.f32 %v446, %v447
    %v449 = vrot.slane %v448, 1
    %v450 = vmax.f32 %v448, %v449
    %v451 = vrot.slane %v404, 4
    %v452 = vmax.f32 %v404, %v451
    %v453 = vrot.slane %v452, 2
    %v454 = vmax.f32 %v452, %v453
    %v455 = vrot.slane %v454, 1
    %v456 = vmax.f32 %v454, %v455
    %v457 = vmax.f32 %v394, %v438
    %v458 = vmax.f32 %v395, %v444
    %v459 = vmax.f32 %v396, %v450
    %v460 = vmax.f32 %v397, %v456
    %s461 = smul.u32 7, 2
    %s462 = smul.addr %s461, 8
    %s463 = scalar_lea.vmem %s0, %s462
    %v464 = vld [vmem:[%s463] sm:$0xff]
    %v465 = vld [vmem:[%s463 + $0x8] sm:$0xff]
    %v466 = vld [vmem:[%s463 + $0x80] sm:$0xff]
    %v467 = vld [vmem:[%s463 + $0x88] sm:$0xff]
    %v468 = vrot.slane %v464, 4
    %v469 = vadd.f32 %v464, %v468
    %v470 = vrot.slane %v469, 2
    %v471 = vadd.f32 %v469, %v470
    %v472 = vrot.slane %v471, 1
    %v473 = vadd.f32 %v471, %v472
    %v474 = vrot.slane %v465, 4
    %v475 = vadd.f32 %v465, %v474
    %v476 = vrot.slane %v475, 2
    %v477 = vadd.f32 %v475, %v476
    %v478 = vrot.slane %v477, 1
    %v479 = vadd.f32 %v477, %v478
    %v480 = vrot.slane %v466, 4
    %v481 = vadd.f32 %v466, %v480
    %v482 = vrot.slane %v481, 2
    %v483 = vadd.f32 %v481, %v482
    %v484 = vrot.slane %v483, 1
    %v485 = vadd.f32 %v483, %v484
    %v486 = vrot.slane %v467, 4
    %v487 = vadd.f32 %v467, %v486
    %v488 = vrot.slane %v487, 2
    %v489 = vadd.f32 %v487, %v488
    %v490 = vrot.slane %v489, 1
    %v491 = vadd.f32 %v489, %v490
    %v492 = vadd.f32 %v429, %v473
    %v493 = vadd.f32 %v430, %v479
    %v494 = vadd.f32 %v431, %v485
    %v495 = vadd.f32 %v432, %v491
    %v496 = vrot.slane %v464, 4
    %v497 = vmax.f32 %v464, %v496
    %v498 = vrot.slane %v497, 2
    %v499 = vmax.f32 %v497, %v498
    %v500 = vrot.slane %v499, 1
    %v501 = vmax.f32 %v499, %v500
    %v502 = vrot.slane %v465, 4
    %v503 = vmax.f32 %v465, %v502
    %v504 = vrot.slane %v503, 2
    %v505 = vmax.f32 %v503, %v504
    %v506 = vrot.slane %v505, 1
    %v507 = vmax.f32 %v505, %v506
    %v508 = vrot.slane %v466, 4
    %v509 = vmax.f32 %v466, %v508
    %v510 = vrot.slane %v509, 2
    %v511 = vmax.f32 %v509, %v510
    %v512 = vrot.slane %v511, 1
    %v513 = vmax.f32 %v511, %v512
    %v514 = vrot.slane %v467, 4
    %v515 = vmax.f32 %v467, %v514
    %v516 = vrot.slane %v515, 2
    %v517 = vmax.f32 %v515, %v516
    %v518 = vrot.slane %v517, 1
    %v519 = vmax.f32 %v517, %v518
    %v520 = vmax.f32 %v457, %v501
    %v521 = vmax.f32 %v458, %v507
    %v522 = vmax.f32 %v459, %v513
    %v523 = vmax.f32 %v460, %v519
    %524 = vst [vmem:[#allocation2] sm:$0xff] 0.0
    %525 = vst [vmem:[#allocation2 + $0x8] sm:$0xff] 0.0
    %526 = vst [vmem:[#allocation2 + $0x10] sm:$0xff] 0.0
    %527 = vst [vmem:[#allocation2 + $0x18] sm:$0xff] 0.0
    %528 = vst [vmem:[#allocation2 + $0x20] sm:$0xff] 0.0
    %529 = vst [vmem:[#allocation2 + $0x28] sm:$0xff] 0.0
    %s530 = scalar_lea.vmem [#allocation2], 48
    %531 = vst [vmem:[%s530] sm:$0xff] 0.0
    %532 = vst [vmem:[%s530 + $0x8] sm:$0xff] 0.0
    %533 = vst [vmem:[%s530 + $0x10] sm:$0xff] 0.0
    %534 = vst [vmem:[%s530 + $0x18] sm:$0xff] 0.0
    %535 = vst [vmem:[%s530 + $0x20] sm:$0xff] 0.0
    %536 = vst [vmem:[%s530 + $0x28] sm:$0xff] 0.0
    %v540 = vunpack.c.l.s4 1983009808
    %v541 = vunpack.c.0.s8 %v540
    %v542 = vlaneseq
    %v543 = vshrl.u32 %v542, 7
    %v544 = vsub.s32 %v541, %v543
    %v545 = vrot.slane %v492, %v544
    %v547 = vunpack.c.l.s4 1983009808
    %v548 = vunpack.c.0.s8 %v547
    %v549 = vlaneseq
    %v550 = vshrl.u32 %v549, 7
    %v551 = vsub.s32 %v548, %v550
    %v552 = vrot.slane %v494, %v551
    %vm553 = vcmask 1044484
    %v554 = vsel %vm553, %v545, %v545
    %vm555 = vcmask 1046534
    %v556 = vsel %vm555, %v545, %v554
    %v557 = vrot.slane %v552, 7
    %vm558 = vcmask 1041409
    %v559 = vsel %vm558, %v557, %v556
    %vm560 = vcmask 1043459
    %v561 = vsel %vm560, %v557, %v559
    %vm562 = vcmask 1045509
    %v563 = vsel %vm562, %v557, %v561
    %vm564 = vcmask 1047559
    %v565 = vsel %vm564, %v557, %v563
    %vm567 = vcmask 123904
    %568 = vst.msk [vmem:[#allocation2 + $0x8] sm:$0x3] %vm567, %v565
    %v572 = vunpack.c.l.s4 1983009808
    %v573 = vunpack.c.0.s8 %v572
    %v574 = vlaneseq
    %v575 = vshrl.u32 %v574, 7
    %v576 = vsub.s32 %v573, %v575
    %v577 = vrot.slane %v520, %v576
    %v579 = vunpack.c.l.s4 1983009808
    %v580 = vunpack.c.0.s8 %v579
    %v581 = vlaneseq
    %v582 = vshrl.u32 %v581, 7
    %v583 = vsub.s32 %v580, %v582
    %v584 = vrot.slane %v522, %v583
    %v585 = vsel %vm553, %v577, %v577
    %v586 = vsel %vm555, %v577, %v585
    %v587 = vrot.slane %v584, 7
    %v588 = vsel %vm558, %v587, %v586
    %v589 = vsel %vm560, %v587, %v588
    %v590 = vsel %vm562, %v587, %v589
    %v591 = vsel %vm564, %v587, %v590
    %593 = vst.msk [vmem:[%s530 + $0x8] sm:$0x3] %vm567, %v591
    %594 = vrot.lane.b32.xlu0 %v565, 112
    %v595 = vpop.permute.xlu0 %594
    %597 = vst.msk [vmem:[#allocation2 + $0xa] sm:$0x3] %vm567, %v595
    %598 = vrot.lane.b32.xlu0 %v591, 112
    %v599 = vpop.permute.xlu0 %598
    %601 = vst.msk [vmem:[%s530 + $0xa] sm:$0x3] %vm567, %v599
    %602 = vrot.lane.b32.xlu0 %v565, 96
    %v603 = vpop.permute.xlu0 %602
    %605 = vst.msk [vmem:[#allocation2 + $0xc] sm:$0x3] %vm567, %v603
    %606 = vrot.lane.b32.xlu0 %v591, 96
    %v607 = vpop.permute.xlu0 %606
    %609 = vst.msk [vmem:[%s530 + $0xc] sm:$0x3] %vm567, %v607
    %610 = vrot.lane.b32.xlu0 %v565, 80
    %v611 = vpop.permute.xlu0 %610
    %613 = vst.msk [vmem:[#allocation2 + $0xe] sm:$0x3] %vm567, %v611
    %614 = vrot.lane.b32.xlu0 %v591, 80
    %v615 = vpop.permute.xlu0 %614
    %617 = vst.msk [vmem:[%s530 + $0xe] sm:$0x3] %vm567, %v615
    %618 = vrot.lane.b32.xlu0 %v565, 64
    %v619 = vpop.permute.xlu0 %618
    %621 = vst.msk [vmem:[#allocation2 + $0x10] sm:$0x3] %vm567, %v619
    %622 = vrot.lane.b32.xlu0 %v591, 64
    %v623 = vpop.permute.xlu0 %622
    %625 = vst.msk [vmem:[%s530 + $0x10] sm:$0x3] %vm567, %v623
    %626 = vrot.lane.b32.xlu0 %v565, 48
    %v627 = vpop.permute.xlu0 %626
    %629 = vst.msk [vmem:[#allocation2 + $0x12] sm:$0x3] %vm567, %v627
    %630 = vrot.lane.b32.xlu0 %v591, 48
    %v631 = vpop.permute.xlu0 %630
    %633 = vst.msk [vmem:[%s530 + $0x12] sm:$0x3] %vm567, %v631
    %634 = vrot.lane.b32.xlu0 %v565, 32
    %v635 = vpop.permute.xlu0 %634
    %637 = vst.msk [vmem:[#allocation2 + $0x14] sm:$0x3] %vm567, %v635
    %638 = vrot.lane.b32.xlu0 %v591, 32
    %v639 = vpop.permute.xlu0 %638
    %641 = vst.msk [vmem:[%s530 + $0x14] sm:$0x3] %vm567, %v639
    %642 = vrot.lane.b32.xlu0 %v565, 16
    %v643 = vpop.permute.xlu0 %642
    %645 = vst.msk [vmem:[#allocation2 + $0x16] sm:$0x3] %vm567, %v643
    %646 = vrot.lane.b32.xlu0 %v591, 16
    %v647 = vpop.permute.xlu0 %646
    %649 = vst.msk [vmem:[%s530 + $0x16] sm:$0x3] %vm567, %v647
    %v653 = vunpack.c.l.s4 1983009808
    %v654 = vunpack.c.0.s8 %v653
    %v655 = vlaneseq
    %v656 = vshrl.u32 %v655, 7
    %v657 = vsub.s32 %v654, %v656
    %v658 = vrot.slane %v493, %v657
    %v660 = vunpack.c.l.s4 1983009808
    %v661 = vunpack.c.0.s8 %v660
    %v662 = vlaneseq
    %v663 = vshrl.u32 %v662, 7
    %v664 = vsub.s32 %v661, %v663
    %v665 = vrot.slane %v495, %v664
    %v666 = vsel %vm553, %v658, %v658
    %v667 = vsel %vm555, %v658, %v666
    %v668 = vrot.slane %v665, 7
    %v669 = vsel %vm558, %v668, %v667
    %v670 = vsel %vm560, %v668, %v669
    %v671 = vsel %vm562, %v668, %v670
    %v672 = vsel %vm564, %v668, %v671
    %674 = vst.msk [vmem:[#allocation2 + $0x18] sm:$0x3] %vm567, %v672
    %v678 = vunpack.c.l.s4 1983009808
    %v679 = vunpack.c.0.s8 %v678
    %v680 = vlaneseq
    %v681 = vshrl.u32 %v680, 7
    %v682 = vsub.s32 %v679, %v681
    %v683 = vrot.slane %v521, %v682
    %v685 = vunpack.c.l.s4 1983009808
    %v686 = vunpack.c.0.s8 %v685
    %v687 = vlaneseq
    %v688 = vshrl.u32 %v687, 7
    %v689 = vsub.s32 %v686, %v688
    %v690 = vrot.slane %v523, %v689
    %v691 = vsel %vm553, %v683, %v683
    %v692 = vsel %vm555, %v683, %v691
    %v693 = vrot.slane %v690, 7
    %v694 = vsel %vm558, %v693, %v692
    %v695 = vsel %vm560, %v693, %v694
    %v696 = vsel %vm562, %v693, %v695
    %v697 = vsel %vm564, %v693, %v696
    %699 = vst.msk [vmem:[%s530 + $0x18] sm:$0x3] %vm567, %v697
    %700 = vrot.lane.b32.xlu0 %v672, 112
    %v701 = vpop.permute.xlu0 %700
    %703 = vst.msk [vmem:[#allocation2 + $0x1a] sm:$0x3] %vm567, %v701
    %704 = vrot.lane.b32.xlu0 %v697, 112
    %v705 = vpop.permute.xlu0 %704
    %707 = vst.msk [vmem:[%s530 + $0x1a] sm:$0x3] %vm567, %v705
    %708 = vrot.lane.b32.xlu0 %v672, 96
    %v709 = vpop.permute.xlu0 %708
    %711 = vst.msk [vmem:[#allocation2 + $0x1c] sm:$0x3] %vm567, %v709
    %712 = vrot.lane.b32.xlu0 %v697, 96
    %v713 = vpop.permute.xlu0 %712
    %715 = vst.msk [vmem:[%s530 + $0x1c] sm:$0x3] %vm567, %v713
    %716 = vrot.lane.b32.xlu0 %v672, 80
    %v717 = vpop.permute.xlu0 %716
    %719 = vst.msk [vmem:[#allocation2 + $0x1e] sm:$0x3] %vm567, %v717
    %720 = vrot.lane.b32.xlu0 %v697, 80
    %v721 = vpop.permute.xlu0 %720
    %723 = vst.msk [vmem:[%s530 + $0x1e] sm:$0x3] %vm567, %v721
    %724 = vrot.lane.b32.xlu0 %v672, 64
    %v725 = vpop.permute.xlu0 %724
    %727 = vst.msk [vmem:[#allocation2 + $0x20] sm:$0x3] %vm567, %v725
    %728 = vrot.lane.b32.xlu0 %v697, 64
    %v729 = vpop.permute.xlu0 %728
    %731 = vst.msk [vmem:[%s530 + $0x20] sm:$0x3] %vm567, %v729
    %732 = vrot.lane.b32.xlu0 %v672, 48
    %v733 = vpop.permute.xlu0 %732
    %735 = vst.msk [vmem:[#allocation2 + $0x22] sm:$0x3] %vm567, %v733
    %736 = vrot.lane.b32.xlu0 %v697, 48
    %v737 = vpop.permute.xlu0 %736
    %739 = vst.msk [vmem:[%s530 + $0x22] sm:$0x3] %vm567, %v737
    %740 = vrot.lane.b32.xlu0 %v672, 32
    %v741 = vpop.permute.xlu0 %740
    %743 = vst.msk [vmem:[#allocation2 + $0x24] sm:$0x3] %vm567, %v741
    %744 = vrot.lane.b32.xlu0 %v697, 32
    %v745 = vpop.permute.xlu0 %744
    %747 = vst.msk [vmem:[%s530 + $0x24] sm:$0x3] %vm567, %v745
    %748 = vrot.lane.b32.xlu0 %v672, 16
    %v749 = vpop.permute.xlu0 %748
    %751 = vst.msk [vmem:[#allocation2 + $0x26] sm:$0x3] %vm567, %v749
    %752 = vrot.lane.b32.xlu0 %v697, 16
    %v753 = vpop.permute.xlu0 %752
    %755 = vst.msk [vmem:[%s530 + $0x26] sm:$0x3] %vm567, %v753
    %s756 = sld [smem:[#allocation3]]
    %v757 = vld [vmem:[#allocation2] sm:$0xff]
    %v758 = vld [vmem:[#allocation2 + $0x8] sm:$0xff]
    %v759 = vld [vmem:[#allocation2 + $0x10] sm:$0xff]
    %v760 = vld [vmem:[#allocation2 + $0x18] sm:$0xff]
    %v761 = vld [vmem:[#allocation2 + $0x20] sm:$0xf]
    %v762 = vstv %s756
    %v763 = vmul.f32 %v762, %v757
    %v764 = vmul.f32 %v762, %v758
    %v765 = vmul.f32 %v762, %v759
    %v766 = vmul.f32 %v762, %v760
    %v767 = vmul.f32 %v762, %v761
    %s768 = sld [smem:[#allocation3 + $0x7]]
    %v769 = vld [vmem:[#allocation2 + $0x2] sm:$0xff]
    %v770 = vld [vmem:[#allocation2 + $0xa] sm:$0xff]
    %v771 = vld [vmem:[#allocation2 + $0x12] sm:$0xff]
    %v772 = vld [vmem:[#allocation2 + $0x1a] sm:$0xff]
    %v773 = vld [vmem:[#allocation2 + $0x22] sm:$0xf]
    %v774 = vstv %s768
    %v775 = vmul.f32 %v774, %v769
    %v776 = vmul.f32 %v774, %v770
    %v777 = vmul.f32 %v774, %v771
    %v778 = vmul.f32 %v774, %v772
    %v779 = vmul.f32 %v774, %v773
    %v780 = vadd.f32 %v763, %v775
    %v781 = vadd.f32 %v764, %v776
    %v782 = vadd.f32 %v765, %v777
    %v783 = vadd.f32 %v766, %v778
    %v784 = vadd.f32 %v767, %v779
    %s785 = sld [smem:[#allocation3 + $0xe]]
    %v786 = vld [vmem:[#allocation2 + $0x4] sm:$0xff]
    %v787 = vld [vmem:[#allocation2 + $0xc] sm:$0xff]
    %v788 = vld [vmem:[#allocation2 + $0x14] sm:$0xff]
    %v789 = vld [vmem:[#allocation2 + $0x1c] sm:$0xff]
    %v790 = vld [vmem:[#allocation2 + $0x24] sm:$0xf]
    %v791 = vstv %s785
    %v792 = vmul.f32 %v791, %v786
    %v793 = vmul.f32 %v791, %v787
    %v794 = vmul.f32 %v791, %v788
    %v795 = vmul.f32 %v791, %v789
    %v796 = vmul.f32 %v791, %v790
    %v797 = vadd.f32 %v780, %v792
    %v798 = vadd.f32 %v781, %v793
    %v799 = vadd.f32 %v782, %v794
    %v800 = vadd.f32 %v783, %v795
    %v801 = vadd.f32 %v784, %v796
    %s802 = sld [smem:[#allocation3 + $0x15]]
    %v803 = vld [vmem:[#allocation2 + $0x6] sm:$0xff]
    %v804 = vld [vmem:[#allocation2 + $0xe] sm:$0xff]
    %v805 = vld [vmem:[#allocation2 + $0x16] sm:$0xff]
    %v806 = vld [vmem:[#allocation2 + $0x1e] sm:$0xff]
    %v807 = vld [vmem:[#allocation2 + $0x26] sm:$0xf]
    %v808 = vstv %s802
    %v809 = vmul.f32 %v808, %v803
    %v810 = vmul.f32 %v808, %v804
    %v811 = vmul.f32 %v808, %v805
    %v812 = vmul.f32 %v808, %v806
    %v813 = vmul.f32 %v808, %v807
    %v814 = vadd.f32 %v797, %v809
    %v815 = vadd.f32 %v798, %v810
    %v816 = vadd.f32 %v799, %v811
    %v817 = vadd.f32 %v800, %v812
    %v818 = vadd.f32 %v801, %v813
    %s819 = sld [smem:[#allocation3 + $0x1c]]
    %v820 = vld [vmem:[#allocation2 + $0x8] sm:$0xff]
    %v821 = vld [vmem:[#allocation2 + $0x10] sm:$0xff]
    %v822 = vld [vmem:[#allocation2 + $0x18] sm:$0xff]
    %v823 = vld [vmem:[#allocation2 + $0x20] sm:$0xff]
    %v824 = vld [vmem:[#allocation2 + $0x28] sm:$0xf]
    %v825 = vstv %s819
    %v826 = vmul.f32 %v825, %v820
    %v827 = vmul.f32 %v825, %v821
    %v828 = vmul.f32 %v825, %v822
    %v829 = vmul.f32 %v825, %v823
    %v830 = vmul.f32 %v825, %v824
    %v831 = vadd.f32 %v814, %v826
    %v832 = vadd.f32 %v815, %v827
    %v833 = vadd.f32 %v816, %v828
    %v834 = vadd.f32 %v817, %v829
    %v835 = vadd.f32 %v818, %v830
    %s836 = sld [smem:[#allocation3 + $0x23]]
    %v837 = vld [vmem:[#allocation2 + $0xa] sm:$0xff]
    %v838 = vld [vmem:[#allocation2 + $0x12] sm:$0xff]
    %v839 = vld [vmem:[#allocation2 + $0x1a] sm:$0xff]
    %v840 = vld [vmem:[#allocation2 + $0x22] sm:$0xff]
    %v841 = vld [vmem:[#allocation2 + $0x2a] sm:$0xf]
    %v842 = vstv %s836
    %v843 = vmul.f32 %v842, %v837
    %v844 = vmul.f32 %v842, %v838
    %v845 = vmul.f32 %v842, %v839
    %v846 = vmul.f32 %v842, %v840
    %v847 = vmul.f32 %v842, %v841
    %v848 = vadd.f32 %v831, %v843
    %v849 = vadd.f32 %v832, %v844
    %v850 = vadd.f32 %v833, %v845
    %v851 = vadd.f32 %v834, %v846
    %v852 = vadd.f32 %v835, %v847
    %s853 = sld [smem:[#allocation3 + $0x2a]]
    %v854 = vld [vmem:[#allocation2 + $0xc] sm:$0xff]
    %v855 = vld [vmem:[#allocation2 + $0x14] sm:$0xff]
    %v856 = vld [vmem:[#allocation2 + $0x1c] sm:$0xff]
    %v857 = vld [vmem:[#allocation2 + $0x24] sm:$0xff]
    %v858 = vld [vmem:[#allocation2 + $0x2c] sm:$0xf]
    %v859 = vstv %s853
    %v860 = vmul.f32 %v859, %v854
    %v861 = vmul.f32 %v859, %v855
    %v862 = vmul.f32 %v859, %v856
    %v863 = vmul.f32 %v859, %v857
    %v864 = vmul.f32 %v859, %v858
    %v865 = vadd.f32 %v848, %v860
    %v866 = vadd.f32 %v849, %v861
    %v867 = vadd.f32 %v850, %v862
    %v868 = vadd.f32 %v851, %v863
    %v869 = vadd.f32 %v852, %v864
    %s870 = sld [smem:[#allocation3 + $0x31]]
    %v871 = vld [vmem:[%s530] sm:$0xff]
    %v872 = vld [vmem:[%s530 + $0x8] sm:$0xff]
    %v873 = vld [vmem:[%s530 + $0x10] sm:$0xff]
    %v874 = vld [vmem:[%s530 + $0x18] sm:$0xff]
    %v875 = vld [vmem:[%s530 + $0x20] sm:$0xf]
    %v876 = vstv %s870
    %v877 = vmul.f32 %v876, %v871
    %v878 = vmul.f32 %v876, %v872
    %v879 = vmul.f32 %v876, %v873
    %v880 = vmul.f32 %v876, %v874
    %v881 = vmul.f32 %v876, %v875
    %v882 = vadd.f32 %v865, %v877
    %v883 = vadd.f32 %v866, %v878
    %v884 = vadd.f32 %v867, %v879
    %v885 = vadd.f32 %v868, %v880
    %v886 = vadd.f32 %v869, %v881
    %s887 = sld [smem:[#allocation3 + $0x38]]
    %v888 = vld [vmem:[%s530 + $0x2] sm:$0xff]
    %v889 = vld [vmem:[%s530 + $0xa] sm:$0xff]
    %v890 = vld [vmem:[%s530 + $0x12] sm:$0xff]
    %v891 = vld [vmem:[%s530 + $0x1a] sm:$0xff]
    %v892 = vld [vmem:[%s530 + $0x22] sm:$0xf]
    %v893 = vstv %s887
    %v894 = vmul.f32 %v893, %v888
    %v895 = vmul.f32 %v893, %v889
    %v896 = vmul.f32 %v893, %v890
    %v897 = vmul.f32 %v893, %v891
    %v898 = vmul.f32 %v893, %v892
    %v899 = vadd.f32 %v882, %v894
    %v900 = vadd.f32 %v883, %v895
    %v901 = vadd.f32 %v884, %v896
    %v902 = vadd.f32 %v885, %v897
    %v903 = vadd.f32 %v886, %v898
    %s904 = sld [smem:[#allocation3 + $0x3f]]
    %v905 = vld [vmem:[%s530 + $0x4] sm:$0xff]
    %v906 = vld [vmem:[%s530 + $0xc] sm:$0xff]
    %v907 = vld [vmem:[%s530 + $0x14] sm:$0xff]
    %v908 = vld [vmem:[%s530 + $0x1c] sm:$0xff]
    %v909 = vld [vmem:[%s530 + $0x24] sm:$0xf]
    %v910 = vstv %s904
    %v911 = vmul.f32 %v910, %v905
    %v912 = vmul.f32 %v910, %v906
    %v913 = vmul.f32 %v910, %v907
    %v914 = vmul.f32 %v910, %v908
    %v915 = vmul.f32 %v910, %v909
    %v916 = vadd.f32 %v899, %v911
    %v917 = vadd.f32 %v900, %v912
    %v918 = vadd.f32 %v901, %v913
    %v919 = vadd.f32 %v902, %v914
    %v920 = vadd.f32 %v903, %v915
    %s921 = sld [smem:[#allocation3 + $0x46]]
    %v922 = vld [vmem:[%s530 + $0x6] sm:$0xff]
    %v923 = vld [vmem:[%s530 + $0xe] sm:$0xff]
    %v924 = vld [vmem:[%s530 + $0x16] sm:$0xff]
    %v925 = vld [vmem:[%s530 + $0x1e] sm:$0xff]
    %v926 = vld [vmem:[%s530 + $0x26] sm:$0xf]
    %v927 = vstv %s921
    %v928 = vmul.f32 %v927, %v922
    %v929 = vmul.f32 %v927, %v923
    %v930 = vmul.f32 %v927, %v924
    %v931 = vmul.f32 %v927, %v925
    %v932 = vmul.f32 %v927, %v926
    %v933 = vadd.f32 %v916, %v928
    %v934 = vadd.f32 %v917, %v929
    %v935 = vadd.f32 %v918, %v930
    %v936 = vadd.f32 %v919, %v931
    %v937 = vadd.f32 %v920, %v932
    %s938 = sld [smem:[#allocation3 + $0x4d]]
    %v939 = vld [vmem:[%s530 + $0x8] sm:$0xff]
    %v940 = vld [vmem:[%s530 + $0x10] sm:$0xff]
    %v941 = vld [vmem:[%s530 + $0x18] sm:$0xff]
    %v942 = vld [vmem:[%s530 + $0x20] sm:$0xff]
    %v943 = vld [vmem:[%s530 + $0x28] sm:$0xf]
    %v944 = vstv %s938
    %v945 = vmul.f32 %v944, %v939
    %v946 = vmul.f32 %v944, %v940
    %v947 = vmul.f32 %v944, %v941
    %v948 = vmul.f32 %v944, %v942
    %v949 = vmul.f32 %v944, %v943
    %v950 = vadd.f32 %v933, %v945
    %v951 = vadd.f32 %v934, %v946
    %v952 = vadd.f32 %v935, %v947
    %v953 = vadd.f32 %v936, %v948
    %v954 = vadd.f32 %v937, %v949
    %s955 = sld [smem:[#allocation3 + $0x54]]
    %v956 = vld [vmem:[%s530 + $0xa] sm:$0xff]
    %v957 = vld [vmem:[%s530 + $0x12] sm:$0xff]
    %v958 = vld [vmem:[%s530 + $0x1a] sm:$0xff]
    %v959 = vld [vmem:[%s530 + $0x22] sm:$0xff]
    %v960 = vld [vmem:[%s530 + $0x2a] sm:$0xf]
    %v961 = vstv %s955
    %v962 = vmul.f32 %v961, %v956
    %v963 = vmul.f32 %v961, %v957
    %v964 = vmul.f32 %v961, %v958
    %v965 = vmul.f32 %v961, %v959
    %v966 = vmul.f32 %v961, %v960
    %v967 = vadd.f32 %v950, %v962
    %v968 = vadd.f32 %v951, %v963
    %v969 = vadd.f32 %v952, %v964
    %v970 = vadd.f32 %v953, %v965
    %v971 = vadd.f32 %v954, %v966
    %s972 = sld [smem:[#allocation3 + $0x5b]]
    %v973 = vld [vmem:[%s530 + $0xc] sm:$0xff]
    %v974 = vld [vmem:[%s530 + $0x14] sm:$0xff]
    %v975 = vld [vmem:[%s530 + $0x1c] sm:$0xff]
    %v976 = vld [vmem:[%s530 + $0x24] sm:$0xff]
    %v977 = vld [vmem:[%s530 + $0x2c] sm:$0xf]
    %v978 = vstv %s972
    %v979 = vmul.f32 %v978, %v973
    %v980 = vmul.f32 %v978, %v974
    %v981 = vmul.f32 %v978, %v975
    %v982 = vmul.f32 %v978, %v976
    %v983 = vmul.f32 %v978, %v977
    %v984 = vadd.f32 %v967, %v979
    %v985 = vadd.f32 %v968, %v980
    %v986 = vadd.f32 %v969, %v981
    %v987 = vadd.f32 %v970, %v982
    %v988 = vadd.f32 %v971, %v983
    %v989 = vadd.f32 %v984, 0.0
    %v990 = vadd.f32 %v985, 0.0
    %v991 = vadd.f32 %v986, 0.0
    %v992 = vadd.f32 %v987, 0.0
    %v993 = vadd.f32 %v988, 0.0
    %s994 = sld [smem:[#allocation3 + $0x1]]
    %v995 = vstv %s994
    %v996 = vmul.f32 %v995, %v757
    %v997 = vmul.f32 %v995, %v758
    %v998 = vmul.f32 %v995, %v759
    %v999 = vmul.f32 %v995, %v760
    %v1000 = vmul.f32 %v995, %v761
    %s1001 = sld [smem:[#allocation3 + $0x8]]
    %v1002 = vstv %s1001
    %v1003 = vmul.f32 %v1002, %v769
    %v1004 = vmul.f32 %v1002, %v770
    %v1005 = vmul.f32 %v1002, %v771
    %v1006 = vmul.f32 %v1002, %v772
    %v1007 = vmul.f32 %v1002, %v773
    %v1008 = vadd.f32 %v996, %v1003
    %v1009 = vadd.f32 %v997, %v1004
    %v1010 = vadd.f32 %v998, %v1005
    %v1011 = vadd.f32 %v999, %v1006
    %v1012 = vadd.f32 %v1000, %v1007
    %s1013 = sld [smem:[#allocation3 + $0xf]]
    %v1014 = vstv %s1013
    %v1015 = vmul.f32 %v1014, %v786
    %v1016 = vmul.f32 %v1014, %v787
    %v1017 = vmul.f32 %v1014, %v788
    %v1018 = vmul.f32 %v1014, %v789
    %v1019 = vmul.f32 %v1014, %v790
    %v1020 = vadd.f32 %v1008, %v1015
    %v1021 = vadd.f32 %v1009, %v1016
    %v1022 = vadd.f32 %v1010, %v1017
    %v1023 = vadd.f32 %v1011, %v1018
    %v1024 = vadd.f32 %v1012, %v1019
    %s1025 = sld [smem:[#allocation3 + $0x16]]
    %v1026 = vstv %s1025
    %v1027 = vmul.f32 %v1026, %v803
    %v1028 = vmul.f32 %v1026, %v804
    %v1029 = vmul.f32 %v1026, %v805
    %v1030 = vmul.f32 %v1026, %v806
    %v1031 = vmul.f32 %v1026, %v807
    %v1032 = vadd.f32 %v1020, %v1027
    %v1033 = vadd.f32 %v1021, %v1028
    %v1034 = vadd.f32 %v1022, %v1029
    %v1035 = vadd.f32 %v1023, %v1030
    %v1036 = vadd.f32 %v1024, %v1031
    %s1037 = sld [smem:[#allocation3 + $0x1d]]
    %v1038 = vstv %s1037
    %v1039 = vmul.f32 %v1038, %v820
    %v1040 = vmul.f32 %v1038, %v821
    %v1041 = vmul.f32 %v1038, %v822
    %v1042 = vmul.f32 %v1038, %v823
    %v1043 = vmul.f32 %v1038, %v824
    %v1044 = vadd.f32 %v1032, %v1039
    %v1045 = vadd.f32 %v1033, %v1040
    %v1046 = vadd.f32 %v1034, %v1041
    %v1047 = vadd.f32 %v1035, %v1042
    %v1048 = vadd.f32 %v1036, %v1043
    %s1049 = sld [smem:[#allocation3 + $0x24]]
    %v1050 = vstv %s1049
    %v1051 = vmul.f32 %v1050, %v837
    %v1052 = vmul.f32 %v1050, %v838
    %v1053 = vmul.f32 %v1050, %v839
    %v1054 = vmul.f32 %v1050, %v840
    %v1055 = vmul.f32 %v1050, %v841
    %v1056 = vadd.f32 %v1044, %v1051
    %v1057 = vadd.f32 %v1045, %v1052
    %v1058 = vadd.f32 %v1046, %v1053
    %v1059 = vadd.f32 %v1047, %v1054
    %v1060 = vadd.f32 %v1048, %v1055
    %s1061 = sld [smem:[#allocation3 + $0x2b]]
    %v1062 = vstv %s1061
    %v1063 = vmul.f32 %v1062, %v854
    %v1064 = vmul.f32 %v1062, %v855
    %v1065 = vmul.f32 %v1062, %v856
    %v1066 = vmul.f32 %v1062, %v857
    %v1067 = vmul.f32 %v1062, %v858
    %v1068 = vadd.f32 %v1056, %v1063
    %v1069 = vadd.f32 %v1057, %v1064
    %v1070 = vadd.f32 %v1058, %v1065
    %v1071 = vadd.f32 %v1059, %v1066
    %v1072 = vadd.f32 %v1060, %v1067
    %s1073 = sld [smem:[#allocation3 + $0x32]]
    %v1074 = vstv %s1073
    %v1075 = vmul.f32 %v1074, %v871
    %v1076 = vmul.f32 %v1074, %v872
    %v1077 = vmul.f32 %v1074, %v873
    %v1078 = vmul.f32 %v1074, %v874
    %v1079 = vmul.f32 %v1074, %v875
    %v1080 = vadd.f32 %v1068, %v1075
    %v1081 = vadd.f32 %v1069, %v1076
    %v1082 = vadd.f32 %v1070, %v1077
    %v1083 = vadd.f32 %v1071, %v1078
    %v1084 = vadd.f32 %v1072, %v1079
    %s1085 = sld [smem:[#allocation3 + $0x39]]
    %v1086 = vstv %s1085
    %v1087 = vmul.f32 %v1086, %v888
    %v1088 = vmul.f32 %v1086, %v889
    %v1089 = vmul.f32 %v1086, %v890
    %v1090 = vmul.f32 %v1086, %v891
    %v1091 = vmul.f32 %v1086, %v892
    %v1092 = vadd.f32 %v1080, %v1087
    %v1093 = vadd.f32 %v1081, %v1088
    %v1094 = vadd.f32 %v1082, %v1089
    %v1095 = vadd.f32 %v1083, %v1090
    %v1096 = vadd.f32 %v1084, %v1091
    %s1097 = sld [smem:[#allocation3 + $0x40]]
    %v1098 = vstv %s1097
    %v1099 = vmul.f32 %v1098, %v905
    %v1100 = vmul.f32 %v1098, %v906
    %v1101 = vmul.f32 %v1098, %v907
    %v1102 = vmul.f32 %v1098, %v908
    %v1103 = vmul.f32 %v1098, %v909
    %v1104 = vadd.f32 %v1092, %v1099
    %v1105 = vadd.f32 %v1093, %v1100
    %v1106 = vadd.f32 %v1094, %v1101
    %v1107 = vadd.f32 %v1095, %v1102
    %v1108 = vadd.f32 %v1096, %v1103
    %s1109 = sld [smem:[#allocation3 + $0x47]]
    %v1110 = vstv %s1109
    %v1111 = vmul.f32 %v1110, %v922
    %v1112 = vmul.f32 %v1110, %v923
    %v1113 = vmul.f32 %v1110, %v924
    %v1114 = vmul.f32 %v1110, %v925
    %v1115 = vmul.f32 %v1110, %v926
    %v1116 = vadd.f32 %v1104, %v1111
    %v1117 = vadd.f32 %v1105, %v1112
    %v1118 = vadd.f32 %v1106, %v1113
    %v1119 = vadd.f32 %v1107, %v1114
    %v1120 = vadd.f32 %v1108, %v1115
    %s1121 = sld [smem:[#allocation3 + $0x4e]]
    %v1122 = vstv %s1121
    %v1123 = vmul.f32 %v1122, %v939
    %v1124 = vmul.f32 %v1122, %v940
    %v1125 = vmul.f32 %v1122, %v941
    %v1126 = vmul.f32 %v1122, %v942
    %v1127 = vmul.f32 %v1122, %v943
    %v1128 = vadd.f32 %v1116, %v1123
    %v1129 = vadd.f32 %v1117, %v1124
    %v1130 = vadd.f32 %v1118, %v1125
    %v1131 = vadd.f32 %v1119, %v1126
    %v1132 = vadd.f32 %v1120, %v1127
    %s1133 = sld [smem:[#allocation3 + $0x55]]
    %v1134 = vstv %s1133
    %v1135 = vmul.f32 %v1134, %v956
    %v1136 = vmul.f32 %v1134, %v957
    %v1137 = vmul.f32 %v1134, %v958
    %v1138 = vmul.f32 %v1134, %v959
    %v1139 = vmul.f32 %v1134, %v960
    %v1140 = vadd.f32 %v1128, %v1135
    %v1141 = vadd.f32 %v1129, %v1136
    %v1142 = vadd.f32 %v1130, %v1137
    %v1143 = vadd.f32 %v1131, %v1138
    %v1144 = vadd.f32 %v1132, %v1139
    %s1145 = sld [smem:[#allocation3 + $0x5c]]
    %v1146 = vstv %s1145
    %v1147 = vmul.f32 %v1146, %v973
    %v1148 = vmul.f32 %v1146, %v974
    %v1149 = vmul.f32 %v1146, %v975
    %v1150 = vmul.f32 %v1146, %v976
    %v1151 = vmul.f32 %v1146, %v977
    %v1152 = vadd.f32 %v1140, %v1147
    %v1153 = vadd.f32 %v1141, %v1148
    %v1154 = vadd.f32 %v1142, %v1149
    %v1155 = vadd.f32 %v1143, %v1150
    %v1156 = vadd.f32 %v1144, %v1151
    %1162 = vrot.lane.b32.xlu0 %v1152, 127
    %v1163 = vpop.permute.xlu0 %1162
    %1164 = vrot.lane.b32.xlu0 %v1153, 127
    %v1165 = vpop.permute.xlu0 %1164
    %1166 = vrot.lane.b32.xlu0 %v1154, 127
    %v1167 = vpop.permute.xlu0 %1166
    %1168 = vrot.lane.b32.xlu0 %v1155, 127
    %v1169 = vpop.permute.xlu0 %1168
    %1170 = vrot.lane.b32.xlu0 %v1156, 127
    %v1171 = vpop.permute.xlu0 %1170
    %v1172 = vrot.slane %v1163, 2
    %v1173 = vrot.slane %v1165, 2
    %v1174 = vrot.slane %v1167, 2
    %v1175 = vrot.slane %v1169, 2
    %v1176 = vrot.slane %v1171, 2
    %vm1177 = vcmask 1045504
    %v1178 = vsel %vm1177, %v1172, %v1173
    %vm1179 = vcmask 1039360
    %v1180 = vsel %vm1179, %v1163, %v1178
    %v1181 = vsel %vm1177, %v1173, %v1174
    %v1182 = vsel %vm1179, %v1165, %v1181
    %v1183 = vsel %vm1177, %v1174, %v1175
    %v1184 = vsel %vm1179, %v1167, %v1183
    %v1185 = vsel %vm1177, %v1175, %v1176
    %v1186 = vsel %vm1179, %v1169, %v1185
    %v1192 = vadd.f32 %v989, %v1180
    %v1193 = vadd.f32 %v990, %v1182
    %v1194 = vadd.f32 %v991, %v1184
    %v1195 = vadd.f32 %v992, %v1186
    %v1196 = vadd.f32 %v993, %v1171
    %s1197 = sld [smem:[#allocation3 + $0x2]]
    %v1198 = vstv %s1197
    %v1199 = vmul.f32 %v1198, %v757
    %v1200 = vmul.f32 %v1198, %v758
    %v1201 = vmul.f32 %v1198, %v759
    %v1202 = vmul.f32 %v1198, %v760
    %v1203 = vmul.f32 %v1198, %v761
    %s1204 = sld [smem:[#allocation3 + $0x9]]
    %v1205 = vstv %s1204
    %v1206 = vmul.f32 %v1205, %v769
    %v1207 = vmul.f32 %v1205, %v770
    %v1208 = vmul.f32 %v1205, %v771
    %v1209 = vmul.f32 %v1205, %v772
    %v1210 = vmul.f32 %v1205, %v773
    %v1211 = vadd.f32 %v1199, %v1206
    %v1212 = vadd.f32 %v1200, %v1207
    %v1213 = vadd.f32 %v1201, %v1208
    %v1214 = vadd.f32 %v1202, %v1209
    %v1215 = vadd.f32 %v1203, %v1210
    %s1216 = sld [smem:[#allocation3 + $0x10]]
    %v1217 = vstv %s1216
    %v1218 = vmul.f32 %v1217, %v786
    %v1219 = vmul.f32 %v1217, %v787
    %v1220 = vmul.f32 %v1217, %v788
    %v1221 = vmul.f32 %v1217, %v789
    %v1222 = vmul.f32 %v1217, %v790
    %v1223 = vadd.f32 %v1211, %v1218
    %v1224 = vadd.f32 %v1212, %v1219
    %v1225 = vadd.f32 %v1213, %v1220
    %v1226 = vadd.f32 %v1214, %v1221
    %v1227 = vadd.f32 %v1215, %v1222
    %s1228 = sld [smem:[#allocation3 + $0x17]]
    %v1229 = vstv %s1228
    %v1230 = vmul.f32 %v1229, %v803
    %v1231 = vmul.f32 %v1229, %v804
    %v1232 = vmul.f32 %v1229, %v805
    %v1233 = vmul.f32 %v1229, %v806
    %v1234 = vmul.f32 %v1229, %v807
    %v1235 = vadd.f32 %v1223, %v1230
    %v1236 = vadd.f32 %v1224, %v1231
    %v1237 = vadd.f32 %v1225, %v1232
    %v1238 = vadd.f32 %v1226, %v1233
    %v1239 = vadd.f32 %v1227, %v1234
    %s1240 = sld [smem:[#allocation3 + $0x1e]]
    %v1241 = vstv %s1240
    %v1242 = vmul.f32 %v1241, %v820
    %v1243 = vmul.f32 %v1241, %v821
    %v1244 = vmul.f32 %v1241, %v822
    %v1245 = vmul.f32 %v1241, %v823
    %v1246 = vmul.f32 %v1241, %v824
    %v1247 = vadd.f32 %v1235, %v1242
    %v1248 = vadd.f32 %v1236, %v1243
    %v1249 = vadd.f32 %v1237, %v1244
    %v1250 = vadd.f32 %v1238, %v1245
    %v1251 = vadd.f32 %v1239, %v1246
    %s1252 = sld [smem:[#allocation3 + $0x25]]
    %v1253 = vstv %s1252
    %v1254 = vmul.f32 %v1253, %v837
    %v1255 = vmul.f32 %v1253, %v838
    %v1256 = vmul.f32 %v1253, %v839
    %v1257 = vmul.f32 %v1253, %v840
    %v1258 = vmul.f32 %v1253, %v841
    %v1259 = vadd.f32 %v1247, %v1254
    %v1260 = vadd.f32 %v1248, %v1255
    %v1261 = vadd.f32 %v1249, %v1256
    %v1262 = vadd.f32 %v1250, %v1257
    %v1263 = vadd.f32 %v1251, %v1258
    %s1264 = sld [smem:[#allocation3 + $0x2c]]
    %v1265 = vstv %s1264
    %v1266 = vmul.f32 %v1265, %v854
    %v1267 = vmul.f32 %v1265, %v855
    %v1268 = vmul.f32 %v1265, %v856
    %v1269 = vmul.f32 %v1265, %v857
    %v1270 = vmul.f32 %v1265, %v858
    %v1271 = vadd.f32 %v1259, %v1266
    %v1272 = vadd.f32 %v1260, %v1267
    %v1273 = vadd.f32 %v1261, %v1268
    %v1274 = vadd.f32 %v1262, %v1269
    %v1275 = vadd.f32 %v1263, %v1270
    %s1276 = sld [smem:[#allocation3 + $0x33]]
    %v1277 = vstv %s1276
    %v1278 = vmul.f32 %v1277, %v871
    %v1279 = vmul.f32 %v1277, %v872
    %v1280 = vmul.f32 %v1277, %v873
    %v1281 = vmul.f32 %v1277, %v874
    %v1282 = vmul.f32 %v1277, %v875
    %v1283 = vadd.f32 %v1271, %v1278
    %v1284 = vadd.f32 %v1272, %v1279
    %v1285 = vadd.f32 %v1273, %v1280
    %v1286 = vadd.f32 %v1274, %v1281
    %v1287 = vadd.f32 %v1275, %v1282
    %s1288 = sld [smem:[#allocation3 + $0x3a]]
    %v1289 = vstv %s1288
    %v1290 = vmul.f32 %v1289, %v888
    %v1291 = vmul.f32 %v1289, %v889
    %v1292 = vmul.f32 %v1289, %v890
    %v1293 = vmul.f32 %v1289, %v891
    %v1294 = vmul.f32 %v1289, %v892
    %v1295 = vadd.f32 %v1283, %v1290
    %v1296 = vadd.f32 %v1284, %v1291
    %v1297 = vadd.f32 %v1285, %v1292
    %v1298 = vadd.f32 %v1286, %v1293
    %v1299 = vadd.f32 %v1287, %v1294
    %s1300 = sld [smem:[#allocation3 + $0x41]]
    %v1301 = vstv %s1300
    %v1302 = vmul.f32 %v1301, %v905
    %v1303 = vmul.f32 %v1301, %v906
    %v1304 = vmul.f32 %v1301, %v907
    %v1305 = vmul.f32 %v1301, %v908
    %v1306 = vmul.f32 %v1301, %v909
    %v1307 = vadd.f32 %v1295, %v1302
    %v1308 = vadd.f32 %v1296, %v1303
    %v1309 = vadd.f32 %v1297, %v1304
    %v1310 = vadd.f32 %v1298, %v1305
    %v1311 = vadd.f32 %v1299, %v1306
    %s1312 = sld [smem:[#allocation3 + $0x48]]
    %v1313 = vstv %s1312
    %v1314 = vmul.f32 %v1313, %v922
    %v1315 = vmul.f32 %v1313, %v923
    %v1316 = vmul.f32 %v1313, %v924
    %v1317 = vmul.f32 %v1313, %v925
    %v1318 = vmul.f32 %v1313, %v926
    %v1319 = vadd.f32 %v1307, %v1314
    %v1320 = vadd.f32 %v1308, %v1315
    %v1321 = vadd.f32 %v1309, %v1316
    %v1322 = vadd.f32 %v1310, %v1317
    %v1323 = vadd.f32 %v1311, %v1318
    %s1324 = sld [smem:[#allocation3 + $0x4f]]
    %v1325 = vstv %s1324
    %v1326 = vmul.f32 %v1325, %v939
    %v1327 = vmul.f32 %v1325, %v940
    %v1328 = vmul.f32 %v1325, %v941
    %v1329 = vmul.f32 %v1325, %v942
    %v1330 = vmul.f32 %v1325, %v943
    %v1331 = vadd.f32 %v1319, %v1326
    %v1332 = vadd.f32 %v1320, %v1327
    %v1333 = vadd.f32 %v1321, %v1328
    %v1334 = vadd.f32 %v1322, %v1329
    %v1335 = vadd.f32 %v1323, %v1330
    %s1336 = sld [smem:[#allocation3 + $0x56]]
    %v1337 = vstv %s1336
    %v1338 = vmul.f32 %v1337, %v956
    %v1339 = vmul.f32 %v1337, %v957
    %v1340 = vmul.f32 %v1337, %v958
    %v1341 = vmul.f32 %v1337, %v959
    %v1342 = vmul.f32 %v1337, %v960
    %v1343 = vadd.f32 %v1331, %v1338
    %v1344 = vadd.f32 %v1332, %v1339
    %v1345 = vadd.f32 %v1333, %v1340
    %v1346 = vadd.f32 %v1334, %v1341
    %v1347 = vadd.f32 %v1335, %v1342
    %s1348 = sld [smem:[#allocation3 + $0x5d]]
    %v1349 = vstv %s1348
    %v1350 = vmul.f32 %v1349, %v973
    %v1351 = vmul.f32 %v1349, %v974
    %v1352 = vmul.f32 %v1349, %v975
    %v1353 = vmul.f32 %v1349, %v976
    %v1354 = vmul.f32 %v1349, %v977
    %v1355 = vadd.f32 %v1343, %v1350
    %v1356 = vadd.f32 %v1344, %v1351
    %v1357 = vadd.f32 %v1345, %v1352
    %v1358 = vadd.f32 %v1346, %v1353
    %v1359 = vadd.f32 %v1347, %v1354
    %1365 = vrot.lane.b32.xlu0 %v1355, 126
    %v1366 = vpop.permute.xlu0 %1365
    %1367 = vrot.lane.b32.xlu0 %v1356, 126
    %v1368 = vpop.permute.xlu0 %1367
    %1369 = vrot.lane.b32.xlu0 %v1357, 126
    %v1370 = vpop.permute.xlu0 %1369
    %1371 = vrot.lane.b32.xlu0 %v1358, 126
    %v1372 = vpop.permute.xlu0 %1371
    %1373 = vrot.lane.b32.xlu0 %v1359, 126
    %v1374 = vpop.permute.xlu0 %1373
    %v1375 = vrot.slane %v1366, 2
    %v1376 = vrot.slane %v1368, 2
    %v1377 = vrot.slane %v1370, 2
    %v1378 = vrot.slane %v1372, 2
    %v1379 = vrot.slane %v1374, 2
    %v1380 = vsel %vm1177, %v1375, %v1376
    %vm1381 = vcmask 1031168
    %v1382 = vsel %vm1381, %v1366, %v1380
    %v1383 = vsel %vm1177, %v1376, %v1377
    %v1384 = vsel %vm1381, %v1368, %v1383
    %v1385 = vsel %vm1177, %v1377, %v1378
    %v1386 = vsel %vm1381, %v1370, %v1385
    %v1387 = vsel %vm1177, %v1378, %v1379
    %v1388 = vsel %vm1381, %v1372, %v1387
    %v1394 = vadd.f32 %v1192, %v1382
    %v1395 = vadd.f32 %v1193, %v1384
    %v1396 = vadd.f32 %v1194, %v1386
    %v1397 = vadd.f32 %v1195, %v1388
    %v1398 = vadd.f32 %v1196, %v1374
    %s1399 = sld [smem:[#allocation3 + $0x3]]
    %v1400 = vstv %s1399
    %v1401 = vmul.f32 %v1400, %v757
    %v1402 = vmul.f32 %v1400, %v758
    %v1403 = vmul.f32 %v1400, %v759
    %v1404 = vmul.f32 %v1400, %v760
    %v1405 = vmul.f32 %v1400, %v761
    %s1406 = sld [smem:[#allocation3 + $0xa]]
    %v1407 = vstv %s1406
    %v1408 = vmul.f32 %v1407, %v769
    %v1409 = vmul.f32 %v1407, %v770
    %v1410 = vmul.f32 %v1407, %v771
    %v1411 = vmul.f32 %v1407, %v772
    %v1412 = vmul.f32 %v1407, %v773
    %v1413 = vadd.f32 %v1401, %v1408
    %v1414 = vadd.f32 %v1402, %v1409
    %v1415 = vadd.f32 %v1403, %v1410
    %v1416 = vadd.f32 %v1404, %v1411
    %v1417 = vadd.f32 %v1405, %v1412
    %s1418 = sld [smem:[#allocation3 + $0x11]]
    %v1419 = vstv %s1418
    %v1420 = vmul.f32 %v1419, %v786
    %v1421 = vmul.f32 %v1419, %v787
    %v1422 = vmul.f32 %v1419, %v788
    %v1423 = vmul.f32 %v1419, %v789
    %v1424 = vmul.f32 %v1419, %v790
    %v1425 = vadd.f32 %v1413, %v1420
    %v1426 = vadd.f32 %v1414, %v1421
    %v1427 = vadd.f32 %v1415, %v1422
    %v1428 = vadd.f32 %v1416, %v1423
    %v1429 = vadd.f32 %v1417, %v1424
    %s1430 = sld [smem:[#allocation3 + $0x18]]
    %v1431 = vstv %s1430
    %v1432 = vmul.f32 %v1431, %v803
    %v1433 = vmul.f32 %v1431, %v804
    %v1434 = vmul.f32 %v1431, %v805
    %v1435 = vmul.f32 %v1431, %v806
    %v1436 = vmul.f32 %v1431, %v807
    %v1437 = vadd.f32 %v1425, %v1432
    %v1438 = vadd.f32 %v1426, %v1433
    %v1439 = vadd.f32 %v1427, %v1434
    %v1440 = vadd.f32 %v1428, %v1435
    %v1441 = vadd.f32 %v1429, %v1436
    %s1442 = sld [smem:[#allocation3 + $0x1f]]
    %v1443 = vstv %s1442
    %v1444 = vmul.f32 %v1443, %v820
    %v1445 = vmul.f32 %v1443, %v821
    %v1446 = vmul.f32 %v1443, %v822
    %v1447 = vmul.f32 %v1443, %v823
    %v1448 = vmul.f32 %v1443, %v824
    %v1449 = vadd.f32 %v1437, %v1444
    %v1450 = vadd.f32 %v1438, %v1445
    %v1451 = vadd.f32 %v1439, %v1446
    %v1452 = vadd.f32 %v1440, %v1447
    %v1453 = vadd.f32 %v1441, %v1448
    %s1454 = sld [smem:[#allocation3 + $0x26]]
    %v1455 = vstv %s1454
    %v1456 = vmul.f32 %v1455, %v837
    %v1457 = vmul.f32 %v1455, %v838
    %v1458 = vmul.f32 %v1455, %v839
    %v1459 = vmul.f32 %v1455, %v840
    %v1460 = vmul.f32 %v1455, %v841
    %v1461 = vadd.f32 %v1449, %v1456
    %v1462 = vadd.f32 %v1450, %v1457
    %v1463 = vadd.f32 %v1451, %v1458
    %v1464 = vadd.f32 %v1452, %v1459
    %v1465 = vadd.f32 %v1453, %v1460
    %s1466 = sld [smem:[#allocation3 + $0x2d]]
    %v1467 = vstv %s1466
    %v1468 = vmul.f32 %v1467, %v854
    %v1469 = vmul.f32 %v1467, %v855
    %v1470 = vmul.f32 %v1467, %v856
    %v1471 = vmul.f32 %v1467, %v857
    %v1472 = vmul.f32 %v1467, %v858
    %v1473 = vadd.f32 %v1461, %v1468
    %v1474 = vadd.f32 %v1462, %v1469
    %v1475 = vadd.f32 %v1463, %v1470
    %v1476 = vadd.f32 %v1464, %v1471
    %v1477 = vadd.f32 %v1465, %v1472
    %s1478 = sld [smem:[#allocation3 + $0x34]]
    %v1479 = vstv %s1478
    %v1480 = vmul.f32 %v1479, %v871
    %v1481 = vmul.f32 %v1479, %v872
    %v1482 = vmul.f32 %v1479, %v873
    %v1483 = vmul.f32 %v1479, %v874
    %v1484 = vmul.f32 %v1479, %v875
    %v1485 = vadd.f32 %v1473, %v1480
    %v1486 = vadd.f32 %v1474, %v1481
    %v1487 = vadd.f32 %v1475, %v1482
    %v1488 = vadd.f32 %v1476, %v1483
    %v1489 = vadd.f32 %v1477, %v1484
    %s1490 = sld [smem:[#allocation3 + $0x3b]]
    %v1491 = vstv %s1490
    %v1492 = vmul.f32 %v1491, %v888
    %v1493 = vmul.f32 %v1491, %v889
    %v1494 = vmul.f32 %v1491, %v890
    %v1495 = vmul.f32 %v1491, %v891
    %v1496 = vmul.f32 %v1491, %v892
    %v1497 = vadd.f32 %v1485, %v1492
    %v1498 = vadd.f32 %v1486, %v1493
    %v1499 = vadd.f32 %v1487, %v1494
    %v1500 = vadd.f32 %v1488, %v1495
    %v1501 = vadd.f32 %v1489, %v1496
    %s1502 = sld [smem:[#allocation3 + $0x42]]
    %v1503 = vstv %s1502
    %v1504 = vmul.f32 %v1503, %v905
    %v1505 = vmul.f32 %v1503, %v906
    %v1506 = vmul.f32 %v1503, %v907
    %v1507 = vmul.f32 %v1503, %v908
    %v1508 = vmul.f32 %v1503, %v909
    %v1509 = vadd.f32 %v1497, %v1504
    %v1510 = vadd.f32 %v1498, %v1505
    %v1511 = vadd.f32 %v1499, %v1506
    %v1512 = vadd.f32 %v1500, %v1507
    %v1513 = vadd.f32 %v1501, %v1508
    %s1514 = sld [smem:[#allocation3 + $0x49]]
    %v1515 = vstv %s1514
    %v1516 = vmul.f32 %v1515, %v922
    %v1517 = vmul.f32 %v1515, %v923
    %v1518 = vmul.f32 %v1515, %v924
    %v1519 = vmul.f32 %v1515, %v925
    %v1520 = vmul.f32 %v1515, %v926
    %v1521 = vadd.f32 %v1509, %v1516
    %v1522 = vadd.f32 %v1510, %v1517
    %v1523 = vadd.f32 %v1511, %v1518
    %v1524 = vadd.f32 %v1512, %v1519
    %v1525 = vadd.f32 %v1513, %v1520
    %s1526 = sld [smem:[#allocation3 + $0x50]]
    %v1527 = vstv %s1526
    %v1528 = vmul.f32 %v1527, %v939
    %v1529 = vmul.f32 %v1527, %v940
    %v1530 = vmul.f32 %v1527, %v941
    %v1531 = vmul.f32 %v1527, %v942
    %v1532 = vmul.f32 %v1527, %v943
    %v1533 = vadd.f32 %v1521, %v1528
    %v1534 = vadd.f32 %v1522, %v1529
    %v1535 = vadd.f32 %v1523, %v1530
    %v1536 = vadd.f32 %v1524, %v1531
    %v1537 = vadd.f32 %v1525, %v1532
    %s1538 = sld [smem:[#allocation3 + $0x57]]
    %v1539 = vstv %s1538
    %v1540 = vmul.f32 %v1539, %v956
    %v1541 = vmul.f32 %v1539, %v957
    %v1542 = vmul.f32 %v1539, %v958
    %v1543 = vmul.f32 %v1539, %v959
    %v1544 = vmul.f32 %v1539, %v960
    %v1545 = vadd.f32 %v1533, %v1540
    %v1546 = vadd.f32 %v1534, %v1541
    %v1547 = vadd.f32 %v1535, %v1542
    %v1548 = vadd.f32 %v1536, %v1543
    %v1549 = vadd.f32 %v1537, %v1544
    %s1550 = sld [smem:[#allocation3 + $0x5e]]
    %v1551 = vstv %s1550
    %v1552 = vmul.f32 %v1551, %v973
    %v1553 = vmul.f32 %v1551, %v974
    %v1554 = vmul.f32 %v1551, %v975
    %v1555 = vmul.f32 %v1551, %v976
    %v1556 = vmul.f32 %v1551, %v977
    %v1557 = vadd.f32 %v1545, %v1552
    %v1558 = vadd.f32 %v1546, %v1553
    %v1559 = vadd.f32 %v1547, %v1554
    %v1560 = vadd.f32 %v1548, %v1555
    %v1561 = vadd.f32 %v1549, %v1556
    %1567 = vrot.lane.b32.xlu0 %v1557, 125
    %v1568 = vpop.permute.xlu0 %1567
    %1569 = vrot.lane.b32.xlu0 %v1558, 125
    %v1570 = vpop.permute.xlu0 %1569
    %1571 = vrot.lane.b32.xlu0 %v1559, 125
    %v1572 = vpop.permute.xlu0 %1571
    %1573 = vrot.lane.b32.xlu0 %v1560, 125
    %v1574 = vpop.permute.xlu0 %1573
    %1575 = vrot.lane.b32.xlu0 %v1561, 125
    %v1576 = vpop.permute.xlu0 %1575
    %v1577 = vrot.slane %v1568, 2
    %v1578 = vrot.slane %v1570, 2
    %v1579 = vrot.slane %v1572, 2
    %v1580 = vrot.slane %v1574, 2
    %v1581 = vrot.slane %v1576, 2
    %v1582 = vsel %vm1177, %v1577, %v1578
    %vm1583 = vcmask 1022976
    %v1584 = vsel %vm1583, %v1568, %v1582
    %v1585 = vsel %vm1177, %v1578, %v1579
    %v1586 = vsel %vm1583, %v1570, %v1585
    %v1587 = vsel %vm1177, %v1579, %v1580
    %v1588 = vsel %vm1583, %v1572, %v1587
    %v1589 = vsel %vm1177, %v1580, %v1581
    %v1590 = vsel %vm1583, %v1574, %v1589
    %v1596 = vadd.f32 %v1394, %v1584
    %v1597 = vadd.f32 %v1395, %v1586
    %v1598 = vadd.f32 %v1396, %v1588
    %v1599 = vadd.f32 %v1397, %v1590
    %v1600 = vadd.f32 %v1398, %v1576
    %s1601 = sld [smem:[#allocation3 + $0x4]]
    %v1602 = vstv %s1601
    %v1603 = vmul.f32 %v1602, %v757
    %v1604 = vmul.f32 %v1602, %v758
    %v1605 = vmul.f32 %v1602, %v759
    %v1606 = vmul.f32 %v1602, %v760
    %v1607 = vmul.f32 %v1602, %v761
    %s1608 = sld [smem:[#allocation3 + $0xb]]
    %v1609 = vstv %s1608
    %v1610 = vmul.f32 %v1609, %v769
    %v1611 = vmul.f32 %v1609, %v770
    %v1612 = vmul.f32 %v1609, %v771
    %v1613 = vmul.f32 %v1609, %v772
    %v1614 = vmul.f32 %v1609, %v773
    %v1615 = vadd.f32 %v1603, %v1610
    %v1616 = vadd.f32 %v1604, %v1611
    %v1617 = vadd.f32 %v1605, %v1612
    %v1618 = vadd.f32 %v1606, %v1613
    %v1619 = vadd.f32 %v1607, %v1614
    %s1620 = sld [smem:[#allocation3 + $0x12]]
    %v1621 = vstv %s1620
    %v1622 = vmul.f32 %v1621, %v786
    %v1623 = vmul.f32 %v1621, %v787
    %v1624 = vmul.f32 %v1621, %v788
    %v1625 = vmul.f32 %v1621, %v789
    %v1626 = vmul.f32 %v1621, %v790
    %v1627 = vadd.f32 %v1615, %v1622
    %v1628 = vadd.f32 %v1616, %v1623
    %v1629 = vadd.f32 %v1617, %v1624
    %v1630 = vadd.f32 %v1618, %v1625
    %v1631 = vadd.f32 %v1619, %v1626
    %s1632 = sld [smem:[#allocation3 + $0x19]]
    %v1633 = vstv %s1632
    %v1634 = vmul.f32 %v1633, %v803
    %v1635 = vmul.f32 %v1633, %v804
    %v1636 = vmul.f32 %v1633, %v805
    %v1637 = vmul.f32 %v1633, %v806
    %v1638 = vmul.f32 %v1633, %v807
    %v1639 = vadd.f32 %v1627, %v1634
    %v1640 = vadd.f32 %v1628, %v1635
    %v1641 = vadd.f32 %v1629, %v1636
    %v1642 = vadd.f32 %v1630, %v1637
    %v1643 = vadd.f32 %v1631, %v1638
    %s1644 = sld [smem:[#allocation3 + $0x20]]
    %v1645 = vstv %s1644
    %v1646 = vmul.f32 %v1645, %v820
    %v1647 = vmul.f32 %v1645, %v821
    %v1648 = vmul.f32 %v1645, %v822
    %v1649 = vmul.f32 %v1645, %v823
    %v1650 = vmul.f32 %v1645, %v824
    %v1651 = vadd.f32 %v1639, %v1646
    %v1652 = vadd.f32 %v1640, %v1647
    %v1653 = vadd.f32 %v1641, %v1648
    %v1654 = vadd.f32 %v1642, %v1649
    %v1655 = vadd.f32 %v1643, %v1650
    %s1656 = sld [smem:[#allocation3 + $0x27]]
    %v1657 = vstv %s1656
    %v1658 = vmul.f32 %v1657, %v837
    %v1659 = vmul.f32 %v1657, %v838
    %v1660 = vmul.f32 %v1657, %v839
    %v1661 = vmul.f32 %v1657, %v840
    %v1662 = vmul.f32 %v1657, %v841
    %v1663 = vadd.f32 %v1651, %v1658
    %v1664 = vadd.f32 %v1652, %v1659
    %v1665 = vadd.f32 %v1653, %v1660
    %v1666 = vadd.f32 %v1654, %v1661
    %v1667 = vadd.f32 %v1655, %v1662
    %s1668 = sld [smem:[#allocation3 + $0x2e]]
    %v1669 = vstv %s1668
    %v1670 = vmul.f32 %v1669, %v854
    %v1671 = vmul.f32 %v1669, %v855
    %v1672 = vmul.f32 %v1669, %v856
    %v1673 = vmul.f32 %v1669, %v857
    %v1674 = vmul.f32 %v1669, %v858
    %v1675 = vadd.f32 %v1663, %v1670
    %v1676 = vadd.f32 %v1664, %v1671
    %v1677 = vadd.f32 %v1665, %v1672
    %v1678 = vadd.f32 %v1666, %v1673
    %v1679 = vadd.f32 %v1667, %v1674
    %s1680 = sld [smem:[#allocation3 + $0x35]]
    %v1681 = vstv %s1680
    %v1682 = vmul.f32 %v1681, %v871
    %v1683 = vmul.f32 %v1681, %v872
    %v1684 = vmul.f32 %v1681, %v873
    %v1685 = vmul.f32 %v1681, %v874
    %v1686 = vmul.f32 %v1681, %v875
    %v1687 = vadd.f32 %v1675, %v1682
    %v1688 = vadd.f32 %v1676, %v1683
    %v1689 = vadd.f32 %v1677, %v1684
    %v1690 = vadd.f32 %v1678, %v1685
    %v1691 = vadd.f32 %v1679, %v1686
    %s1692 = sld [smem:[#allocation3 + $0x3c]]
    %v1693 = vstv %s1692
    %v1694 = vmul.f32 %v1693, %v888
    %v1695 = vmul.f32 %v1693, %v889
    %v1696 = vmul.f32 %v1693, %v890
    %v1697 = vmul.f32 %v1693, %v891
    %v1698 = vmul.f32 %v1693, %v892
    %v1699 = vadd.f32 %v1687, %v1694
    %v1700 = vadd.f32 %v1688, %v1695
    %v1701 = vadd.f32 %v1689, %v1696
    %v1702 = vadd.f32 %v1690, %v1697
    %v1703 = vadd.f32 %v1691, %v1698
    %s1704 = sld [smem:[#allocation3 + $0x43]]
    %v1705 = vstv %s1704
    %v1706 = vmul.f32 %v1705, %v905
    %v1707 = vmul.f32 %v1705, %v906
    %v1708 = vmul.f32 %v1705, %v907
    %v1709 = vmul.f32 %v1705, %v908
    %v1710 = vmul.f32 %v1705, %v909
    %v1711 = vadd.f32 %v1699, %v1706
    %v1712 = vadd.f32 %v1700, %v1707
    %v1713 = vadd.f32 %v1701, %v1708
    %v1714 = vadd.f32 %v1702, %v1709
    %v1715 = vadd.f32 %v1703, %v1710
    %s1716 = sld [smem:[#allocation3 + $0x4a]]
    %v1717 = vstv %s1716
    %v1718 = vmul.f32 %v1717, %v922
    %v1719 = vmul.f32 %v1717, %v923
    %v1720 = vmul.f32 %v1717, %v924
    %v1721 = vmul.f32 %v1717, %v925
    %v1722 = vmul.f32 %v1717, %v926
    %v1723 = vadd.f32 %v1711, %v1718
    %v1724 = vadd.f32 %v1712, %v1719
    %v1725 = vadd.f32 %v1713, %v1720
    %v1726 = vadd.f32 %v1714, %v1721
    %v1727 = vadd.f32 %v1715, %v1722
    %s1728 = sld [smem:[#allocation3 + $0x51]]
    %v1729 = vstv %s1728
    %v1730 = vmul.f32 %v1729, %v939
    %v1731 = vmul.f32 %v1729, %v940
    %v1732 = vmul.f32 %v1729, %v941
    %v1733 = vmul.f32 %v1729, %v942
    %v1734 = vmul.f32 %v1729, %v943
    %v1735 = vadd.f32 %v1723, %v1730
    %v1736 = vadd.f32 %v1724, %v1731
    %v1737 = vadd.f32 %v1725, %v1732
    %v1738 = vadd.f32 %v1726, %v1733
    %v1739 = vadd.f32 %v1727, %v1734
    %s1740 = sld [smem:[#allocation3 + $0x58]]
    %v1741 = vstv %s1740
    %v1742 = vmul.f32 %v1741, %v956
    %v1743 = vmul.f32 %v1741, %v957
    %v1744 = vmul.f32 %v1741, %v958
    %v1745 = vmul.f32 %v1741, %v959
    %v1746 = vmul.f32 %v1741, %v960
    %v1747 = vadd.f32 %v1735, %v1742
    %v1748 = vadd.f32 %v1736, %v1743
    %v1749 = vadd.f32 %v1737, %v1744
    %v1750 = vadd.f32 %v1738, %v1745
    %v1751 = vadd.f32 %v1739, %v1746
    %s1752 = sld [smem:[#allocation3 + $0x5f]]
    %v1753 = vstv %s1752
    %v1754 = vmul.f32 %v1753, %v973
    %v1755 = vmul.f32 %v1753, %v974
    %v1756 = vmul.f32 %v1753, %v975
    %v1757 = vmul.f32 %v1753, %v976
    %v1758 = vmul.f32 %v1753, %v977
    %v1759 = vadd.f32 %v1747, %v1754
    %v1760 = vadd.f32 %v1748, %v1755
    %v1761 = vadd.f32 %v1749, %v1756
    %v1762 = vadd.f32 %v1750, %v1757
    %v1763 = vadd.f32 %v1751, %v1758
    %1769 = vrot.lane.b32.xlu0 %v1759, 124
    %v1770 = vpop.permute.xlu0 %1769
    %1771 = vrot.lane.b32.xlu0 %v1760, 124
    %v1772 = vpop.permute.xlu0 %1771
    %1773 = vrot.lane.b32.xlu0 %v1761, 124
    %v1774 = vpop.permute.xlu0 %1773
    %1775 = vrot.lane.b32.xlu0 %v1762, 124
    %v1776 = vpop.permute.xlu0 %1775
    %1777 = vrot.lane.b32.xlu0 %v1763, 124
    %v1778 = vpop.permute.xlu0 %1777
    %v1779 = vrot.slane %v1770, 2
    %v1780 = vrot.slane %v1772, 2
    %v1781 = vrot.slane %v1774, 2
    %v1782 = vrot.slane %v1776, 2
    %v1783 = vrot.slane %v1778, 2
    %v1784 = vsel %vm1177, %v1779, %v1780
    %vm1785 = vcmask 1014784
    %v1786 = vsel %vm1785, %v1770, %v1784
    %v1787 = vsel %vm1177, %v1780, %v1781
    %v1788 = vsel %vm1785, %v1772, %v1787
    %v1789 = vsel %vm1177, %v1781, %v1782
    %v1790 = vsel %vm1785, %v1774, %v1789
    %v1791 = vsel %vm1177, %v1782, %v1783
    %v1792 = vsel %vm1785, %v1776, %v1791
    %v1793 = vsel %vm1785, %v1778, %v1783
    %v1799 = vadd.f32 %v1596, %v1786
    %v1800 = vadd.f32 %v1597, %v1788
    %v1801 = vadd.f32 %v1598, %v1790
    %v1802 = vadd.f32 %v1599, %v1792
    %v1803 = vadd.f32 %v1600, %v1793
    %s1804 = sld [smem:[#allocation3 + $0x5]]
    %v1805 = vstv %s1804
    %v1806 = vmul.f32 %v1805, %v757
    %v1807 = vmul.f32 %v1805, %v758
    %v1808 = vmul.f32 %v1805, %v759
    %v1809 = vmul.f32 %v1805, %v760
    %v1810 = vmul.f32 %v1805, %v761
    %s1811 = sld [smem:[#allocation3 + $0xc]]
    %v1812 = vstv %s1811
    %v1813 = vmul.f32 %v1812, %v769
    %v1814 = vmul.f32 %v1812, %v770
    %v1815 = vmul.f32 %v1812, %v771
    %v1816 = vmul.f32 %v1812, %v772
    %v1817 = vmul.f32 %v1812, %v773
    %v1818 = vadd.f32 %v1806, %v1813
    %v1819 = vadd.f32 %v1807, %v1814
    %v1820 = vadd.f32 %v1808, %v1815
    %v1821 = vadd.f32 %v1809, %v1816
    %v1822 = vadd.f32 %v1810, %v1817
    %s1823 = sld [smem:[#allocation3 + $0x13]]
    %v1824 = vstv %s1823
    %v1825 = vmul.f32 %v1824, %v786
    %v1826 = vmul.f32 %v1824, %v787
    %v1827 = vmul.f32 %v1824, %v788
    %v1828 = vmul.f32 %v1824, %v789
    %v1829 = vmul.f32 %v1824, %v790
    %v1830 = vadd.f32 %v1818, %v1825
    %v1831 = vadd.f32 %v1819, %v1826
    %v1832 = vadd.f32 %v1820, %v1827
    %v1833 = vadd.f32 %v1821, %v1828
    %v1834 = vadd.f32 %v1822, %v1829
    %s1835 = sld [smem:[#allocation3 + $0x1a]]
    %v1836 = vstv %s1835
    %v1837 = vmul.f32 %v1836, %v803
    %v1838 = vmul.f32 %v1836, %v804
    %v1839 = vmul.f32 %v1836, %v805
    %v1840 = vmul.f32 %v1836, %v806
    %v1841 = vmul.f32 %v1836, %v807
    %v1842 = vadd.f32 %v1830, %v1837
    %v1843 = vadd.f32 %v1831, %v1838
    %v1844 = vadd.f32 %v1832, %v1839
    %v1845 = vadd.f32 %v1833, %v1840
    %v1846 = vadd.f32 %v1834, %v1841
    %s1847 = sld [smem:[#allocation3 + $0x21]]
    %v1848 = vstv %s1847
    %v1849 = vmul.f32 %v1848, %v820
    %v1850 = vmul.f32 %v1848, %v821
    %v1851 = vmul.f32 %v1848, %v822
    %v1852 = vmul.f32 %v1848, %v823
    %v1853 = vmul.f32 %v1848, %v824
    %v1854 = vadd.f32 %v1842, %v1849
    %v1855 = vadd.f32 %v1843, %v1850
    %v1856 = vadd.f32 %v1844, %v1851
    %v1857 = vadd.f32 %v1845, %v1852
    %v1858 = vadd.f32 %v1846, %v1853
    %s1859 = sld [smem:[#allocation3 + $0x28]]
    %v1860 = vstv %s1859
    %v1861 = vmul.f32 %v1860, %v837
    %v1862 = vmul.f32 %v1860, %v838
    %v1863 = vmul.f32 %v1860, %v839
    %v1864 = vmul.f32 %v1860, %v840
    %v1865 = vmul.f32 %v1860, %v841
    %v1866 = vadd.f32 %v1854, %v1861
    %v1867 = vadd.f32 %v1855, %v1862
    %v1868 = vadd.f32 %v1856, %v1863
    %v1869 = vadd.f32 %v1857, %v1864
    %v1870 = vadd.f32 %v1858, %v1865
    %s1871 = sld [smem:[#allocation3 + $0x2f]]
    %v1872 = vstv %s1871
    %v1873 = vmul.f32 %v1872, %v854
    %v1874 = vmul.f32 %v1872, %v855
    %v1875 = vmul.f32 %v1872, %v856
    %v1876 = vmul.f32 %v1872, %v857
    %v1877 = vmul.f32 %v1872, %v858
    %v1878 = vadd.f32 %v1866, %v1873
    %v1879 = vadd.f32 %v1867, %v1874
    %v1880 = vadd.f32 %v1868, %v1875
    %v1881 = vadd.f32 %v1869, %v1876
    %v1882 = vadd.f32 %v1870, %v1877
    %s1883 = sld [smem:[#allocation3 + $0x36]]
    %v1884 = vstv %s1883
    %v1885 = vmul.f32 %v1884, %v871
    %v1886 = vmul.f32 %v1884, %v872
    %v1887 = vmul.f32 %v1884, %v873
    %v1888 = vmul.f32 %v1884, %v874
    %v1889 = vmul.f32 %v1884, %v875
    %v1890 = vadd.f32 %v1878, %v1885
    %v1891 = vadd.f32 %v1879, %v1886
    %v1892 = vadd.f32 %v1880, %v1887
    %v1893 = vadd.f32 %v1881, %v1888
    %v1894 = vadd.f32 %v1882, %v1889
    %s1895 = sld [smem:[#allocation3 + $0x3d]]
    %v1896 = vstv %s1895
    %v1897 = vmul.f32 %v1896, %v888
    %v1898 = vmul.f32 %v1896, %v889
    %v1899 = vmul.f32 %v1896, %v890
    %v1900 = vmul.f32 %v1896, %v891
    %v1901 = vmul.f32 %v1896, %v892
    %v1902 = vadd.f32 %v1890, %v1897
    %v1903 = vadd.f32 %v1891, %v1898
    %v1904 = vadd.f32 %v1892, %v1899
    %v1905 = vadd.f32 %v1893, %v1900
    %v1906 = vadd.f32 %v1894, %v1901
    %s1907 = sld [smem:[#allocation3 + $0x44]]
    %v1908 = vstv %s1907
    %v1909 = vmul.f32 %v1908, %v905
    %v1910 = vmul.f32 %v1908, %v906
    %v1911 = vmul.f32 %v1908, %v907
    %v1912 = vmul.f32 %v1908, %v908
    %v1913 = vmul.f32 %v1908, %v909
    %v1914 = vadd.f32 %v1902, %v1909
    %v1915 = vadd.f32 %v1903, %v1910
    %v1916 = vadd.f32 %v1904, %v1911
    %v1917 = vadd.f32 %v1905, %v1912
    %v1918 = vadd.f32 %v1906, %v1913
    %s1919 = sld [smem:[#allocation3 + $0x4b]]
    %v1920 = vstv %s1919
    %v1921 = vmul.f32 %v1920, %v922
    %v1922 = vmul.f32 %v1920, %v923
    %v1923 = vmul.f32 %v1920, %v924
    %v1924 = vmul.f32 %v1920, %v925
    %v1925 = vmul.f32 %v1920, %v926
    %v1926 = vadd.f32 %v1914, %v1921
    %v1927 = vadd.f32 %v1915, %v1922
    %v1928 = vadd.f32 %v1916, %v1923
    %v1929 = vadd.f32 %v1917, %v1924
    %v1930 = vadd.f32 %v1918, %v1925
    %s1931 = sld [smem:[#allocation3 + $0x52]]
    %v1932 = vstv %s1931
    %v1933 = vmul.f32 %v1932, %v939
    %v1934 = vmul.f32 %v1932, %v940
    %v1935 = vmul.f32 %v1932, %v941
    %v1936 = vmul.f32 %v1932, %v942
    %v1937 = vmul.f32 %v1932, %v943
    %v1938 = vadd.f32 %v1926, %v1933
    %v1939 = vadd.f32 %v1927, %v1934
    %v1940 = vadd.f32 %v1928, %v1935
    %v1941 = vadd.f32 %v1929, %v1936
    %v1942 = vadd.f32 %v1930, %v1937
    %s1943 = sld [smem:[#allocation3 + $0x59]]
    %v1944 = vstv %s1943
    %v1945 = vmul.f32 %v1944, %v956
    %v1946 = vmul.f32 %v1944, %v957
    %v1947 = vmul.f32 %v1944, %v958
    %v1948 = vmul.f32 %v1944, %v959
    %v1949 = vmul.f32 %v1944, %v960
    %v1950 = vadd.f32 %v1938, %v1945
    %v1951 = vadd.f32 %v1939, %v1946
    %v1952 = vadd.f32 %v1940, %v1947
    %v1953 = vadd.f32 %v1941, %v1948
    %v1954 = vadd.f32 %v1942, %v1949
    %s1955 = sld [smem:[#allocation3 + $0x60]]
    %v1956 = vstv %s1955
    %v1957 = vmul.f32 %v1956, %v973
    %v1958 = vmul.f32 %v1956, %v974
    %v1959 = vmul.f32 %v1956, %v975
    %v1960 = vmul.f32 %v1956, %v976
    %v1961 = vmul.f32 %v1956, %v977
    %v1962 = vadd.f32 %v1950, %v1957
    %v1963 = vadd.f32 %v1951, %v1958
    %v1964 = vadd.f32 %v1952, %v1959
    %v1965 = vadd.f32 %v1953, %v1960
    %v1966 = vadd.f32 %v1954, %v1961
    %1972 = vrot.lane.b32.xlu0 %v1962, 123
    %v1973 = vpop.permute.xlu0 %1972
    %1974 = vrot.lane.b32.xlu0 %v1963, 123
    %v1975 = vpop.permute.xlu0 %1974
    %1976 = vrot.lane.b32.xlu0 %v1964, 123
    %v1977 = vpop.permute.xlu0 %1976
    %1978 = vrot.lane.b32.xlu0 %v1965, 123
    %v1979 = vpop.permute.xlu0 %1978
    %1980 = vrot.lane.b32.xlu0 %v1966, 123
    %v1981 = vpop.permute.xlu0 %1980
    %v1982 = vrot.slane %v1973, 2
    %v1983 = vrot.slane %v1975, 2
    %v1984 = vrot.slane %v1977, 2
    %v1985 = vrot.slane %v1979, 2
    %v1986 = vrot.slane %v1981, 2
    %v1987 = vsel %vm1177, %v1982, %v1983
    %vm1988 = vcmask 1006592
    %v1989 = vsel %vm1988, %v1973, %v1987
    %v1990 = vsel %vm1177, %v1983, %v1984
    %v1991 = vsel %vm1988, %v1975, %v1990
    %v1992 = vsel %vm1177, %v1984, %v1985
    %v1993 = vsel %vm1988, %v1977, %v1992
    %v1994 = vsel %vm1177, %v1985, %v1986
    %v1995 = vsel %vm1988, %v1979, %v1994
    %v1996 = vsel %vm1988, %v1981, %v1986
    %v2002 = vadd.f32 %v1799, %v1989
    %v2003 = vadd.f32 %v1800, %v1991
    %v2004 = vadd.f32 %v1801, %v1993
    %v2005 = vadd.f32 %v1802, %v1995
    %v2006 = vadd.f32 %v1803, %v1996
    %s2007 = sld [smem:[#allocation3 + $0x6]]
    %v2008 = vstv %s2007
    %v2009 = vmul.f32 %v2008, %v757
    %v2010 = vmul.f32 %v2008, %v758
    %v2011 = vmul.f32 %v2008, %v759
    %v2012 = vmul.f32 %v2008, %v760
    %v2013 = vmul.f32 %v2008, %v761
    %s2014 = sld [smem:[#allocation3 + $0xd]]
    %v2015 = vstv %s2014
    %v2016 = vmul.f32 %v2015, %v769
    %v2017 = vmul.f32 %v2015, %v770
    %v2018 = vmul.f32 %v2015, %v771
    %v2019 = vmul.f32 %v2015, %v772
    %v2020 = vmul.f32 %v2015, %v773
    %v2021 = vadd.f32 %v2009, %v2016
    %v2022 = vadd.f32 %v2010, %v2017
    %v2023 = vadd.f32 %v2011, %v2018
    %v2024 = vadd.f32 %v2012, %v2019
    %v2025 = vadd.f32 %v2013, %v2020
    %s2026 = sld [smem:[#allocation3 + $0x14]]
    %v2027 = vstv %s2026
    %v2028 = vmul.f32 %v2027, %v786
    %v2029 = vmul.f32 %v2027, %v787
    %v2030 = vmul.f32 %v2027, %v788
    %v2031 = vmul.f32 %v2027, %v789
    %v2032 = vmul.f32 %v2027, %v790
    %v2033 = vadd.f32 %v2021, %v2028
    %v2034 = vadd.f32 %v2022, %v2029
    %v2035 = vadd.f32 %v2023, %v2030
    %v2036 = vadd.f32 %v2024, %v2031
    %v2037 = vadd.f32 %v2025, %v2032
    %s2038 = sld [smem:[#allocation3 + $0x1b]]
    %v2039 = vstv %s2038
    %v2040 = vmul.f32 %v2039, %v803
    %v2041 = vmul.f32 %v2039, %v804
    %v2042 = vmul.f32 %v2039, %v805
    %v2043 = vmul.f32 %v2039, %v806
    %v2044 = vmul.f32 %v2039, %v807
    %v2045 = vadd.f32 %v2033, %v2040
    %v2046 = vadd.f32 %v2034, %v2041
    %v2047 = vadd.f32 %v2035, %v2042
    %v2048 = vadd.f32 %v2036, %v2043
    %v2049 = vadd.f32 %v2037, %v2044
    %s2050 = sld [smem:[#allocation3 + $0x22]]
    %v2051 = vstv %s2050
    %v2052 = vmul.f32 %v2051, %v820
    %v2053 = vmul.f32 %v2051, %v821
    %v2054 = vmul.f32 %v2051, %v822
    %v2055 = vmul.f32 %v2051, %v823
    %v2056 = vmul.f32 %v2051, %v824
    %v2057 = vadd.f32 %v2045, %v2052
    %v2058 = vadd.f32 %v2046, %v2053
    %v2059 = vadd.f32 %v2047, %v2054
    %v2060 = vadd.f32 %v2048, %v2055
    %v2061 = vadd.f32 %v2049, %v2056
    %s2062 = sld [smem:[#allocation3 + $0x29]]
    %v2063 = vstv %s2062
    %v2064 = vmul.f32 %v2063, %v837
    %v2065 = vmul.f32 %v2063, %v838
    %v2066 = vmul.f32 %v2063, %v839
    %v2067 = vmul.f32 %v2063, %v840
    %v2068 = vmul.f32 %v2063, %v841
    %v2069 = vadd.f32 %v2057, %v2064
    %v2070 = vadd.f32 %v2058, %v2065
    %v2071 = vadd.f32 %v2059, %v2066
    %v2072 = vadd.f32 %v2060, %v2067
    %v2073 = vadd.f32 %v2061, %v2068
    %s2074 = sld [smem:[#allocation3 + $0x30]]
    %v2075 = vstv %s2074
    %v2076 = vmul.f32 %v2075, %v854
    %v2077 = vmul.f32 %v2075, %v855
    %v2078 = vmul.f32 %v2075, %v856
    %v2079 = vmul.f32 %v2075, %v857
    %v2080 = vmul.f32 %v2075, %v858
    %v2081 = vadd.f32 %v2069, %v2076
    %v2082 = vadd.f32 %v2070, %v2077
    %v2083 = vadd.f32 %v2071, %v2078
    %v2084 = vadd.f32 %v2072, %v2079
    %v2085 = vadd.f32 %v2073, %v2080
    %s2086 = sld [smem:[#allocation3 + $0x37]]
    %v2087 = vstv %s2086
    %v2088 = vmul.f32 %v2087, %v871
    %v2089 = vmul.f32 %v2087, %v872
    %v2090 = vmul.f32 %v2087, %v873
    %v2091 = vmul.f32 %v2087, %v874
    %v2092 = vmul.f32 %v2087, %v875
    %v2093 = vadd.f32 %v2081, %v2088
    %v2094 = vadd.f32 %v2082, %v2089
    %v2095 = vadd.f32 %v2083, %v2090
    %v2096 = vadd.f32 %v2084, %v2091
    %v2097 = vadd.f32 %v2085, %v2092
    %s2098 = sld [smem:[#allocation3 + $0x3e]]
    %v2099 = vstv %s2098
    %v2100 = vmul.f32 %v2099, %v888
    %v2101 = vmul.f32 %v2099, %v889
    %v2102 = vmul.f32 %v2099, %v890
    %v2103 = vmul.f32 %v2099, %v891
    %v2104 = vmul.f32 %v2099, %v892
    %v2105 = vadd.f32 %v2093, %v2100
    %v2106 = vadd.f32 %v2094, %v2101
    %v2107 = vadd.f32 %v2095, %v2102
    %v2108 = vadd.f32 %v2096, %v2103
    %v2109 = vadd.f32 %v2097, %v2104
    %s2110 = sld [smem:[#allocation3 + $0x45]]
    %v2111 = vstv %s2110
    %v2112 = vmul.f32 %v2111, %v905
    %v2113 = vmul.f32 %v2111, %v906
    %v2114 = vmul.f32 %v2111, %v907
    %v2115 = vmul.f32 %v2111, %v908
    %v2116 = vmul.f32 %v2111, %v909
    %v2117 = vadd.f32 %v2105, %v2112
    %v2118 = vadd.f32 %v2106, %v2113
    %v2119 = vadd.f32 %v2107, %v2114
    %v2120 = vadd.f32 %v2108, %v2115
    %v2121 = vadd.f32 %v2109, %v2116
    %s2122 = sld [smem:[#allocation3 + $0x4c]]
    %v2123 = vstv %s2122
    %v2124 = vmul.f32 %v2123, %v922
    %v2125 = vmul.f32 %v2123, %v923
    %v2126 = vmul.f32 %v2123, %v924
    %v2127 = vmul.f32 %v2123, %v925
    %v2128 = vmul.f32 %v2123, %v926
    %v2129 = vadd.f32 %v2117, %v2124
    %v2130 = vadd.f32 %v2118, %v2125
    %v2131 = vadd.f32 %v2119, %v2126
    %v2132 = vadd.f32 %v2120, %v2127
    %v2133 = vadd.f32 %v2121, %v2128
    %s2134 = sld [smem:[#allocation3 + $0x53]]
    %v2135 = vstv %s2134
    %v2136 = vmul.f32 %v2135, %v939
    %v2137 = vmul.f32 %v2135, %v940
    %v2138 = vmul.f32 %v2135, %v941
    %v2139 = vmul.f32 %v2135, %v942
    %v2140 = vmul.f32 %v2135, %v943
    %v2141 = vadd.f32 %v2129, %v2136
    %v2142 = vadd.f32 %v2130, %v2137
    %v2143 = vadd.f32 %v2131, %v2138
    %v2144 = vadd.f32 %v2132, %v2139
    %v2145 = vadd.f32 %v2133, %v2140
    %s2146 = sld [smem:[#allocation3 + $0x5a]]
    %v2147 = vstv %s2146
    %v2148 = vmul.f32 %v2147, %v956
    %v2149 = vmul.f32 %v2147, %v957
    %v2150 = vmul.f32 %v2147, %v958
    %v2151 = vmul.f32 %v2147, %v959
    %v2152 = vmul.f32 %v2147, %v960
    %v2153 = vadd.f32 %v2141, %v2148
    %v2154 = vadd.f32 %v2142, %v2149
    %v2155 = vadd.f32 %v2143, %v2150
    %v2156 = vadd.f32 %v2144, %v2151
    %v2157 = vadd.f32 %v2145, %v2152
    %s2158 = sld [smem:[#allocation3 + $0x61]]
    %v2159 = vstv %s2158
    %v2160 = vmul.f32 %v2159, %v973
    %v2161 = vmul.f32 %v2159, %v974
    %v2162 = vmul.f32 %v2159, %v975
    %v2163 = vmul.f32 %v2159, %v976
    %v2164 = vmul.f32 %v2159, %v977
    %v2165 = vadd.f32 %v2153, %v2160
    %v2166 = vadd.f32 %v2154, %v2161
    %v2167 = vadd.f32 %v2155, %v2162
    %v2168 = vadd.f32 %v2156, %v2163
    %v2169 = vadd.f32 %v2157, %v2164
    %2175 = vrot.lane.b32.xlu0 %v2165, 122
    %v2176 = vpop.permute.xlu0 %2175
    %2177 = vrot.lane.b32.xlu0 %v2166, 122
    %v2178 = vpop.permute.xlu0 %2177
    %2179 = vrot.lane.b32.xlu0 %v2167, 122
    %v2180 = vpop.permute.xlu0 %2179
    %2181 = vrot.lane.b32.xlu0 %v2168, 122
    %v2182 = vpop.permute.xlu0 %2181
    %2183 = vrot.lane.b32.xlu0 %v2169, 122
    %v2184 = vpop.permute.xlu0 %2183
    %v2185 = vrot.slane %v2176, 2
    %v2186 = vrot.slane %v2178, 2
    %v2187 = vrot.slane %v2180, 2
    %v2188 = vrot.slane %v2182, 2
    %v2189 = vrot.slane %v2184, 2
    %v2190 = vsel %vm1177, %v2185, %v2186
    %vm2191 = vcmask 998400
    %v2192 = vsel %vm2191, %v2176, %v2190
    %v2193 = vsel %vm1177, %v2186, %v2187
    %v2194 = vsel %vm2191, %v2178, %v2193
    %v2195 = vsel %vm1177, %v2187, %v2188
    %v2196 = vsel %vm2191, %v2180, %v2195
    %v2197 = vsel %vm1177, %v2188, %v2189
    %v2198 = vsel %vm2191, %v2182, %v2197
    %v2199 = vsel %vm2191, %v2184, %v2189
    %v2205 = vadd.f32 %v2002, %v2192
    %v2206 = vadd.f32 %v2003, %v2194
    %v2207 = vadd.f32 %v2004, %v2196
    %v2208 = vadd.f32 %v2005, %v2198
    %v2209 = vadd.f32 %v2006, %v2199
    %v2210 = vxor.u32 %v2205, 2147483648
    %v2211 = vxor.u32 %v2206, 2147483648
    %v2212 = vxor.u32 %v2207, 2147483648
    %v2213 = vxor.u32 %v2208, 2147483648
    %v2214 = vxor.u32 %v2209, 2147483648
    %v2215 = vmul.f32 %v2210, 1.442695
    %v2216 = vpow.pop %v2215
    %v2217 = vmul.f32 %v2211, 1.442695
    %v2218 = vpow.pop %v2217
    %v2219 = vmul.f32 %v2212, 1.442695
    %v2220 = vpow.pop %v2219
    %v2221 = vmul.f32 %v2213, 1.442695
    %v2222 = vpow.pop %v2221
    %v2223 = vmul.f32 %v2214, 1.442695
    %v2224 = vpow.pop %v2223
    %v2225 = vadd.f32 %v2216, 1.0
    %v2226 = vadd.f32 %v2218, 1.0
    %v2227 = vadd.f32 %v2220, 1.0
    %v2228 = vadd.f32 %v2222, 1.0
    %v2229 = vadd.f32 %v2224, 1.0
    %v2230 = vrcp.pop %v2225
    %v2231 = vmul.f32 1.0, %v2230
    %v2232 = vrcp.pop %v2226
    %v2233 = vmul.f32 1.0, %v2232
    %v2234 = vrcp.pop %v2227
    %v2235 = vmul.f32 1.0, %v2234
    %v2236 = vrcp.pop %v2228
    %v2237 = vmul.f32 1.0, %v2236
    %v2238 = vrcp.pop %v2229
    %v2239 = vmul.f32 1.0, %v2238
    %2245 = vrot.lane.b32.xlu0 %v2231, 3
    %v2246 = vpop.permute.xlu0 %2245
    %2247 = vrot.lane.b32.xlu0 %v2233, 3
    %v2248 = vpop.permute.xlu0 %2247
    %2249 = vrot.lane.b32.xlu0 %v2235, 3
    %v2250 = vpop.permute.xlu0 %2249
    %2251 = vrot.lane.b32.xlu0 %v2237, 3
    %v2252 = vpop.permute.xlu0 %2251
    %2253 = vrot.lane.b32.xlu0 %v2239, 3
    %v2254 = vpop.permute.xlu0 %2253
    %v2255 = vrot.slane %v2246, 2
    %v2256 = vrot.slane %v2248, 2
    %v2257 = vrot.slane %v2250, 2
    %v2258 = vrot.slane %v2252, 2
    %v2259 = vrot.slane %v2254, 2
    %v2260 = vsel %vm1177, %v2255, %v2256
    %vm2261 = vcmask 23552
    %v2262 = vsel %vm2261, %v2246, %v2260
    %v2263 = vsel %vm1177, %v2256, %v2257
    %v2264 = vsel %vm2261, %v2248, %v2263
    %v2265 = vsel %vm1177, %v2257, %v2258
    %v2266 = vsel %vm2261, %v2250, %v2265
    %v2267 = vsel %vm1177, %v2258, %v2259
    %v2268 = vsel %vm2261, %v2252, %v2267
    %2273 = vst [vmem:[%s2] sm:$0xff] %v2262
    %2274 = vst [vmem:[%s2 + $0x8] sm:$0xff] %v2264
    %2275 = vst [vmem:[%s2 + $0x10] sm:$0xff] %v2266
    %2276 = vst [vmem:[%s2 + $0x18] sm:$0xff] %v2268
    // Predicated region
    $region14: #{spatial_attention.1} parent=1 // pred_check
      _
    $region15: #{spatial_attention.1} parent=1 // pred_check_branch
      %2278 = sbr.rel (0) target = $region17
    $region16: #{spatial_attention.1} parent=1 // pred_region
      _
    $region17: #{spatial_attention.1} parent=1 // pred_fallthru
      _
    // Predicated region
    $region18: #{spatial_attention.1} parent=1 // pred_check
      _
    $region19: #{spatial_attention.1} parent=1 // pred_check_branch
      %2280 = sbr.rel (0) target = $region21
    $region20: #{spatial_attention.1} parent=1 // pred_region
      _
    $region21: #{spatial_attention.1} parent=1 // pred_fallthru
      _
    %2281 = vsyncpa [#allocation4], 1

</llo_original>
